<compile_context>
chip_gen: v7x
topology: tpu7x:2x2x1
jax: 0.10.0
libtpu: 0.0.40
codegen_flags: <defaults>
</compile_context>

<pallas_src>
import functools
import math

import jax
import jax.numpy as jnp
from jax.experimental import pallas as pl
from jax.experimental.pallas import tpu as pltpu

LEAKY_SLOPE = 0.01  # nn.LeakyReLU default negative_slope


def _leaky_relu(x):
    return jnp.where(x > 0, x, LEAKY_SLOPE * x)


# ---------------------------------------------------------------------------
# Fused forward kernel (single invocation, everything in VMEM)
# ---------------------------------------------------------------------------
def dgcn_fused_kernel(
    # activations / graph structure
    kr_ref,        # (B*N, T, D)   krnn output, batch folded into rows
    nt_cat_ref,    # (B*N, 2*nd)   [edge_gcn node emb | gcn node emb]
    nt_eg_ref,     # (B*N, nd)
    nt_g_ref,      # (B*N, nd)
    a_edge_ref,    # (B*N, B*N)    block-diag propagation matrix (edge_attr)
    m2_ref,        # (2*B*E, B*N)  stacked [src ; tgt] block-diag gather matrices
    tgtT_ref,      # (B*N, B*E)    scatter matrix (tgt gather transposed)
    sel_eg_ref,    # (2D, D)       [[I];[0]] column selector
    sel_g_ref,     # (2D, D)       [[0];[I]] column selector
    # layer 0 of BOTH GCN stacks packed along the output lane axis (2D wide)
    w1x0_ref, w1n0_ref, b10_ref, w20_ref, b20_ref,
    # edge_gcn conv layer 1
    eg_w1x_ref, eg_w1n_ref, eg_b1_ref, eg_w2_ref, eg_b2_ref,
    # EdgeNet head
    hw1s_ref, hw1t_ref, hb1_ref, hw2_ref, hb2_ref,
    # gcn conv layer 1
    g_w1x_ref, g_w1n_ref, g_b1_ref, g_w2_ref, g_b2_ref,
    # packed output projections
    wr2_ref, wg2_ref, bo2_ref,
    # outputs
    yy_ref,        # (B*N, 2L)  [:, :L] = y, [:, L:] = y_rnn
    gate_ref,      # (B*E, 1)   learned edge gate
):
    BE = gate_ref.shape[0]

    def mxu(a, b):
        return jnp.dot(a, b, preferred_element_type=jnp.float32)

    # rnn branch: max over time; rnn_out stays in VMEM, never hits HBM
    rnn_out = jnp.max(kr_ref[...], axis=1)                       # (BN, D)

    # layer 0 of BOTH stacks in one 64-lane-wide pass
    h0 = _leaky_relu(mxu(rnn_out, w1x0_ref[...])
                     + mxu(nt_cat_ref[...], w1n0_ref[...]) + b10_ref[...])
    xin0 = _leaky_relu(mxu(h0, w20_ref[...]) + b20_ref[...])     # (BN, 2D)
    # MXU selector matmuls instead of lane-offset slices (no vreg relayout)
    xin_eg0 = mxu(xin0, sel_eg_ref[...])                         # (BN, D)
    xin_g0 = mxu(xin0, sel_g_ref[...])                           # (BN, D)

    a_edge = a_edge_ref[...]
    nt_eg = nt_eg_ref[...]
    nt_g = nt_g_ref[...]

    # ---- EdgeNet GCN stack (edge weights = edge_attr, folded into a_edge) --
    x1 = rnn_out + mxu(a_edge, xin_eg0)
    h = _leaky_relu(mxu(x1, eg_w1x_ref[...]) + mxu(nt_eg, eg_w1n_ref[...])
                    + eg_b1_ref[...])
    xin = _leaky_relu(mxu(h, eg_w2_ref[...]) + eg_b2_ref[...])
    ex = x1 + mxu(a_edge, xin)                                   # (BN, D)

    # ---- EdgeNet head: one stacked gather of [x_src ; x_tgt] for all edges -
    m2 = m2_ref[...]                                             # (2BE, BN)
    gathered = mxu(m2, ex)                                       # (2BE, D)
    xs = gathered[:BE]                                           # (BE, D)
    xt = gathered[BE:]                                           # (BE, D)
    hh = _leaky_relu(mxu(xs, hw1s_ref[...]) + mxu(xt, hw1t_ref[...])
                     + hb1_ref[...])
    gate = jnp.maximum(mxu(hh, hw2_ref[...]) + hb2_ref[...], 0.0)  # (BE, 1)
    gate_ref[...] = gate

    # ---- per-batch propagation matrix for the main GCN stack ---------------
    a_gcn = mxu(tgtT_ref[...], m2[:BE] * gate)                   # (BN, BN)

    # ---- main GCN stack (edge weights = learned edge gate) -----------------
    x1g = rnn_out + mxu(a_gcn, xin_g0)
    h = _leaky_relu(mxu(x1g, g_w1x_ref[...]) + mxu(nt_g, g_w1n_ref[...])
                    + g_b1_ref[...])
    xin = _leaky_relu(mxu(h, g_w2_ref[...]) + g_b2_ref[...])
    gcn_out = x1g + mxu(a_gcn, xin)                              # (BN, D)

    # ---- outputs: [y | y_rnn] with a single lane-dense store ---------------
    yy_ref[...] = (mxu(rnn_out, wr2_ref[...]) + mxu(gcn_out, wg2_ref[...])
                   + bo2_ref[...])


# ---------------------------------------------------------------------------
# Config / deterministic parameter initialization
# ---------------------------------------------------------------------------
class Config:
    rnn_type = "krnn"
    rnn_dim = 32            # rnn_hid_dim
    lookahead_days = 4
    gcn_dim = 32            # must equal rnn_dim (residual add in GCNConv)
    gcn_node_dim = 8
    gcn_dropout = 0.0       # inference: dropout = identity
    gcn_layer_num = 2       # fused kernel is specialized to 2 layers
    gcn_aggr = "add"
    num_node_types = 3


def init_linear(key, fan_in, fan_out):
    kw, kb = jax.random.split(key)
    bound = 1.0 / math.sqrt(fan_in)
    w = jax.random.uniform(kw, (fan_in, fan_out), jnp.float32, -bound, bound)
    b = jax.random.uniform(kb, (1, fan_out), jnp.float32, -bound, bound)
    return w, b


def init_gcn_conv_params(key, in_dim, cfg):
    k1, k2 = jax.random.split(key)
    w1, b1 = init_linear(k1, in_dim + cfg.gcn_node_dim, cfg.gcn_dim)
    w2, b2 = init_linear(k2, cfg.gcn_dim, cfg.gcn_dim)
    # split W1 so that cat([x, node_type]) @ W1 == x @ W1_x + node_type @ W1_n
    return {"w1x": w1[:in_dim], "w1n": w1[in_dim:], "b1": b1, "w2": w2, "b2": b2}


def init_gcn_net_params(key, gcn_in_dim, cfg):
    keys = jax.random.split(key, cfg.gcn_layer_num + 1)
    emb = jax.random.normal(keys[0], (cfg.num_node_types, cfg.gcn_node_dim),
                            jnp.float32)
    convs = [init_gcn_conv_params(keys[1], gcn_in_dim, cfg)]
    for i in range(1, cfg.gcn_layer_num):
        convs.append(init_gcn_conv_params(keys[1 + i], cfg.gcn_dim, cfg))
    return {"node_type_emb": emb, "convs": convs}


def init_edge_net_params(key, gcn_in_dim, cfg):
    k1, k2, k3 = jax.random.split(key, 3)
    net = init_gcn_net_params(k1, gcn_in_dim, cfg)
    w1, b1 = init_linear(k2, 2 * cfg.gcn_dim, cfg.gcn_dim)
    w2, b2 = init_linear(k3, cfg.gcn_dim, 1)
    net["fea_map"] = {"w1s": w1[:cfg.gcn_dim], "w1t": w1[cfg.gcn_dim:],
                      "b1": b1, "w2": w2, "b2": b2}
    return net


def init_dgcn_params(key, cfg):
    assert cfg.rnn_dim == cfg.gcn_dim, "GCNConv residual add requires equal dims"
    k1, k2, k3, k4 = jax.random.split(key, 4)
    rw, rb = init_linear(k1, cfg.rnn_dim, cfg.lookahead_days)
    gw, gb = init_linear(k4, cfg.gcn_dim, cfg.lookahead_days)
    return {
        "rnn_fc_w": rw, "rnn_fc_b": rb,
        "edge_gcn": init_edge_net_params(k2, cfg.rnn_dim, cfg),
        "gcn": init_gcn_net_params(k3, cfg.rnn_dim, cfg),
        "gcn_fc_w": gw, "gcn_fc_b": gb,
    }


# ---------------------------------------------------------------------------
# Forward: one-time XLA packing (graph matrices + fused weights) + one kernel
# ---------------------------------------------------------------------------
def _block_diag(a, b):
    za = jnp.zeros((a.shape[0], b.shape[1]), a.dtype)
    zb = jnp.zeros((b.shape[0], a.shape[1]), b.dtype)
    return jnp.concatenate(
        [jnp.concatenate([a, za], axis=1),
         jnp.concatenate([zb, b], axis=1)], axis=0)


def dgcn_forward(params, kr_out, g, cfg):
    assert cfg.gcn_layer_num == 2  # fused kernel specialization
    B, N, T, D = kr_out.shape
    L = params["rnn_fc_w"].shape[1]
    edge_index = g["edge_index"]
    E = edge_index.shape[1]
    BN, BE = B * N, B * E
    f32 = jnp.float32

    # ---- graph preprocessing (block-diag gather / propagation matrices) ----
    src_oh = jax.nn.one_hot(edge_index[0], N, dtype=f32)            # (E, N)
    tgt_oh = jax.nn.one_hot(edge_index[1], N, dtype=f32)            # (E, N)
    eye_b = jnp.eye(B, dtype=f32)
    src_blk = jnp.kron(eye_b, src_oh)                               # (BE, BN)
    tgt_blk = jnp.kron(eye_b, tgt_oh)                               # (BE, BN)
    m2_blk = jnp.concatenate([src_blk, tgt_blk], axis=0)            # (2BE, BN)
    tgt_blkT = tgt_blk.T                                            # (BN, BE)

    edge_attr = g["edge_attr"].astype(f32).reshape(E)
    a_edge = jnp.einsum("en,em->nm", tgt_oh, src_oh * edge_attr[:, None],
                        precision=jax.lax.Precision.HIGHEST)        # (N, N)
    a_edge_blk = jnp.kron(eye_b, a_edge)                            # (BN, BN)

    nt_eg = jnp.tile(params["edge_gcn"]["node_type_emb"][g["node_type"]], (B, 1))
    nt_g = jnp.tile(params["gcn"]["node_type_emb"][g["node_type"]], (B, 1))
    nt_cat = jnp.concatenate([nt_eg, nt_g], axis=1)                 # (BN, 2nd)

    # ---- weight packing for the batched layer-0 / output projections -------
    eg0, eg1 = params["edge_gcn"]["convs"]
    g0, g1 = params["gcn"]["convs"]
    head = params["edge_gcn"]["fea_map"]

    w1x_cat0 = jnp.concatenate([eg0["w1x"], g0["w1x"]], axis=1)     # (D, 2D)
    w1n_blk0 = _block_diag(eg0["w1n"], g0["w1n"])                   # (2nd, 2D)
    b1_cat0 = jnp.concatenate([eg0["b1"], g0["b1"]], axis=1)        # (1, 2D)
    w2_blk0 = _block_diag(eg0["w2"], g0["w2"])                      # (2D, 2D)
    b2_cat0 = jnp.concatenate([eg0["b2"], g0["b2"]], axis=1)        # (1, 2D)

    eye_d = jnp.eye(D, dtype=f32)
    zero_d = jnp.zeros((D, D), f32)
    sel_eg = jnp.concatenate([eye_d, zero_d], axis=0)               # (2D, D)
    sel_g = jnp.concatenate([zero_d, eye_d], axis=0)                # (2D, D)

    wr, br = params["rnn_fc_w"], params["rnn_fc_b"]
    wg, bg = params["gcn_fc_w"], params["gcn_fc_b"]
    wr2 = jnp.concatenate([wr, wr], axis=1)                         # (D, 2L)
    wg2 = jnp.concatenate([wg, jnp.zeros_like(wg)], axis=1)         # (D, 2L)
    bo2 = jnp.concatenate([br + bg, br], axis=1)                    # (1, 2L)

    kr_flat = kr_out.reshape(BN, T, D)

    args = (kr_flat, nt_cat, nt_eg, nt_g, a_edge_blk, m2_blk, tgt_blkT,
            sel_eg, sel_g,
            w1x_cat0, w1n_blk0, b1_cat0, w2_blk0, b2_cat0,
            eg1["w1x"], eg1["w1n"], eg1["b1"], eg1["w2"], eg1["b2"],
            head["w1s"], head["w1t"], head["b1"], head["w2"], head["b2"],
            g1["w1x"], g1["w1n"], g1["b1"], g1["w2"], g1["b2"],
            wr2, wg2, bo2)

    # Single fused, grid-free invocation: everything resident in VMEM.
    # TODO(synk): on v7x (2 TensorCores) a leading size-B "parallel" grid axis
    # would let both cores take one batch element each.
    vmem = pl.BlockSpec(memory_space=pltpu.MemorySpace.VMEM)
    yy, gate = pl.pallas_call(
        dgcn_fused_kernel,
        out_shape=(jax.ShapeDtypeStruct((BN, 2 * L), f32),
                   jax.ShapeDtypeStruct((BE, 1), f32)),
        in_specs=[vmem] * len(args),
        out_specs=(vmem, vmem),
    )(*args)

    y = yy[:, :L].reshape(B, N, L)
    y_rnn = yy[:, L:].reshape(B, N, L)
    edge_gate = gate.reshape(B, E, 1)
    return y, y_rnn, edge_gate


# ---------------------------------------------------------------------------
# Pure-JAX reference of the PyTorch forward (for validation only)
# ---------------------------------------------------------------------------
def _ref_mm(a, w):
    return jnp.einsum("...k,km->...m", a, w,
                      precision=jax.lax.Precision.HIGHEST)


def dgcn_reference(params, kr_out, g):
    B, N, T, D = kr_out.shape
    src, tgt = g["edge_index"][0], g["edge_index"][1]
    E = src.shape[0]

    rnn_out = jnp.max(kr_out, axis=-2)                              # (B,N,D)
    y_rnn = _ref_mm(rnn_out, params["rnn_fc_w"]) + params["rnn_fc_b"]

    def conv(x, nt, ew, p):
        h = _leaky_relu(_ref_mm(x, p["w1x"]) + _ref_mm(nt, p["w1n"]) + p["b1"])
        x_in = _leaky_relu(_ref_mm(h, p["w2"]) + p["b2"])
        msg = x_in[:, src, :] * ew                                  # (B,E,D)
        aggr = jnp.zeros_like(x_in).at[:, tgt, :].add(msg)
        return x + aggr

    def stack(x, net, ew):
        nt = net["node_type_emb"][g["node_type"]]                   # (N, nd)
        for p in net["convs"]:
            x = conv(x, nt, ew, p)
        return x

    ew_attr = jnp.broadcast_to(
        g["edge_attr"].astype(jnp.float32).reshape(1, E, 1), (B, E, 1))
    ex = stack(rnn_out, params["edge_gcn"], ew_attr)
    hm = params["edge_gcn"]["fea_map"]
    hh = _leaky_relu(_ref_mm(ex[:, src, :], hm["w1s"])
                     + _ref_mm(ex[:, tgt, :], hm["w1t"]) + hm["b1"])
    edge_gate = jnp.maximum(_ref_mm(hh, hm["w2"]) + hm["b2"], 0.0)  # (B,E,1)
    gcn_out = stack(rnn_out, params["gcn"], edge_gate)
    y = y_rnn + _ref_mm(gcn_out, params["gcn_fc_w"]) + params["gcn_fc_b"]
    return y, y_rnn, edge_gate


if __name__ == "__main__":
    cfg = Config()
    B, N, E, T = 2, 16, 32, 8

    key = jax.random.PRNGKey(0)
    k1, k2, k3, k4, k5 = jax.random.split(key, 5)
    # kr_out stands in for MyKRNNEncoder(input_day, g): (B, N, T, rnn_dim)
    kr_out = jax.random.normal(k1, (B, N, T, cfg.rnn_dim), jnp.float32)
    edge_index = jax.random.randint(k2, (2, E), 0, N)
    edge_attr = jax.random.uniform(k3, (E,), jnp.float32)
    node_type = jax.random.randint(k4, (N,), 0, cfg.num_node_types)
    g = {"edge_index": edge_index, "edge_attr": edge_attr,
         "node_type": node_type}

    params = init_dgcn_params(k5, cfg)

    fwd = jax.jit(functools.partial(dgcn_forward, cfg=cfg))
    y, y_rnn, edge_gate = fwd(params, kr_out, g)
    jax.block_until_ready((y, y_rnn, edge_gate))

    assert y.shape == (B, N, cfg.lookahead_days)
    assert y_rnn.shape == (B, N, cfg.lookahead_days)
    assert edge_gate.shape == (B, E, 1)

    # validate the fused kernel against the pure-JAX reference
    y_ref, y_rnn_ref, gate_ref = dgcn_reference(params, kr_out, g)
    assert jnp.allclose(y, y_ref, rtol=2e-2, atol=2e-2), (
        "y mismatch, max abs diff = %e" % float(jnp.max(jnp.abs(y - y_ref))))
    assert jnp.allclose(y_rnn, y_rnn_ref, rtol=2e-2, atol=2e-2)
    assert jnp.allclose(edge_gate, gate_ref, rtol=2e-2, atol=2e-2)

    print("KERNEL_OK")
</pallas_src>

<mosaic_0001>
module attributes {stable_mosaic.version = 11 : i64} {
  func.func @dgcn_fused_kernel(%arg0: memref<32x8x32xf32, #tpu.memory_space<vmem>>, %arg1: memref<32x16xf32, #tpu.memory_space<vmem>>, %arg2: memref<32x8xf32, #tpu.memory_space<vmem>>, %arg3: memref<32x8xf32, #tpu.memory_space<vmem>>, %arg4: memref<32x32xf32, #tpu.memory_space<vmem>>, %arg5: memref<128x32xf32, #tpu.memory_space<vmem>>, %arg6: memref<32x64xf32, #tpu.memory_space<vmem>>, %arg7: memref<64x32xf32, #tpu.memory_space<vmem>>, %arg8: memref<64x32xf32, #tpu.memory_space<vmem>>, %arg9: memref<32x64xf32, #tpu.memory_space<vmem>>, %arg10: memref<16x64xf32, #tpu.memory_space<vmem>>, %arg11: memref<1x64xf32, #tpu.memory_space<vmem>>, %arg12: memref<64x64xf32, #tpu.memory_space<vmem>>, %arg13: memref<1x64xf32, #tpu.memory_space<vmem>>, %arg14: memref<32x32xf32, #tpu.memory_space<vmem>>, %arg15: memref<8x32xf32, #tpu.memory_space<vmem>>, %arg16: memref<1x32xf32, #tpu.memory_space<vmem>>, %arg17: memref<32x32xf32, #tpu.memory_space<vmem>>, %arg18: memref<1x32xf32, #tpu.memory_space<vmem>>, %arg19: memref<32x32xf32, #tpu.memory_space<vmem>>, %arg20: memref<32x32xf32, #tpu.memory_space<vmem>>, %arg21: memref<1x32xf32, #tpu.memory_space<vmem>>, %arg22: memref<32x1xf32, #tpu.memory_space<vmem>>, %arg23: memref<1x1xf32, #tpu.memory_space<vmem>>, %arg24: memref<32x32xf32, #tpu.memory_space<vmem>>, %arg25: memref<8x32xf32, #tpu.memory_space<vmem>>, %arg26: memref<1x32xf32, #tpu.memory_space<vmem>>, %arg27: memref<32x32xf32, #tpu.memory_space<vmem>>, %arg28: memref<1x32xf32, #tpu.memory_space<vmem>>, %arg29: memref<32x8xf32, #tpu.memory_space<vmem>>, %arg30: memref<32x8xf32, #tpu.memory_space<vmem>>, %arg31: memref<1x8xf32, #tpu.memory_space<vmem>>, %arg32: memref<32x8xf32, #tpu.memory_space<vmem>>, %arg33: memref<64x1xf32, #tpu.memory_space<vmem>>) attributes {dimension_semantics = [], scalar_prefetch = 0 : i64, scratch_operands = 0 : i64, tpu.core_type = #tpu.core_type<tc>} {
    %c0 = arith.constant 0 : index
    %c0_0 = arith.constant 0 : index
    %c0_1 = arith.constant 0 : index
    %0 = vector.load %arg0[%c0, %c0_0, %c0_1] : memref<32x8x32xf32, #tpu.memory_space<vmem>>, vector<32x8x32xf32>
    %cst = arith.constant dense<0xFF800000> : vector<32x32xf32>
    %1 = vector.multi_reduction <maximumf>, %0, %cst [1] : vector<32x8x32xf32> to vector<32x32xf32>
    %c0_2 = arith.constant 0 : index
    %c0_3 = arith.constant 0 : index
    %2 = vector.load %arg9[%c0_2, %c0_3] : memref<32x64xf32, #tpu.memory_space<vmem>>, vector<32x64xf32>
    %cst_4 = arith.constant dense<0.000000e+00> : vector<32x64xf32>
    %3 = tpu.matmul %1, %2, %cst_4 {dimension_numbers = #tpu.dot_dimension_numbers<[1], [0], [0], [1], [0, 0, 1, 1], [], []>} : vector<32x32xf32>, vector<32x64xf32>, vector<32x64xf32> -> vector<32x64xf32>
    %c0_5 = arith.constant 0 : index
    %c0_6 = arith.constant 0 : index
    %4 = vector.load %arg1[%c0_5, %c0_6] : memref<32x16xf32, #tpu.memory_space<vmem>>, vector<32x16xf32>
    %c0_7 = arith.constant 0 : index
    %c0_8 = arith.constant 0 : index
    %5 = vector.load %arg10[%c0_7, %c0_8] : memref<16x64xf32, #tpu.memory_space<vmem>>, vector<16x64xf32>
    %cst_9 = arith.constant dense<0.000000e+00> : vector<32x64xf32>
    %6 = tpu.matmul %4, %5, %cst_9 {dimension_numbers = #tpu.dot_dimension_numbers<[1], [0], [0], [1], [0, 0, 1, 1], [], []>} : vector<32x16xf32>, vector<16x64xf32>, vector<32x64xf32> -> vector<32x64xf32>
    %7 = arith.addf %3, %6 : vector<32x64xf32>
    %c0_10 = arith.constant 0 : index
    %c0_11 = arith.constant 0 : index
    %8 = vector.load %arg11[%c0_10, %c0_11] : memref<1x64xf32, #tpu.memory_space<vmem>>, vector<1x64xf32>
    %9 = vector.broadcast %8 : vector<1x64xf32> to vector<32x64xf32>
    %10 = arith.addf %7, %9 : vector<32x64xf32>
    %cst_12 = arith.constant 0.000000e+00 : f32
    %11 = vector.broadcast %cst_12 : f32 to vector<32x64xf32>
    %12 = arith.cmpf ogt, %10, %11 : vector<32x64xf32>
    %cst_13 = arith.constant 0.00999999977 : f32
    %13 = vector.broadcast %cst_13 : f32 to vector<32x64xf32>
    %14 = arith.mulf %13, %10 : vector<32x64xf32>
    %15 = arith.select %12, %10, %14 : vector<32x64xi1>, vector<32x64xf32>
    %c0_14 = arith.constant 0 : index
    %c0_15 = arith.constant 0 : index
    %16 = vector.load %arg12[%c0_14, %c0_15] : memref<64x64xf32, #tpu.memory_space<vmem>>, vector<64x64xf32>
    %cst_16 = arith.constant dense<0.000000e+00> : vector<32x64xf32>
    %17 = tpu.matmul %15, %16, %cst_16 {dimension_numbers = #tpu.dot_dimension_numbers<[1], [0], [0], [1], [0, 0, 1, 1], [], []>} : vector<32x64xf32>, vector<64x64xf32>, vector<32x64xf32> -> vector<32x64xf32>
    %c0_17 = arith.constant 0 : index
    %c0_18 = arith.constant 0 : index
    %18 = vector.load %arg13[%c0_17, %c0_18] : memref<1x64xf32, #tpu.memory_space<vmem>>, vector<1x64xf32>
    %19 = vector.broadcast %18 : vector<1x64xf32> to vector<32x64xf32>
    %20 = arith.addf %17, %19 : vector<32x64xf32>
    %cst_19 = arith.constant 0.000000e+00 : f32
    %21 = vector.broadcast %cst_19 : f32 to vector<32x64xf32>
    %22 = arith.cmpf ogt, %20, %21 : vector<32x64xf32>
    %cst_20 = arith.constant 0.00999999977 : f32
    %23 = vector.broadcast %cst_20 : f32 to vector<32x64xf32>
    %24 = arith.mulf %23, %20 : vector<32x64xf32>
    %25 = arith.select %22, %20, %24 : vector<32x64xi1>, vector<32x64xf32>
    %c0_21 = arith.constant 0 : index
    %c0_22 = arith.constant 0 : index
    %26 = vector.load %arg7[%c0_21, %c0_22] : memref<64x32xf32, #tpu.memory_space<vmem>>, vector<64x32xf32>
    %cst_23 = arith.constant dense<0.000000e+00> : vector<32x32xf32>
    %27 = tpu.matmul %25, %26, %cst_23 {dimension_numbers = #tpu.dot_dimension_numbers<[1], [0], [0], [1], [0, 0, 1, 1], [], []>} : vector<32x64xf32>, vector<64x32xf32>, vector<32x32xf32> -> vector<32x32xf32>
    %c0_24 = arith.constant 0 : index
    %c0_25 = arith.constant 0 : index
    %28 = vector.load %arg8[%c0_24, %c0_25] : memref<64x32xf32, #tpu.memory_space<vmem>>, vector<64x32xf32>
    %cst_26 = arith.constant dense<0.000000e+00> : vector<32x32xf32>
    %29 = tpu.matmul %25, %28, %cst_26 {dimension_numbers = #tpu.dot_dimension_numbers<[1], [0], [0], [1], [0, 0, 1, 1], [], []>} : vector<32x64xf32>, vector<64x32xf32>, vector<32x32xf32> -> vector<32x32xf32>
    %c0_27 = arith.constant 0 : index
    %c0_28 = arith.constant 0 : index
    %30 = vector.load %arg4[%c0_27, %c0_28] : memref<32x32xf32, #tpu.memory_space<vmem>>, vector<32x32xf32>
    %c0_29 = arith.constant 0 : index
    %c0_30 = arith.constant 0 : index
    %31 = vector.load %arg2[%c0_29, %c0_30] : memref<32x8xf32, #tpu.memory_space<vmem>>, vector<32x8xf32>
    %c0_31 = arith.constant 0 : index
    %c0_32 = arith.constant 0 : index
    %32 = vector.load %arg3[%c0_31, %c0_32] : memref<32x8xf32, #tpu.memory_space<vmem>>, vector<32x8xf32>
    %cst_33 = arith.constant dense<0.000000e+00> : vector<32x32xf32>
    %33 = tpu.matmul %30, %27, %cst_33 {dimension_numbers = #tpu.dot_dimension_numbers<[1], [0], [0], [1], [0, 0, 1, 1], [], []>} : vector<32x32xf32>, vector<32x32xf32>, vector<32x32xf32> -> vector<32x32xf32>
    %34 = arith.addf %1, %33 : vector<32x32xf32>
    %c0_34 = arith.constant 0 : index
    %c0_35 = arith.constant 0 : index
    %35 = vector.load %arg14[%c0_34, %c0_35] : memref<32x32xf32, #tpu.memory_space<vmem>>, vector<32x32xf32>
    %cst_36 = arith.constant dense<0.000000e+00> : vector<32x32xf32>
    %36 = tpu.matmul %34, %35, %cst_36 {dimension_numbers = #tpu.dot_dimension_numbers<[1], [0], [0], [1], [0, 0, 1, 1], [], []>} : vector<32x32xf32>, vector<32x32xf32>, vector<32x32xf32> -> vector<32x32xf32>
    %c0_37 = arith.constant 0 : index
    %c0_38 = arith.constant 0 : index
    %37 = vector.load %arg15[%c0_37, %c0_38] : memref<8x32xf32, #tpu.memory_space<vmem>>, vector<8x32xf32>
    %cst_39 = arith.constant dense<0.000000e+00> : vector<32x32xf32>
    %38 = tpu.matmul %31, %37, %cst_39 {dimension_numbers = #tpu.dot_dimension_numbers<[1], [0], [0], [1], [0, 0, 1, 1], [], []>} : vector<32x8xf32>, vector<8x32xf32>, vector<32x32xf32> -> vector<32x32xf32>
    %39 = arith.addf %36, %38 : vector<32x32xf32>
    %c0_40 = arith.constant 0 : index
    %c0_41 = arith.constant 0 : index
    %40 = vector.load %arg16[%c0_40, %c0_41] : memref<1x32xf32, #tpu.memory_space<vmem>>, vector<1x32xf32>
    %41 = vector.broadcast %40 : vector<1x32xf32> to vector<32x32xf32>
    %42 = arith.addf %39, %41 : vector<32x32xf32>
    %cst_42 = arith.constant 0.000000e+00 : f32
    %43 = vector.broadcast %cst_42 : f32 to vector<32x32xf32>
    %44 = arith.cmpf ogt, %42, %43 : vector<32x32xf32>
    %cst_43 = arith.constant 0.00999999977 : f32
    %45 = vector.broadcast %cst_43 : f32 to vector<32x32xf32>
    %46 = arith.mulf %45, %42 : vector<32x32xf32>
    %47 = arith.select %44, %42, %46 : vector<32x32xi1>, vector<32x32xf32>
    %c0_44 = arith.constant 0 : index
    %c0_45 = arith.constant 0 : index
    %48 = vector.load %arg17[%c0_44, %c0_45] : memref<32x32xf32, #tpu.memory_space<vmem>>, vector<32x32xf32>
    %cst_46 = arith.constant dense<0.000000e+00> : vector<32x32xf32>
    %49 = tpu.matmul %47, %48, %cst_46 {dimension_numbers = #tpu.dot_dimension_numbers<[1], [0], [0], [1], [0, 0, 1, 1], [], []>} : vector<32x32xf32>, vector<32x32xf32>, vector<32x32xf32> -> vector<32x32xf32>
    %c0_47 = arith.constant 0 : index
    %c0_48 = arith.constant 0 : index
    %50 = vector.load %arg18[%c0_47, %c0_48] : memref<1x32xf32, #tpu.memory_space<vmem>>, vector<1x32xf32>
    %51 = vector.broadcast %50 : vector<1x32xf32> to vector<32x32xf32>
    %52 = arith.addf %49, %51 : vector<32x32xf32>
    %cst_49 = arith.constant 0.000000e+00 : f32
    %53 = vector.broadcast %cst_49 : f32 to vector<32x32xf32>
    %54 = arith.cmpf ogt, %52, %53 : vector<32x32xf32>
    %cst_50 = arith.constant 0.00999999977 : f32
    %55 = vector.broadcast %cst_50 : f32 to vector<32x32xf32>
    %56 = arith.mulf %55, %52 : vector<32x32xf32>
    %57 = arith.select %54, %52, %56 : vector<32x32xi1>, vector<32x32xf32>
    %cst_51 = arith.constant dense<0.000000e+00> : vector<32x32xf32>
    %58 = tpu.matmul %30, %57, %cst_51 {dimension_numbers = #tpu.dot_dimension_numbers<[1], [0], [0], [1], [0, 0, 1, 1], [], []>} : vector<32x32xf32>, vector<32x32xf32>, vector<32x32xf32> -> vector<32x32xf32>
    %59 = arith.addf %34, %58 : vector<32x32xf32>
    %c0_52 = arith.constant 0 : index
    %c0_53 = arith.constant 0 : index
    %60 = vector.load %arg5[%c0_52, %c0_53] : memref<128x32xf32, #tpu.memory_space<vmem>>, vector<128x32xf32>
    %cst_54 = arith.constant dense<0.000000e+00> : vector<128x32xf32>
    %61 = tpu.matmul %60, %59, %cst_54 {dimension_numbers = #tpu.dot_dimension_numbers<[1], [0], [0], [1], [0, 0, 1, 1], [], []>} : vector<128x32xf32>, vector<32x32xf32>, vector<128x32xf32> -> vector<128x32xf32>
    %62 = vector.extract_strided_slice %61 {offsets = [0, 0], sizes = [64, 32], strides = [1, 1]} : vector<128x32xf32> to vector<64x32xf32>
    %63 = vector.extract_strided_slice %61 {offsets = [64, 0], sizes = [64, 32], strides = [1, 1]} : vector<128x32xf32> to vector<64x32xf32>
    %c0_55 = arith.constant 0 : index
    %c0_56 = arith.constant 0 : index
    %64 = vector.load %arg19[%c0_55, %c0_56] : memref<32x32xf32, #tpu.memory_space<vmem>>, vector<32x32xf32>
    %cst_57 = arith.constant dense<0.000000e+00> : vector<64x32xf32>
    %65 = tpu.matmul %62, %64, %cst_57 {dimension_numbers = #tpu.dot_dimension_numbers<[1], [0], [0], [1], [0, 0, 1, 1], [], []>} : vector<64x32xf32>, vector<32x32xf32>, vector<64x32xf32> -> vector<64x32xf32>
    %c0_58 = arith.constant 0 : index
    %c0_59 = arith.constant 0 : index
    %66 = vector.load %arg20[%c0_58, %c0_59] : memref<32x32xf32, #tpu.memory_space<vmem>>, vector<32x32xf32>
    %cst_60 = arith.constant dense<0.000000e+00> : vector<64x32xf32>
    %67 = tpu.matmul %63, %66, %cst_60 {dimension_numbers = #tpu.dot_dimension_numbers<[1], [0], [0], [1], [0, 0, 1, 1], [], []>} : vector<64x32xf32>, vector<32x32xf32>, vector<64x32xf32> -> vector<64x32xf32>
    %68 = arith.addf %65, %67 : vector<64x32xf32>
    %c0_61 = arith.constant 0 : index
    %c0_62 = arith.constant 0 : index
    %69 = vector.load %arg21[%c0_61, %c0_62] : memref<1x32xf32, #tpu.memory_space<vmem>>, vector<1x32xf32>
    %70 = vector.broadcast %69 : vector<1x32xf32> to vector<64x32xf32>
    %71 = arith.addf %68, %70 : vector<64x32xf32>
    %cst_63 = arith.constant 0.000000e+00 : f32
    %72 = vector.broadcast %cst_63 : f32 to vector<64x32xf32>
    %73 = arith.cmpf ogt, %71, %72 : vector<64x32xf32>
    %cst_64 = arith.constant 0.00999999977 : f32
    %74 = vector.broadcast %cst_64 : f32 to vector<64x32xf32>
    %75 = arith.mulf %74, %71 : vector<64x32xf32>
    %76 = arith.select %73, %71, %75 : vector<64x32xi1>, vector<64x32xf32>
    %c0_65 = arith.constant 0 : index
    %c0_66 = arith.constant 0 : index
    %77 = vector.load %arg22[%c0_65, %c0_66] : memref<32x1xf32, #tpu.memory_space<vmem>>, vector<32x1xf32>
    %cst_67 = arith.constant dense<0.000000e+00> : vector<64x1xf32>
    %78 = tpu.matmul %76, %77, %cst_67 {dimension_numbers = #tpu.dot_dimension_numbers<[1], [0], [0], [1], [0, 0, 1, 1], [], []>} : vector<64x32xf32>, vector<32x1xf32>, vector<64x1xf32> -> vector<64x1xf32>
    %c0_68 = arith.constant 0 : index
    %c0_69 = arith.constant 0 : index
    %79 = vector.load %arg23[%c0_68, %c0_69] : memref<1x1xf32, #tpu.memory_space<vmem>>, vector<1x1xf32>
    %80 = vector.broadcast %79 : vector<1x1xf32> to vector<64x1xf32>
    %81 = arith.addf %78, %80 : vector<64x1xf32>
    %cst_70 = arith.constant 0.000000e+00 : f32
    %82 = vector.broadcast %cst_70 : f32 to vector<64x1xf32>
    %83 = arith.maximumf %81, %82 : vector<64x1xf32>
    %c0_71 = arith.constant 0 : index
    %c0_72 = arith.constant 0 : index
    %84 = vector.load %arg33[%c0_71, %c0_72] : memref<64x1xf32, #tpu.memory_space<vmem>>, vector<64x1xf32>
    tpu.vector_store %arg33[%c0_71, %c0_72], %83 {strides = array<i32>} : memref<64x1xf32, #tpu.memory_space<vmem>>, vector<64x1xf32>,
    %c0_73 = arith.constant 0 : index
    %c0_74 = arith.constant 0 : index
    %85 = vector.load %arg6[%c0_73, %c0_74] : memref<32x64xf32, #tpu.memory_space<vmem>>, vector<32x64xf32>
    %86 = vector.extract_strided_slice %60 {offsets = [0, 0], sizes = [64, 32], strides = [1, 1]} : vector<128x32xf32> to vector<64x32xf32>
    %87 = vector.broadcast %83 : vector<64x1xf32> to vector<64x32xf32>
    %88 = arith.mulf %86, %87 : vector<64x32xf32>
    %cst_75 = arith.constant dense<0.000000e+00> : vector<32x32xf32>
    %89 = tpu.matmul %85, %88, %cst_75 {dimension_numbers = #tpu.dot_dimension_numbers<[1], [0], [0], [1], [0, 0, 1, 1], [], []>} : vector<32x64xf32>, vector<64x32xf32>, vector<32x32xf32> -> vector<32x32xf32>
    %cst_76 = arith.constant dense<0.000000e+00> : vector<32x32xf32>
    %90 = tpu.matmul %89, %29, %cst_76 {dimension_numbers = #tpu.dot_dimension_numbers<[1], [0], [0], [1], [0, 0, 1, 1], [], []>} : vector<32x32xf32>, vector<32x32xf32>, vector<32x32xf32> -> vector<32x32xf32>
    %91 = arith.addf %1, %90 : vector<32x32xf32>
    %c0_77 = arith.constant 0 : index
    %c0_78 = arith.constant 0 : index
    %92 = vector.load %arg24[%c0_77, %c0_78] : memref<32x32xf32, #tpu.memory_space<vmem>>, vector<32x32xf32>
    %cst_79 = arith.constant dense<0.000000e+00> : vector<32x32xf32>
    %93 = tpu.matmul %91, %92, %cst_79 {dimension_numbers = #tpu.dot_dimension_numbers<[1], [0], [0], [1], [0, 0, 1, 1], [], []>} : vector<32x32xf32>, vector<32x32xf32>, vector<32x32xf32> -> vector<32x32xf32>
    %c0_80 = arith.constant 0 : index
    %c0_81 = arith.constant 0 : index
    %94 = vector.load %arg25[%c0_80, %c0_81] : memref<8x32xf32, #tpu.memory_space<vmem>>, vector<8x32xf32>
    %cst_82 = arith.constant dense<0.000000e+00> : vector<32x32xf32>
    %95 = tpu.matmul %32, %94, %cst_82 {dimension_numbers = #tpu.dot_dimension_numbers<[1], [0], [0], [1], [0, 0, 1, 1], [], []>} : vector<32x8xf32>, vector<8x32xf32>, vector<32x32xf32> -> vector<32x32xf32>
    %96 = arith.addf %93, %95 : vector<32x32xf32>
    %c0_83 = arith.constant 0 : index
    %c0_84 = arith.constant 0 : index
    %97 = vector.load %arg26[%c0_83, %c0_84] : memref<1x32xf32, #tpu.memory_space<vmem>>, vector<1x32xf32>
    %98 = vector.broadcast %97 : vector<1x32xf32> to vector<32x32xf32>
    %99 = arith.addf %96, %98 : vector<32x32xf32>
    %cst_85 = arith.constant 0.000000e+00 : f32
    %100 = vector.broadcast %cst_85 : f32 to vector<32x32xf32>
    %101 = arith.cmpf ogt, %99, %100 : vector<32x32xf32>
    %cst_86 = arith.constant 0.00999999977 : f32
    %102 = vector.broadcast %cst_86 : f32 to vector<32x32xf32>
    %103 = arith.mulf %102, %99 : vector<32x32xf32>
    %104 = arith.select %101, %99, %103 : vector<32x32xi1>, vector<32x32xf32>
    %c0_87 = arith.constant 0 : index
    %c0_88 = arith.constant 0 : index
    %105 = vector.load %arg27[%c0_87, %c0_88] : memref<32x32xf32, #tpu.memory_space<vmem>>, vector<32x32xf32>
    %cst_89 = arith.constant dense<0.000000e+00> : vector<32x32xf32>
    %106 = tpu.matmul %104, %105, %cst_89 {dimension_numbers = #tpu.dot_dimension_numbers<[1], [0], [0], [1], [0, 0, 1, 1], [], []>} : vector<32x32xf32>, vector<32x32xf32>, vector<32x32xf32> -> vector<32x32xf32>
    %c0_90 = arith.constant 0 : index
    %c0_91 = arith.constant 0 : index
    %107 = vector.load %arg28[%c0_90, %c0_91] : memref<1x32xf32, #tpu.memory_space<vmem>>, vector<1x32xf32>
    %108 = vector.broadcast %107 : vector<1x32xf32> to vector<32x32xf32>
    %109 = arith.addf %106, %108 : vector<32x32xf32>
    %cst_92 = arith.constant 0.000000e+00 : f32
    %110 = vector.broadcast %cst_92 : f32 to vector<32x32xf32>
    %111 = arith.cmpf ogt, %109, %110 : vector<32x32xf32>
    %cst_93 = arith.constant 0.00999999977 : f32
    %112 = vector.broadcast %cst_93 : f32 to vector<32x32xf32>
    %113 = arith.mulf %112, %109 : vector<32x32xf32>
    %114 = arith.select %111, %109, %113 : vector<32x32xi1>, vector<32x32xf32>
    %cst_94 = arith.constant dense<0.000000e+00> : vector<32x32xf32>
    %115 = tpu.matmul %89, %114, %cst_94 {dimension_numbers = #tpu.dot_dimension_numbers<[1], [0], [0], [1], [0, 0, 1, 1], [], []>} : vector<32x32xf32>, vector<32x32xf32>, vector<32x32xf32> -> vector<32x32xf32>
    %116 = arith.addf %91, %115 : vector<32x32xf32>
    %c0_95 = arith.constant 0 : index
    %c0_96 = arith.constant 0 : index
    %117 = vector.load %arg29[%c0_95, %c0_96] : memref<32x8xf32, #tpu.memory_space<vmem>>, vector<32x8xf32>
    %cst_97 = arith.constant dense<0.000000e+00> : vector<32x8xf32>
    %118 = tpu.matmul %1, %117, %cst_97 {dimension_numbers = #tpu.dot_dimension_numbers<[1], [0], [0], [1], [0, 0, 1, 1], [], []>} : vector<32x32xf32>, vector<32x8xf32>, vector<32x8xf32> -> vector<32x8xf32>
    %c0_98 = arith.constant 0 : index
    %c0_99 = arith.constant 0 : index
    %119 = vector.load %arg30[%c0_98, %c0_99] : memref<32x8xf32, #tpu.memory_space<vmem>>, vector<32x8xf32>
    %cst_100 = arith.constant dense<0.000000e+00> : vector<32x8xf32>
    %120 = tpu.matmul %116, %119, %cst_100 {dimension_numbers = #tpu.dot_dimension_numbers<[1], [0], [0], [1], [0, 0, 1, 1], [], []>} : vector<32x32xf32>, vector<32x8xf32>, vector<32x8xf32> -> vector<32x8xf32>
    %121 = arith.addf %118, %120 : vector<32x8xf32>
    %c0_101 = arith.constant 0 : index
    %c0_102 = arith.constant 0 : index
    %122 = vector.load %arg31[%c0_101, %c0_102] : memref<1x8xf32, #tpu.memory_space<vmem>>, vector<1x8xf32>
    %123 = vector.broadcast %122 : vector<1x8xf32> to vector<32x8xf32>
    %124 = arith.addf %121, %123 : vector<32x8xf32>
    %c0_103 = arith.constant 0 : index
    %c0_104 = arith.constant 0 : index
    %125 = vector.load %arg32[%c0_103, %c0_104] : memref<32x8xf32, #tpu.memory_space<vmem>>, vector<32x8xf32>
    tpu.vector_store %arg32[%c0_103, %c0_104], %124 {strides = array<i32>} : memref<32x8xf32, #tpu.memory_space<vmem>>, vector<32x8xf32>,
    return
  }
}

</mosaic_0001>

<llo_original>
// kernel: dgcn_forward.1
$region0: #{dgcn_forward.1}
  #allocation0 [shape = 'u32[]', space=smem, size = 0x4, offset = 0x4, fixed_abs, tag = 'smem constant byte address 0x4 - core index']
  #allocation1 [shape = 'u32[144,128]{1,0:T(1,128)}', space=vmem, size = 0x12000, scoped, tag = 'internal scratch']
  #allocation2 [shape = 'f32[1,1]{1,0:T(1,128)S(1)}', space=vmem, size = 0x200, scoped, tag = 'scoped memory for dgcn_forward.1']
  %s0 = inlined_call_operand.smem [shape: u32[34], index: -1, kind: input, shape index: {}]
  %s1 = sld [smem:[%s0]]
  %s2 = scalar_lea.smem %s0, 1
  %s3 = sld [smem:[%s2]]
  %s4 = scalar_lea.smem %s0, 2
  %s5 = sld [smem:[%s4]]
  %s6 = scalar_lea.smem %s0, 3
  %s7 = sld [smem:[%s6]]
  %s8 = scalar_lea.smem %s0, 4
  %s9 = sld [smem:[%s8]]
  %s10 = scalar_lea.smem %s0, 5
  %s11 = sld [smem:[%s10]]
  %s12 = scalar_lea.smem %s0, 6
  %s13 = sld [smem:[%s12]]
  %s14 = scalar_lea.smem %s0, 7
  %s15 = sld [smem:[%s14]]
  %s16 = scalar_lea.smem %s0, 8
  %s17 = sld [smem:[%s16]]
  %s18 = scalar_lea.smem %s0, 9
  %s19 = sld [smem:[%s18]]
  %s20 = scalar_lea.smem %s0, 10
  %s21 = sld [smem:[%s20]]
  %s22 = scalar_lea.smem %s0, 11
  %s23 = sld [smem:[%s22]]
  %s24 = scalar_lea.smem %s0, 12
  %s25 = sld [smem:[%s24]]
  %s26 = scalar_lea.smem %s0, 13
  %s27 = sld [smem:[%s26]]
  %s28 = scalar_lea.smem %s0, 14
  %s29 = sld [smem:[%s28]]
  %s30 = scalar_lea.smem %s0, 15
  %s31 = sld [smem:[%s30]]
  %s32 = scalar_lea.smem %s0, 16
  %s33 = sld [smem:[%s32]]
  %s34 = scalar_lea.smem %s0, 17
  %s35 = sld [smem:[%s34]]
  %s36 = scalar_lea.smem %s0, 18
  %s37 = sld [smem:[%s36]]
  %s38 = scalar_lea.smem %s0, 19
  %s39 = sld [smem:[%s38]]
  %s40 = scalar_lea.smem %s0, 20
  %s41 = sld [smem:[%s40]]
  %s42 = scalar_lea.smem %s0, 21
  %s43 = sld [smem:[%s42]]
  %s44 = scalar_lea.smem %s0, 22
  %s45 = sld [smem:[%s44]]
  %s46 = scalar_lea.smem %s0, 23
  %s47 = sld [smem:[%s46]]
  %s48 = scalar_lea.smem %s0, 24
  %s49 = sld [smem:[%s48]]
  %s50 = scalar_lea.smem %s0, 25
  %s51 = sld [smem:[%s50]]
  %s52 = scalar_lea.smem %s0, 26
  %s53 = sld [smem:[%s52]]
  %s54 = scalar_lea.smem %s0, 27
  %s55 = sld [smem:[%s54]]
  %s56 = scalar_lea.smem %s0, 28
  %s57 = sld [smem:[%s56]]
  %s58 = scalar_lea.smem %s0, 29
  %s59 = sld [smem:[%s58]]
  %s60 = scalar_lea.smem %s0, 30
  %s61 = sld [smem:[%s60]]
  %s62 = scalar_lea.smem %s0, 31
  %s63 = sld [smem:[%s62]]
  %s64 = scalar_lea.smem %s0, 32
  %s65 = sld [smem:[%s64]]
  %s66 = scalar_lea.smem %s0, 33
  %s67 = sld [smem:[%s66]]
  %68 = xla_tuple %s65, %s67
  %s69 = sld [smem:[#allocation0]]
  $region146: #{dgcn_forward.1} parent=0
    _
  %s71 = ssub.s32 1, %s69
  %s72 = scalar_select 0, %s71, %s69
  %v73 = vstv %s47
  %74 = vst [vmem:[#allocation2] sm:$0x1] %v73
  // Predicated region
  $region2: #{dgcn_forward.1} parent=0 // pred_check
    _
  $region3: #{dgcn_forward.1} parent=0 // pred_check_branch
    %76 = sbr.rel (0) target = $region5
  $region4: #{dgcn_forward.1} parent=0 // pred_region
    _
  $region5: #{dgcn_forward.1} parent=0 // pred_fallthru
    _
  // Predicated region
  $region6: #{dgcn_forward.1} parent=0 // pred_check
    _
  $region7: #{dgcn_forward.1} parent=0 // pred_check_branch
    %78 = sbr.rel (0) target = $region9
  $region8: #{dgcn_forward.1} parent=0 // pred_region
    _
  $region9: #{dgcn_forward.1} parent=0 // pred_fallthru
    _
  // Predicated region
  $region10: #{dgcn_forward.1} parent=0 // pred_check
    _
  $region11: #{dgcn_forward.1} parent=0 // pred_check_branch
    %80 = sbr.rel (0) target = $region13
  $region12: #{dgcn_forward.1} parent=0 // pred_region
    _
  $region13: #{dgcn_forward.1} parent=0 // pred_fallthru
    _
  // Predicated region
  $region14: #{dgcn_forward.1} parent=0 // pred_check
    _
  $region15: #{dgcn_forward.1} parent=0 // pred_check_branch
    %82 = sbr.rel (0) target = $region17
  $region16: #{dgcn_forward.1} parent=0 // pred_region
    _
  $region17: #{dgcn_forward.1} parent=0 // pred_fallthru
    _
  // Predicated region
  $region18: #{dgcn_forward.1} parent=0 // pred_check
    _
  $region19: #{dgcn_forward.1} parent=0 // pred_check_branch
    %84 = sbr.rel (0) target = $region21
  $region20: #{dgcn_forward.1} parent=0 // pred_region
    _
  $region21: #{dgcn_forward.1} parent=0 // pred_fallthru
    _
  // Predicated region
  $region22: #{dgcn_forward.1} parent=0 // pred_check
    _
  $region23: #{dgcn_forward.1} parent=0 // pred_check_branch
    %86 = sbr.rel (0) target = $region25
  $region24: #{dgcn_forward.1} parent=0 // pred_region
    _
  $region25: #{dgcn_forward.1} parent=0 // pred_fallthru
    _
  // Predicated region
  $region26: #{dgcn_forward.1} parent=0 // pred_check
    _
  $region27: #{dgcn_forward.1} parent=0 // pred_check_branch
    %88 = sbr.rel (0) target = $region29
  $region28: #{dgcn_forward.1} parent=0 // pred_region
    _
  $region29: #{dgcn_forward.1} parent=0 // pred_fallthru
    _
  // Predicated region
  $region30: #{dgcn_forward.1} parent=0 // pred_check
    _
  $region31: #{dgcn_forward.1} parent=0 // pred_check_branch
    %90 = sbr.rel (0) target = $region33
  $region32: #{dgcn_forward.1} parent=0 // pred_region
    _
  $region33: #{dgcn_forward.1} parent=0 // pred_fallthru
    _
  // Predicated region
  $region34: #{dgcn_forward.1} parent=0 // pred_check
    _
  $region35: #{dgcn_forward.1} parent=0 // pred_check_branch
    %92 = sbr.rel (0) target = $region37
  $region36: #{dgcn_forward.1} parent=0 // pred_region
    _
  $region37: #{dgcn_forward.1} parent=0 // pred_fallthru
    _
  // Predicated region
  $region38: #{dgcn_forward.1} parent=0 // pred_check
    _
  $region39: #{dgcn_forward.1} parent=0 // pred_check_branch
    %94 = sbr.rel (0) target = $region41
  $region40: #{dgcn_forward.1} parent=0 // pred_region
    _
  $region41: #{dgcn_forward.1} parent=0 // pred_fallthru
    _
  // Predicated region
  $region42: #{dgcn_forward.1} parent=0 // pred_check
    _
  $region43: #{dgcn_forward.1} parent=0 // pred_check_branch
    %96 = sbr.rel (0) target = $region45
  $region44: #{dgcn_forward.1} parent=0 // pred_region
    _
  $region45: #{dgcn_forward.1} parent=0 // pred_fallthru
    _
  // Predicated region
  $region46: #{dgcn_forward.1} parent=0 // pred_check
    _
  $region47: #{dgcn_forward.1} parent=0 // pred_check_branch
    %98 = sbr.rel (0) target = $region49
  $region48: #{dgcn_forward.1} parent=0 // pred_region
    _
  $region49: #{dgcn_forward.1} parent=0 // pred_fallthru
    _
  // Predicated region
  $region50: #{dgcn_forward.1} parent=0 // pred_check
    _
  $region51: #{dgcn_forward.1} parent=0 // pred_check_branch
    %100 = sbr.rel (0) target = $region53
  $region52: #{dgcn_forward.1} parent=0 // pred_region
    _
  $region53: #{dgcn_forward.1} parent=0 // pred_fallthru
    _
  // Predicated region
  $region54: #{dgcn_forward.1} parent=0 // pred_check
    _
  $region55: #{dgcn_forward.1} parent=0 // pred_check_branch
    %102 = sbr.rel (0) target = $region57
  $region56: #{dgcn_forward.1} parent=0 // pred_region
    _
  $region57: #{dgcn_forward.1} parent=0 // pred_fallthru
    _
  // Predicated region
  $region58: #{dgcn_forward.1} parent=0 // pred_check
    _
  $region59: #{dgcn_forward.1} parent=0 // pred_check_branch
    %104 = sbr.rel (0) target = $region61
  $region60: #{dgcn_forward.1} parent=0 // pred_region
    _
  $region61: #{dgcn_forward.1} parent=0 // pred_fallthru
    _
  // Predicated region
  $region62: #{dgcn_forward.1} parent=0 // pred_check
    _
  $region63: #{dgcn_forward.1} parent=0 // pred_check_branch
    %106 = sbr.rel (0) target = $region65
  $region64: #{dgcn_forward.1} parent=0 // pred_region
    _
  $region65: #{dgcn_forward.1} parent=0 // pred_fallthru
    _
  // Predicated region
  $region66: #{dgcn_forward.1} parent=0 // pred_check
    _
  $region67: #{dgcn_forward.1} parent=0 // pred_check_branch
    %108 = sbr.rel (0) target = $region69
  $region68: #{dgcn_forward.1} parent=0 // pred_region
    _
  $region69: #{dgcn_forward.1} parent=0 // pred_fallthru
    _
  // Predicated region
  $region70: #{dgcn_forward.1} parent=0 // pred_check
    _
  $region71: #{dgcn_forward.1} parent=0 // pred_check_branch
    %110 = sbr.rel (0) target = $region73
  $region72: #{dgcn_forward.1} parent=0 // pred_region
    _
  $region73: #{dgcn_forward.1} parent=0 // pred_fallthru
    _
  // Predicated region
  $region74: #{dgcn_forward.1} parent=0 // pred_check
    _
  $region75: #{dgcn_forward.1} parent=0 // pred_check_branch
    %112 = sbr.rel (0) target = $region77
  $region76: #{dgcn_forward.1} parent=0 // pred_region
    _
  $region77: #{dgcn_forward.1} parent=0 // pred_fallthru
    _
  // Predicated region
  $region78: #{dgcn_forward.1} parent=0 // pred_check
    _
  $region79: #{dgcn_forward.1} parent=0 // pred_check_branch
    %114 = sbr.rel (0) target = $region81
  $region80: #{dgcn_forward.1} parent=0 // pred_region
    _
  $region81: #{dgcn_forward.1} parent=0 // pred_fallthru
    _
  // Predicated region
  $region82: #{dgcn_forward.1} parent=0 // pred_check
    _
  $region83: #{dgcn_forward.1} parent=0 // pred_check_branch
    %116 = sbr.rel (0) target = $region85
  $region84: #{dgcn_forward.1} parent=0 // pred_region
    _
  $region85: #{dgcn_forward.1} parent=0 // pred_fallthru
    _
  // Predicated region
  $region86: #{dgcn_forward.1} parent=0 // pred_check
    _
  $region87: #{dgcn_forward.1} parent=0 // pred_check_branch
    %118 = sbr.rel (0) target = $region89
  $region88: #{dgcn_forward.1} parent=0 // pred_region
    _
  $region89: #{dgcn_forward.1} parent=0 // pred_fallthru
    _
  // Predicated region
  $region90: #{dgcn_forward.1} parent=0 // pred_check
    _
  $region91: #{dgcn_forward.1} parent=0 // pred_check_branch
    %120 = sbr.rel (0) target = $region93
  $region92: #{dgcn_forward.1} parent=0 // pred_region
    _
  $region93: #{dgcn_forward.1} parent=0 // pred_fallthru
    _
  // Predicated region
  $region94: #{dgcn_forward.1} parent=0 // pred_check
    _
  $region95: #{dgcn_forward.1} parent=0 // pred_check_branch
    %122 = sbr.rel (0) target = $region97
  $region96: #{dgcn_forward.1} parent=0 // pred_region
    _
  $region97: #{dgcn_forward.1} parent=0 // pred_fallthru
    _
  // Predicated region
  $region98: #{dgcn_forward.1} parent=0 // pred_check
    _
  $region99: #{dgcn_forward.1} parent=0 // pred_check_branch
    %124 = sbr.rel (0) target = $region101
  $region100: #{dgcn_forward.1} parent=0 // pred_region
    _
  $region101: #{dgcn_forward.1} parent=0 // pred_fallthru
    _
  // Predicated region
  $region102: #{dgcn_forward.1} parent=0 // pred_check
    _
  $region103: #{dgcn_forward.1} parent=0 // pred_check_branch
    %126 = sbr.rel (0) target = $region105
  $region104: #{dgcn_forward.1} parent=0 // pred_region
    _
  $region105: #{dgcn_forward.1} parent=0 // pred_fallthru
    _
  // Predicated region
  $region106: #{dgcn_forward.1} parent=0 // pred_check
    _
  $region107: #{dgcn_forward.1} parent=0 // pred_check_branch
    %128 = sbr.rel (0) target = $region109
  $region108: #{dgcn_forward.1} parent=0 // pred_region
    _
  $region109: #{dgcn_forward.1} parent=0 // pred_fallthru
    _
  // Predicated region
  $region110: #{dgcn_forward.1} parent=0 // pred_check
    _
  $region111: #{dgcn_forward.1} parent=0 // pred_check_branch
    %130 = sbr.rel (0) target = $region113
  $region112: #{dgcn_forward.1} parent=0 // pred_region
    _
  $region113: #{dgcn_forward.1} parent=0 // pred_fallthru
    _
  // Predicated region
  $region114: #{dgcn_forward.1} parent=0 // pred_check
    _
  $region115: #{dgcn_forward.1} parent=0 // pred_check_branch
    %132 = sbr.rel (0) target = $region117
  $region116: #{dgcn_forward.1} parent=0 // pred_region
    _
  $region117: #{dgcn_forward.1} parent=0 // pred_fallthru
    _
  // Predicated region
  $region118: #{dgcn_forward.1} parent=0 // pred_check
    _
  $region119: #{dgcn_forward.1} parent=0 // pred_check_branch
    %134 = sbr.rel (0) target = $region121
  $region120: #{dgcn_forward.1} parent=0 // pred_region
    _
  $region121: #{dgcn_forward.1} parent=0 // pred_fallthru
    _
  // Predicated region
  $region122: #{dgcn_forward.1} parent=0 // pred_check
    _
  $region123: #{dgcn_forward.1} parent=0 // pred_check_branch
    %136 = sbr.rel (0) target = $region125
  $region124: #{dgcn_forward.1} parent=0 // pred_region
    _
  $region125: #{dgcn_forward.1} parent=0 // pred_fallthru
    _
  // Predicated region
  $region126: #{dgcn_forward.1} parent=0 // pred_check
    _
  $region127: #{dgcn_forward.1} parent=0 // pred_check_branch
    %138 = sbr.rel (0) target = $region129
  $region128: #{dgcn_forward.1} parent=0 // pred_region
    _
  $region129: #{dgcn_forward.1} parent=0 // pred_fallthru
    _
  %v139 = vld [vmem:[%s1] sm:$0xff]
  %v140 = vld [vmem:[%s1 + $0x8] sm:$0xff]
  %v141 = vld [vmem:[%s1 + $0x10] sm:$0xff]
  %v142 = vld [vmem:[%s1 + $0x18] sm:$0xff]
  %v143 = vld [vmem:[%s1 + $0x20] sm:$0xff]
  %v144 = vld [vmem:[%s1 + $0x28] sm:$0xff]
  %v145 = vld [vmem:[%s1 + $0x30] sm:$0xff]
  %v146 = vld [vmem:[%s1 + $0x38] sm:$0xff]
  %v147 = vld [vmem:[%s1 + $0x40] sm:$0xff]
  %v148 = vld [vmem:[%s1 + $0x48] sm:$0xff]
  %v149 = vld [vmem:[%s1 + $0x50] sm:$0xff]
  %v150 = vld [vmem:[%s1 + $0x58] sm:$0xff]
  %v151 = vld [vmem:[%s1 + $0x60] sm:$0xff]
  %v152 = vld [vmem:[%s1 + $0x68] sm:$0xff]
  %v153 = vld [vmem:[%s1 + $0x70] sm:$0xff]
  %v154 = vld [vmem:[%s1 + $0x78] sm:$0xff]
  %v155 = vld [vmem:[%s1 + $0x80] sm:$0xff]
  %v156 = vld [vmem:[%s1 + $0x88] sm:$0xff]
  %v157 = vld [vmem:[%s1 + $0x90] sm:$0xff]
  %v158 = vld [vmem:[%s1 + $0x98] sm:$0xff]
  %v159 = vld [vmem:[%s1 + $0xa0] sm:$0xff]
  %v160 = vld [vmem:[%s1 + $0xa8] sm:$0xff]
  %v161 = vld [vmem:[%s1 + $0xb0] sm:$0xff]
  %v162 = vld [vmem:[%s1 + $0xb8] sm:$0xff]
  %v163 = vld [vmem:[%s1 + $0xc0] sm:$0xff]
  %v164 = vld [vmem:[%s1 + $0xc8] sm:$0xff]
  %v165 = vld [vmem:[%s1 + $0xd0] sm:$0xff]
  %v166 = vld [vmem:[%s1 + $0xd8] sm:$0xff]
  %v167 = vld [vmem:[%s1 + $0xe0] sm:$0xff]
  %v168 = vld [vmem:[%s1 + $0xe8] sm:$0xff]
  %v169 = vld [vmem:[%s1 + $0xf0] sm:$0xff]
  %v170 = vld [vmem:[%s1 + $0xf8] sm:$0xff]
  %vm171 = vcmask 261120
  %v172 = vsel %vm171, %v139, -inf
  %v173 = vrot.slane %v172, 4
  %v174 = vmax.f32 %v172, %v173
  %v175 = vrot.slane %v174, 2
  %v176 = vmax.f32 %v174, %v175
  %v177 = vrot.slane %v176, 1
  %v178 = vmax.f32 %v176, %v177
  %v179 = vsel %vm171, %v140, -inf
  %v180 = vrot.slane %v179, 4
  %v181 = vmax.f32 %v179, %v180
  %v182 = vrot.slane %v181, 2
  %v183 = vmax.f32 %v181, %v182
  %v184 = vrot.slane %v183, 1
  %v185 = vmax.f32 %v183, %v184
  %v186 = vsel %vm171, %v141, -inf
  %v187 = vrot.slane %v186, 4
  %v188 = vmax.f32 %v186, %v187
  %v189 = vrot.slane %v188, 2
  %v190 = vmax.f32 %v188, %v189
  %v191 = vrot.slane %v190, 1
  %v192 = vmax.f32 %v190, %v191
  %v193 = vsel %vm171, %v142, -inf
  %v194 = vrot.slane %v193, 4
  %v195 = vmax.f32 %v193, %v194
  %v196 = vrot.slane %v195, 2
  %v197 = vmax.f32 %v195, %v196
  %v198 = vrot.slane %v197, 1
  %v199 = vmax.f32 %v197, %v198
  %v200 = vsel %vm171, %v143, -inf
  %v201 = vrot.slane %v200, 4
  %v202 = vmax.f32 %v200, %v201
  %v203 = vrot.slane %v202, 2
  %v204 = vmax.f32 %v202, %v203
  %v205 = vrot.slane %v204, 1
  %v206 = vmax.f32 %v204, %v205
  %v207 = vsel %vm171, %v144, -inf
  %v208 = vrot.slane %v207, 4
  %v209 = vmax.f32 %v207, %v208
  %v210 = vrot.slane %v209, 2
  %v211 = vmax.f32 %v209, %v210
  %v212 = vrot.slane %v211, 1
  %v213 = vmax.f32 %v211, %v212
  %v214 = vsel %vm171, %v145, -inf
  %v215 = vrot.slane %v214, 4
  %v216 = vmax.f32 %v214, %v215
  %v217 = vrot.slane %v216, 2
  %v218 = vmax.f32 %v216, %v217
  %v219 = vrot.slane %v218, 1
  %v220 = vmax.f32 %v218, %v219
  %v221 = vsel %vm171, %v146, -inf
  %v222 = vrot.slane %v221, 4
  %v223 = vmax.f32 %v221, %v222
  %v224 = vrot.slane %v223, 2
  %v225 = vmax.f32 %v223, %v224
  %v226 = vrot.slane %v225, 1
  %v227 = vmax.f32 %v225, %v226
  %v228 = vsel %vm171, %v147, -inf
  %v229 = vrot.slane %v228, 4
  %v230 = vmax.f32 %v228, %v229
  %v231 = vrot.slane %v230, 2
  %v232 = vmax.f32 %v230, %v231
  %v233 = vrot.slane %v232, 1
  %v234 = vmax.f32 %v232, %v233
  %v235 = vsel %vm171, %v148, -inf
  %v236 = vrot.slane %v235, 4
  %v237 = vmax.f32 %v235, %v236
  %v238 = vrot.slane %v237, 2
  %v239 = vmax.f32 %v237, %v238
  %v240 = vrot.slane %v239, 1
  %v241 = vmax.f32 %v239, %v240
  %v242 = vsel %vm171, %v149, -inf
  %v243 = vrot.slane %v242, 4
  %v244 = vmax.f32 %v242, %v243
  %v245 = vrot.slane %v244, 2
  %v246 = vmax.f32 %v244, %v245
  %v247 = vrot.slane %v246, 1
  %v248 = vmax.f32 %v246, %v247
  %v249 = vsel %vm171, %v150, -inf
  %v250 = vrot.slane %v249, 4
  %v251 = vmax.f32 %v249, %v250
  %v252 = vrot.slane %v251, 2
  %v253 = vmax.f32 %v251, %v252
  %v254 = vrot.slane %v253, 1
  %v255 = vmax.f32 %v253, %v254
  %v256 = vsel %vm171, %v151, -inf
  %v257 = vrot.slane %v256, 4
  %v258 = vmax.f32 %v256, %v257
  %v259 = vrot.slane %v258, 2
  %v260 = vmax.f32 %v258, %v259
  %v261 = vrot.slane %v260, 1
  %v262 = vmax.f32 %v260, %v261
  %v263 = vsel %vm171, %v152, -inf
  %v264 = vrot.slane %v263, 4
  %v265 = vmax.f32 %v263, %v264
  %v266 = vrot.slane %v265, 2
  %v267 = vmax.f32 %v265, %v266
  %v268 = vrot.slane %v267, 1
  %v269 = vmax.f32 %v267, %v268
  %v270 = vsel %vm171, %v153, -inf
  %v271 = vrot.slane %v270, 4
  %v272 = vmax.f32 %v270, %v271
  %v273 = vrot.slane %v272, 2
  %v274 = vmax.f32 %v272, %v273
  %v275 = vrot.slane %v274, 1
  %v276 = vmax.f32 %v274, %v275
  %v277 = vsel %vm171, %v154, -inf
  %v278 = vrot.slane %v277, 4
  %v279 = vmax.f32 %v277, %v278
  %v280 = vrot.slane %v279, 2
  %v281 = vmax.f32 %v279, %v280
  %v282 = vrot.slane %v281, 1
  %v283 = vmax.f32 %v281, %v282
  %v284 = vsel %vm171, %v155, -inf
  %v285 = vrot.slane %v284, 4
  %v286 = vmax.f32 %v284, %v285
  %v287 = vrot.slane %v286, 2
  %v288 = vmax.f32 %v286, %v287
  %v289 = vrot.slane %v288, 1
  %v290 = vmax.f32 %v288, %v289
  %v291 = vsel %vm171, %v156, -inf
  %v292 = vrot.slane %v291, 4
  %v293 = vmax.f32 %v291, %v292
  %v294 = vrot.slane %v293, 2
  %v295 = vmax.f32 %v293, %v294
  %v296 = vrot.slane %v295, 1
  %v297 = vmax.f32 %v295, %v296
  %v298 = vsel %vm171, %v157, -inf
  %v299 = vrot.slane %v298, 4
  %v300 = vmax.f32 %v298, %v299
  %v301 = vrot.slane %v300, 2
  %v302 = vmax.f32 %v300, %v301
  %v303 = vrot.slane %v302, 1
  %v304 = vmax.f32 %v302, %v303
  %v305 = vsel %vm171, %v158, -inf
  %v306 = vrot.slane %v305, 4
  %v307 = vmax.f32 %v305, %v306
  %v308 = vrot.slane %v307, 2
  %v309 = vmax.f32 %v307, %v308
  %v310 = vrot.slane %v309, 1
  %v311 = vmax.f32 %v309, %v310
  %v312 = vsel %vm171, %v159, -inf
  %v313 = vrot.slane %v312, 4
  %v314 = vmax.f32 %v312, %v313
  %v315 = vrot.slane %v314, 2
  %v316 = vmax.f32 %v314, %v315
  %v317 = vrot.slane %v316, 1
  %v318 = vmax.f32 %v316, %v317
  %v319 = vsel %vm171, %v160, -inf
  %v320 = vrot.slane %v319, 4
  %v321 = vmax.f32 %v319, %v320
  %v322 = vrot.slane %v321, 2
  %v323 = vmax.f32 %v321, %v322
  %v324 = vrot.slane %v323, 1
  %v325 = vmax.f32 %v323, %v324
  %v326 = vsel %vm171, %v161, -inf
  %v327 = vrot.slane %v326, 4
  %v328 = vmax.f32 %v326, %v327
  %v329 = vrot.slane %v328, 2
  %v330 = vmax.f32 %v328, %v329
  %v331 = vrot.slane %v330, 1
  %v332 = vmax.f32 %v330, %v331
  %v333 = vsel %vm171, %v162, -inf
  %v334 = vrot.slane %v333, 4
  %v335 = vmax.f32 %v333, %v334
  %v336 = vrot.slane %v335, 2
  %v337 = vmax.f32 %v335, %v336
  %v338 = vrot.slane %v337, 1
  %v339 = vmax.f32 %v337, %v338
  %v340 = vsel %vm171, %v163, -inf
  %v341 = vrot.slane %v340, 4
  %v342 = vmax.f32 %v340, %v341
  %v343 = vrot.slane %v342, 2
  %v344 = vmax.f32 %v342, %v343
  %v345 = vrot.slane %v344, 1
  %v346 = vmax.f32 %v344, %v345
  %v347 = vsel %vm171, %v164, -inf
  %v348 = vrot.slane %v347, 4
  %v349 = vmax.f32 %v347, %v348
  %v350 = vrot.slane %v349, 2
  %v351 = vmax.f32 %v349, %v350
  %v352 = vrot.slane %v351, 1
  %v353 = vmax.f32 %v351, %v352
  %v354 = vsel %vm171, %v165, -inf
  %v355 = vrot.slane %v354, 4
  %v356 = vmax.f32 %v354, %v355
  %v357 = vrot.slane %v356, 2
  %v358 = vmax.f32 %v356, %v357
  %v359 = vrot.slane %v358, 1
  %v360 = vmax.f32 %v358, %v359
  %v361 = vsel %vm171, %v166, -inf
  %v362 = vrot.slane %v361, 4
  %v363 = vmax.f32 %v361, %v362
  %v364 = vrot.slane %v363, 2
  %v365 = vmax.f32 %v363, %v364
  %v366 = vrot.slane %v365, 1
  %v367 = vmax.f32 %v365, %v366
  %v368 = vsel %vm171, %v167, -inf
  %v369 = vrot.slane %v368, 4
  %v370 = vmax.f32 %v368, %v369
  %v371 = vrot.slane %v370, 2
  %v372 = vmax.f32 %v370, %v371
  %v373 = vrot.slane %v372, 1
  %v374 = vmax.f32 %v372, %v373
  %v375 = vsel %vm171, %v168, -inf
  %v376 = vrot.slane %v375, 4
  %v377 = vmax.f32 %v375, %v376
  %v378 = vrot.slane %v377, 2
  %v379 = vmax.f32 %v377, %v378
  %v380 = vrot.slane %v379, 1
  %v381 = vmax.f32 %v379, %v380
  %v382 = vsel %vm171, %v169, -inf
  %v383 = vrot.slane %v382, 4
  %v384 = vmax.f32 %v382, %v383
  %v385 = vrot.slane %v384, 2
  %v386 = vmax.f32 %v384, %v385
  %v387 = vrot.slane %v386, 1
  %v388 = vmax.f32 %v386, %v387
  %v389 = vsel %vm171, %v170, -inf
  %v390 = vrot.slane %v389, 4
  %v391 = vmax.f32 %v389, %v390
  %v392 = vrot.slane %v391, 2
  %v393 = vmax.f32 %v391, %v392
  %v394 = vrot.slane %v393, 1
  %v395 = vmax.f32 %v393, %v394
  %v396 = vld [vmem:[%s19] sm:$0xff]
  %v397 = vld [vmem:[%s19 + $0x8] sm:$0xff]
  %v398 = vld [vmem:[%s19 + $0x10] sm:$0xff]
  %v399 = vld [vmem:[%s19 + $0x18] sm:$0xff]
  %v400 = vld [vmem:[%s3] sm:$0xff]
  %v401 = vld [vmem:[%s3 + $0x8] sm:$0xff]
  %v402 = vld [vmem:[%s3 + $0x10] sm:$0xff]
  %v403 = vld [vmem:[%s3 + $0x18] sm:$0xff]
  %v404 = vld [vmem:[%s21] sm:$0xff]
  %v405 = vld [vmem:[%s21 + $0x8] sm:$0xff]
  %vm406 = vcmask 130048
  %v408 = vsel %vm406, %v400, 0
  %v411 = vsel %vm406, %v401, 0
  %v414 = vsel %vm406, %v402, 0
  %v417 = vsel %vm406, %v403, 0
  %419 = vmatprep.subr.mxu0 0.0
  %420 = vmatpush1.msra.mxu0 %v404
  %421 = vmatprep.subr.mxu0 0.0
  %422 = vmatpush1.msra.mxu0 %v405
  %423 = vmatprep.subr.mxu0 0.0
  %424 = vmatpush1.msra.mxu0 0.0
  %425 = vmatprep.subr.mxu0 0.0
  %426 = vmatpush1.msra.mxu0 0.0
  %427 = vmatprep.subr.mxu0 0.0
  %428 = vmatpush1.msra.mxu0 0.0
  %429 = vmatprep.subr.mxu0 0.0
  %430 = vmatpush1.msra.mxu0 0.0
  %431 = vmatprep.subr.mxu0 0.0
  %432 = vmatpush1.msra.mxu0 0.0
  %433 = vmatprep.subr.mxu0 0.0
  %434 = vmatpush1.msra.mxu0 0.0
  %435 = vmatprep.subr.mxu0 0.0
  %436 = vmatpush1.msra.mxu0 0.0
  %437 = vmatprep.subr.mxu0 0.0
  %438 = vmatpush1.msra.mxu0 0.0
  %439 = vmatprep.subr.mxu0 0.0
  %440 = vmatpush1.msra.mxu0 0.0
  %441 = vmatprep.subr.mxu0 0.0
  %442 = vmatpush1.msra.mxu0 0.0
  %443 = vmatprep.subr.mxu0 0.0
  %444 = vmatpush1.msra.mxu0 0.0
  %445 = vmatprep.subr.mxu0 0.0
  %446 = vmatpush1.msra.mxu0 0.0
  %447 = vmatprep.subr.mxu0 0.0
  %448 = vmatpush1.msra.mxu0 0.0
  %449 = vmatprep.subr.mxu0 0.0
  %450 = vmatpush1.msra.mxu0 0.0
  %451 = vmatprep.subr.mxu0 0.0
  %452 = vmatpush1.msra.mxu0 0.0
  %453 = vmatprep.subr.mxu0 0.0
  %454 = vmatpush1.msra.mxu0 0.0
  %455 = vmatprep.subr.mxu0 0.0
  %456 = vmatpush1.msra.mxu0 0.0
  %457 = vmatprep.subr.mxu0 0.0
  %458 = vmatpush1.msra.mxu0 0.0
  %459 = vmatprep.subr.mxu0 0.0
  %460 = vmatpush1.msra.mxu0 0.0
  %461 = vmatprep.subr.mxu0 0.0
  %462 = vmatpush1.msra.mxu0 0.0
  %463 = vmatprep.subr.mxu0 0.0
  %464 = vmatpush1.msra.mxu0 0.0
  %465 = vmatprep.subr.mxu0 0.0
  %466 = vmatpush1.msra.mxu0 0.0
  %467 = vmatprep.subr.mxu0 0.0
  %468 = vmatpush1.msra.mxu0 0.0
  %469 = vmatprep.subr.mxu0 0.0
  %470 = vmatpush1.msra.mxu0 0.0
  %471 = vmatprep.subr.mxu0 0.0
  %472 = vmatpush1.msra.mxu0 0.0
  %473 = vmatprep.subr.mxu0 0.0
  %474 = vmatpush1.msra.mxu0 0.0
  %475 = vmatprep.subr.mxu0 0.0
  %476 = vmatpush1.msra.mxu0 0.0
  %477 = vmatprep.subr.mxu0 0.0
  %478 = vmatpush1.msra.mxu0 0.0
  %479 = vmatprep.subr.mxu0 0.0
  %480 = vmatpush1.msra.mxu0 0.0
  %481 = vmatprep.subr.mxu0 0.0
  %482 = vmatpush1.msra.mxu0 0.0
  %483 = vmatprep.mubr.f32.mxu0 0.0
  %484 = vmatmul.mubr.f32.gmra.mrb[0].mxu0 %v408
  %v485 = vpop.f32.mrb[0].mxu0
  %v486 = vadd.f32 0.0, %v485
  %v487 = vpop.f32.mrb[0].mxu0
  %488 = vmatprep.mubr.f32.mxu0 0.0
  %489 = vmatmul.mubr.f32.gmra.mrb[0].mxu0 %v411
  %v490 = vpop.f32.mrb[0].mxu0
  %v491 = vadd.f32 0.0, %v490
  %v492 = vpop.f32.mrb[0].mxu0
  %493 = vmatprep.mubr.f32.mxu0 0.0
  %494 = vmatmul.mubr.f32.gmra.mrb[0].mxu0 %v414
  %v495 = vpop.f32.mrb[0].mxu0
  %v496 = vadd.f32 0.0, %v495
  %v497 = vpop.f32.mrb[0].mxu0
  %498 = vmatprep.mubr.f32.mxu0 0.0
  %499 = vmatmul.mubr.f32.gmra.mrb[0].mxu0 %v417
  %v500 = vpop.f32.mrb[0].mxu0
  %v501 = vadd.f32 0.0, %v500
  %v502 = vpop.f32.mrb[0].mxu0
  %503 = vdwg.mxu0
  %vm536 = vcmask 1041409
  %v537 = vsel %vm536, %v185, %v178
  %vm538 = vcmask 1042434
  %v539 = vsel %vm538, %v192, %v537
  %vm540 = vcmask 1043459
  %v541 = vsel %vm540, %v199, %v539
  %vm542 = vcmask 1044484
  %v543 = vsel %vm542, %v206, %v541
  %vm544 = vcmask 1045509
  %v545 = vsel %vm544, %v213, %v543
  %vm546 = vcmask 1046534
  %v547 = vsel %vm546, %v220, %v545
  %vm548 = vcmask 1047559
  %v549 = vsel %vm548, %v227, %v547
  %v550 = vsel %vm536, %v241, %v234
  %v551 = vsel %vm538, %v248, %v550
  %v552 = vsel %vm540, %v255, %v551
  %v553 = vsel %vm542, %v262, %v552
  %v554 = vsel %vm544, %v269, %v553
  %v555 = vsel %vm546, %v276, %v554
  %v556 = vsel %vm548, %v283, %v555
  %v557 = vsel %vm536, %v297, %v290
  %v558 = vsel %vm538, %v304, %v557
  %v559 = vsel %vm540, %v311, %v558
  %v560 = vsel %vm542, %v318, %v559
  %v561 = vsel %vm544, %v325, %v560
  %v562 = vsel %vm546, %v332, %v561
  %v563 = vsel %vm548, %v339, %v562
  %v564 = vsel %vm536, %v353, %v346
  %v565 = vsel %vm538, %v360, %v564
  %v566 = vsel %vm540, %v367, %v565
  %v567 = vsel %vm542, %v374, %v566
  %v568 = vsel %vm544, %v381, %v567
  %v569 = vsel %vm546, %v388, %v568
  %v570 = vsel %vm548, %v395, %v569
  %v571 = vsel %vm171, %v549, 0
  %v573 = vsel %vm171, %v556, 0
  %v575 = vsel %vm171, %v563, 0
  %v577 = vsel %vm171, %v570, 0
  %579 = vmatprep.subr.mxu0 0.0
  %580 = vmatpush1.msra.mxu0 %v396
  %581 = vmatprep.subr.mxu0 0.0
  %582 = vmatpush1.msra.mxu0 %v397
  %583 = vmatprep.subr.mxu0 0.0
  %584 = vmatpush1.msra.mxu0 %v398
  %585 = vmatprep.subr.mxu0 0.0
  %586 = vmatpush1.msra.mxu0 %v399
  %587 = vmatprep.subr.mxu0 0.0
  %588 = vmatpush1.msra.mxu0 0.0
  %589 = vmatprep.subr.mxu0 0.0
  %590 = vmatpush1.msra.mxu0 0.0
  %591 = vmatprep.subr.mxu0 0.0
  %592 = vmatpush1.msra.mxu0 0.0
  %593 = vmatprep.subr.mxu0 0.0
  %594 = vmatpush1.msra.mxu0 0.0
  %595 = vmatprep.subr.mxu0 0.0
  %596 = vmatpush1.msra.mxu0 0.0
  %597 = vmatprep.subr.mxu0 0.0
  %598 = vmatpush1.msra.mxu0 0.0
  %599 = vmatprep.subr.mxu0 0.0
  %600 = vmatpush1.msra.mxu0 0.0
  %601 = vmatprep.subr.mxu0 0.0
  %602 = vmatpush1.msra.mxu0 0.0
  %603 = vmatprep.subr.mxu0 0.0
  %604 = vmatpush1.msra.mxu0 0.0
  %605 = vmatprep.subr.mxu0 0.0
  %606 = vmatpush1.msra.mxu0 0.0
  %607 = vmatprep.subr.mxu0 0.0
  %608 = vmatpush1.msra.mxu0 0.0
  %609 = vmatprep.subr.mxu0 0.0
  %610 = vmatpush1.msra.mxu0 0.0
  %611 = vmatprep.subr.mxu0 0.0
  %612 = vmatpush1.msra.mxu0 0.0
  %613 = vmatprep.subr.mxu0 0.0
  %614 = vmatpush1.msra.mxu0 0.0
  %615 = vmatprep.subr.mxu0 0.0
  %616 = vmatpush1.msra.mxu0 0.0
  %617 = vmatprep.subr.mxu0 0.0
  %618 = vmatpush1.msra.mxu0 0.0
  %619 = vmatprep.subr.mxu0 0.0
  %620 = vmatpush1.msra.mxu0 0.0
  %621 = vmatprep.subr.mxu0 0.0
  %622 = vmatpush1.msra.mxu0 0.0
  %623 = vmatprep.subr.mxu0 0.0
  %624 = vmatpush1.msra.mxu0 0.0
  %625 = vmatprep.subr.mxu0 0.0
  %626 = vmatpush1.msra.mxu0 0.0
  %627 = vmatprep.subr.mxu0 0.0
  %628 = vmatpush1.msra.mxu0 0.0
  %629 = vmatprep.subr.mxu0 0.0
  %630 = vmatpush1.msra.mxu0 0.0
  %631 = vmatprep.subr.mxu0 0.0
  %632 = vmatpush1.msra.mxu0 0.0
  %633 = vmatprep.subr.mxu0 0.0
  %634 = vmatpush1.msra.mxu0 0.0
  %635 = vmatprep.subr.mxu0 0.0
  %636 = vmatpush1.msra.mxu0 0.0
  %637 = vmatprep.subr.mxu0 0.0
  %638 = vmatpush1.msra.mxu0 0.0
  %639 = vmatprep.subr.mxu0 0.0
  %640 = vmatpush1.msra.mxu0 0.0
  %641 = vmatprep.subr.mxu0 0.0
  %642 = vmatpush1.msra.mxu0 0.0
  %643 = vmatprep.mubr.f32.mxu0 0.0
  %644 = vmatmul.mubr.f32.gmra.mrb[0].mxu0 %v571
  %v645 = vpop.f32.mrb[0].mxu0
  %v646 = vadd.f32 %v486, %v645
  %v647 = vpop.f32.mrb[0].mxu0
  %648 = vmatprep.mubr.f32.mxu0 0.0
  %649 = vmatmul.mubr.f32.gmra.mrb[0].mxu0 %v573
  %v650 = vpop.f32.mrb[0].mxu0
  %v651 = vadd.f32 %v491, %v650
  %v652 = vpop.f32.mrb[0].mxu0
  %653 = vmatprep.mubr.f32.mxu0 0.0
  %654 = vmatmul.mubr.f32.gmra.mrb[0].mxu0 %v575
  %v655 = vpop.f32.mrb[0].mxu0
  %v656 = vadd.f32 %v496, %v655
  %v657 = vpop.f32.mrb[0].mxu0
  %658 = vmatprep.mubr.f32.mxu0 0.0
  %659 = vmatmul.mubr.f32.gmra.mrb[0].mxu0 %v577
  %v660 = vpop.f32.mrb[0].mxu0
  %v661 = vadd.f32 %v501, %v660
  %v662 = vpop.f32.mrb[0].mxu0
  %663 = vdwg.mxu0
  %v664 = vld [vmem:[%s23] sm:$0x1]
  %v666 = vlaneseq
  %v667 = vshrl.u32 %v666, 7
  %v668 = vsub.s32 0, %v667
  %v669 = vrot.slane %v664, %v668
  %v671 = vadd.f32 %v646, %v669
  %v672 = vadd.f32 %v651, %v669
  %v673 = vadd.f32 %v656, %v669
  %v674 = vadd.f32 %v661, %v669
  %vm675 = vcmp.gt.f32.partialorder %v671, 0.0
  %vm676 = vcmp.gt.f32.partialorder %v672, 0.0
  %vm677 = vcmp.gt.f32.partialorder %v673, 0.0
  %vm678 = vcmp.gt.f32.partialorder %v674, 0.0
  %v679 = vmul.f32 %v671, 0.01
  %v680 = vmul.f32 %v672, 0.01
  %v681 = vmul.f32 %v673, 0.01
  %v682 = vmul.f32 %v674, 0.01
  %v683 = vsel %vm675, %v671, %v679
  %v684 = vsel %vm676, %v672, %v680
  %v685 = vsel %vm677, %v673, %v681
  %v686 = vsel %vm678, %v674, %v682
  %v687 = vld [vmem:[%s25] sm:$0xff]
  %v688 = vld [vmem:[%s25 + $0x8] sm:$0xff]
  %v689 = vld [vmem:[%s25 + $0x10] sm:$0xff]
  %v690 = vld [vmem:[%s25 + $0x18] sm:$0xff]
  %v691 = vld [vmem:[%s25 + $0x20] sm:$0xff]
  %v692 = vld [vmem:[%s25 + $0x28] sm:$0xff]
  %v693 = vld [vmem:[%s25 + $0x30] sm:$0xff]
  %v694 = vld [vmem:[%s25 + $0x38] sm:$0xff]
  %v695 = vld [vmem:[%s27] sm:$0x1]
  %v697 = vlaneseq
  %v698 = vshrl.u32 %v697, 7
  %v699 = vsub.s32 0, %v698
  %v700 = vrot.slane %v695, %v699
  %vm702 = vcmask 523264
  %v704 = vsel %vm702, %v683, 0
  %v707 = vsel %vm702, %v684, 0
  %v710 = vsel %vm702, %v685, 0
  %v713 = vsel %vm702, %v686, 0
  %715 = vmatprep.subr.mxu0 0.0
  %716 = vmatpush1.msra.mxu0 %v687
  %717 = vmatprep.subr.mxu0 0.0
  %718 = vmatpush1.msra.mxu0 %v688
  %719 = vmatprep.subr.mxu0 0.0
  %720 = vmatpush1.msra.mxu0 %v689
  %721 = vmatprep.subr.mxu0 0.0
  %722 = vmatpush1.msra.mxu0 %v690
  %723 = vmatprep.subr.mxu0 0.0
  %724 = vmatpush1.msra.mxu0 %v691
  %725 = vmatprep.subr.mxu0 0.0
  %726 = vmatpush1.msra.mxu0 %v692
  %727 = vmatprep.subr.mxu0 0.0
  %728 = vmatpush1.msra.mxu0 %v693
  %729 = vmatprep.subr.mxu0 0.0
  %730 = vmatpush1.msra.mxu0 %v694
  %731 = vmatprep.subr.mxu0 0.0
  %732 = vmatpush1.msra.mxu0 0.0
  %733 = vmatprep.subr.mxu0 0.0
  %734 = vmatpush1.msra.mxu0 0.0
  %735 = vmatprep.subr.mxu0 0.0
  %736 = vmatpush1.msra.mxu0 0.0
  %737 = vmatprep.subr.mxu0 0.0
  %738 = vmatpush1.msra.mxu0 0.0
  %739 = vmatprep.subr.mxu0 0.0
  %740 = vmatpush1.msra.mxu0 0.0
  %741 = vmatprep.subr.mxu0 0.0
  %742 = vmatpush1.msra.mxu0 0.0
  %743 = vmatprep.subr.mxu0 0.0
  %744 = vmatpush1.msra.mxu0 0.0
  %745 = vmatprep.subr.mxu0 0.0
  %746 = vmatpush1.msra.mxu0 0.0
  %747 = vmatprep.subr.mxu0 0.0
  %748 = vmatpush1.msra.mxu0 0.0
  %749 = vmatprep.subr.mxu0 0.0
  %750 = vmatpush1.msra.mxu0 0.0
  %751 = vmatprep.subr.mxu0 0.0
  %752 = vmatpush1.msra.mxu0 0.0
  %753 = vmatprep.subr.mxu0 0.0
  %754 = vmatpush1.msra.mxu0 0.0
  %755 = vmatprep.subr.mxu0 0.0
  %756 = vmatpush1.msra.mxu0 0.0
  %757 = vmatprep.subr.mxu0 0.0
  %758 = vmatpush1.msra.mxu0 0.0
  %759 = vmatprep.subr.mxu0 0.0
  %760 = vmatpush1.msra.mxu0 0.0
  %761 = vmatprep.subr.mxu0 0.0
  %762 = vmatpush1.msra.mxu0 0.0
  %763 = vmatprep.subr.mxu0 0.0
  %764 = vmatpush1.msra.mxu0 0.0
  %765 = vmatprep.subr.mxu0 0.0
  %766 = vmatpush1.msra.mxu0 0.0
  %767 = vmatprep.subr.mxu0 0.0
  %768 = vmatpush1.msra.mxu0 0.0
  %769 = vmatprep.subr.mxu0 0.0
  %770 = vmatpush1.msra.mxu0 0.0
  %771 = vmatprep.subr.mxu0 0.0
  %772 = vmatpush1.msra.mxu0 0.0
  %773 = vmatprep.subr.mxu0 0.0
  %774 = vmatpush1.msra.mxu0 0.0
  %775 = vmatprep.subr.mxu0 0.0
  %776 = vmatpush1.msra.mxu0 0.0
  %777 = vmatprep.subr.mxu0 0.0
  %778 = vmatpush1.msra.mxu0 0.0
  %779 = vmatprep.mubr.f32.mxu0 0.0
  %780 = vmatmul.mubr.f32.gmra.mrb[0].mxu0 %v704
  %v781 = vpop.f32.mrb[0].mxu0
  %v782 = vadd.f32 %v700, %v781
  %v783 = vpop.f32.mrb[0].mxu0
  %784 = vmatprep.mubr.f32.mxu0 0.0
  %785 = vmatmul.mubr.f32.gmra.mrb[0].mxu0 %v707
  %v786 = vpop.f32.mrb[0].mxu0
  %v787 = vadd.f32 %v700, %v786
  %v788 = vpop.f32.mrb[0].mxu0
  %789 = vmatprep.mubr.f32.mxu0 0.0
  %790 = vmatmul.mubr.f32.gmra.mrb[0].mxu0 %v710
  %v791 = vpop.f32.mrb[0].mxu0
  %v792 = vadd.f32 %v700, %v791
  %v793 = vpop.f32.mrb[0].mxu0
  %794 = vmatprep.mubr.f32.mxu0 0.0
  %795 = vmatmul.mubr.f32.gmra.mrb[0].mxu0 %v713
  %v796 = vpop.f32.mrb[0].mxu0
  %v797 = vadd.f32 %v700, %v796
  %v798 = vpop.f32.mrb[0].mxu0
  %799 = vdwg.mxu0
  %vm800 = vcmp.gt.f32.partialorder %v782, 0.0
  %vm801 = vcmp.gt.f32.partialorder %v787, 0.0
  %vm802 = vcmp.gt.f32.partialorder %v792, 0.0
  %vm803 = vcmp.gt.f32.partialorder %v797, 0.0
  %v804 = vmul.f32 %v782, 0.01
  %v805 = vmul.f32 %v787, 0.01
  %v806 = vmul.f32 %v792, 0.01
  %v807 = vmul.f32 %v797, 0.01
  %v808 = vsel %vm800, %v782, %v804
  %v809 = vsel %vm801, %v787, %v805
  %v810 = vsel %vm802, %v792, %v806
  %v811 = vsel %vm803, %v797, %v807
  %v812 = vld [vmem:[%s15] sm:$0xff]
  %v813 = vld [vmem:[%s15 + $0x8] sm:$0xff]
  %v814 = vld [vmem:[%s15 + $0x10] sm:$0xff]
  %v815 = vld [vmem:[%s15 + $0x18] sm:$0xff]
  %v816 = vld [vmem:[%s15 + $0x20] sm:$0xff]
  %v817 = vld [vmem:[%s15 + $0x28] sm:$0xff]
  %v818 = vld [vmem:[%s15 + $0x30] sm:$0xff]
  %v819 = vld [vmem:[%s15 + $0x38] sm:$0xff]
  %v821 = vsel %vm702, %v808, 0
  %v824 = vsel %vm702, %v809, 0
  %v827 = vsel %vm702, %v810, 0
  %v830 = vsel %vm702, %v811, 0
  %832 = vmatprep.subr.mxu0 0.0
  %833 = vmatpush1.msra.mxu0 %v812
  %834 = vmatprep.subr.mxu0 0.0
  %835 = vmatpush1.msra.mxu0 %v813
  %836 = vmatprep.subr.mxu0 0.0
  %837 = vmatpush1.msra.mxu0 %v814
  %838 = vmatprep.subr.mxu0 0.0
  %839 = vmatpush1.msra.mxu0 %v815
  %840 = vmatprep.subr.mxu0 0.0
  %841 = vmatpush1.msra.mxu0 %v816
  %842 = vmatprep.subr.mxu0 0.0
  %843 = vmatpush1.msra.mxu0 %v817
  %844 = vmatprep.subr.mxu0 0.0
  %845 = vmatpush1.msra.mxu0 %v818
  %846 = vmatprep.subr.mxu0 0.0
  %847 = vmatpush1.msra.mxu0 %v819
  %848 = vmatprep.subr.mxu0 0.0
  %849 = vmatpush1.msra.mxu0 0.0
  %850 = vmatprep.subr.mxu0 0.0
  %851 = vmatpush1.msra.mxu0 0.0
  %852 = vmatprep.subr.mxu0 0.0
  %853 = vmatpush1.msra.mxu0 0.0
  %854 = vmatprep.subr.mxu0 0.0
  %855 = vmatpush1.msra.mxu0 0.0
  %856 = vmatprep.subr.mxu0 0.0
  %857 = vmatpush1.msra.mxu0 0.0
  %858 = vmatprep.subr.mxu0 0.0
  %859 = vmatpush1.msra.mxu0 0.0
  %860 = vmatprep.subr.mxu0 0.0
  %861 = vmatpush1.msra.mxu0 0.0
  %862 = vmatprep.subr.mxu0 0.0
  %863 = vmatpush1.msra.mxu0 0.0
  %864 = vmatprep.subr.mxu0 0.0
  %865 = vmatpush1.msra.mxu0 0.0
  %866 = vmatprep.subr.mxu0 0.0
  %867 = vmatpush1.msra.mxu0 0.0
  %868 = vmatprep.subr.mxu0 0.0
  %869 = vmatpush1.msra.mxu0 0.0
  %870 = vmatprep.subr.mxu0 0.0
  %871 = vmatpush1.msra.mxu0 0.0
  %872 = vmatprep.subr.mxu0 0.0
  %873 = vmatpush1.msra.mxu0 0.0
  %874 = vmatprep.subr.mxu0 0.0
  %875 = vmatpush1.msra.mxu0 0.0
  %876 = vmatprep.subr.mxu0 0.0
  %877 = vmatpush1.msra.mxu0 0.0
  %878 = vmatprep.subr.mxu0 0.0
  %879 = vmatpush1.msra.mxu0 0.0
  %880 = vmatprep.subr.mxu0 0.0
  %881 = vmatpush1.msra.mxu0 0.0
  %882 = vmatprep.subr.mxu0 0.0
  %883 = vmatpush1.msra.mxu0 0.0
  %884 = vmatprep.subr.mxu0 0.0
  %885 = vmatpush1.msra.mxu0 0.0
  %886 = vmatprep.subr.mxu0 0.0
  %887 = vmatpush1.msra.mxu0 0.0
  %888 = vmatprep.subr.mxu0 0.0
  %889 = vmatpush1.msra.mxu0 0.0
  %890 = vmatprep.subr.mxu0 0.0
  %891 = vmatpush1.msra.mxu0 0.0
  %892 = vmatprep.subr.mxu0 0.0
  %893 = vmatpush1.msra.mxu0 0.0
  %894 = vmatprep.subr.mxu0 0.0
  %895 = vmatpush1.msra.mxu0 0.0
  %896 = vmatprep.mubr.f32.mxu0 0.0
  %897 = vmatmul.mubr.f32.gmra.mrb[0].mxu0 %v821
  %v898 = vpop.f32.mrb[0].mxu0
  %v899 = vadd.f32 0.0, %v898
  %v900 = vpop.f32.mrb[0].mxu0
  %901 = vmatprep.mubr.f32.mxu0 0.0
  %902 = vmatmul.mubr.f32.gmra.mrb[0].mxu0 %v824
  %v903 = vpop.f32.mrb[0].mxu0
  %v904 = vadd.f32 0.0, %v903
  %v905 = vpop.f32.mrb[0].mxu0
  %906 = vmatprep.mubr.f32.mxu0 0.0
  %907 = vmatmul.mubr.f32.gmra.mrb[0].mxu0 %v827
  %v908 = vpop.f32.mrb[0].mxu0
  %v909 = vadd.f32 0.0, %v908
  %v910 = vpop.f32.mrb[0].mxu0
  %911 = vmatprep.mubr.f32.mxu0 0.0
  %912 = vmatmul.mubr.f32.gmra.mrb[0].mxu0 %v830
  %v913 = vpop.f32.mrb[0].mxu0
  %v914 = vadd.f32 0.0, %v913
  %v915 = vpop.f32.mrb[0].mxu0
  %916 = vdwg.mxu0
  %v917 = vld [vmem:[%s17] sm:$0xff]
  %v918 = vld [vmem:[%s17 + $0x8] sm:$0xff]
  %v919 = vld [vmem:[%s17 + $0x10] sm:$0xff]
  %v920 = vld [vmem:[%s17 + $0x18] sm:$0xff]
  %v921 = vld [vmem:[%s17 + $0x20] sm:$0xff]
  %v922 = vld [vmem:[%s17 + $0x28] sm:$0xff]
  %v923 = vld [vmem:[%s17 + $0x30] sm:$0xff]
  %v924 = vld [vmem:[%s17 + $0x38] sm:$0xff]
  %925 = vmatprep.subr.mxu0 0.0
  %926 = vmatpush1.msra.mxu0 %v917
  %927 = vmatprep.subr.mxu0 0.0
  %928 = vmatpush1.msra.mxu0 %v918
  %929 = vmatprep.subr.mxu0 0.0
  %930 = vmatpush1.msra.mxu0 %v919
  %931 = vmatprep.subr.mxu0 0.0
  %932 = vmatpush1.msra.mxu0 %v920
  %933 = vmatprep.subr.mxu0 0.0
  %934 = vmatpush1.msra.mxu0 %v921
  %935 = vmatprep.subr.mxu0 0.0
  %936 = vmatpush1.msra.mxu0 %v922
  %937 = vmatprep.subr.mxu0 0.0
  %938 = vmatpush1.msra.mxu0 %v923
  %939 = vmatprep.subr.mxu0 0.0
  %940 = vmatpush1.msra.mxu0 %v924
  %941 = vmatprep.subr.mxu0 0.0
  %942 = vmatpush1.msra.mxu0 0.0
  %943 = vmatprep.subr.mxu0 0.0
  %944 = vmatpush1.msra.mxu0 0.0
  %945 = vmatprep.subr.mxu0 0.0
  %946 = vmatpush1.msra.mxu0 0.0
  %947 = vmatprep.subr.mxu0 0.0
  %948 = vmatpush1.msra.mxu0 0.0
  %949 = vmatprep.subr.mxu0 0.0
  %950 = vmatpush1.msra.mxu0 0.0
  %951 = vmatprep.subr.mxu0 0.0
  %952 = vmatpush1.msra.mxu0 0.0
  %953 = vmatprep.subr.mxu0 0.0
  %954 = vmatpush1.msra.mxu0 0.0
  %955 = vmatprep.subr.mxu0 0.0
  %956 = vmatpush1.msra.mxu0 0.0
  %957 = vmatprep.subr.mxu0 0.0
  %958 = vmatpush1.msra.mxu0 0.0
  %959 = vmatprep.subr.mxu0 0.0
  %960 = vmatpush1.msra.mxu0 0.0
  %961 = vmatprep.subr.mxu0 0.0
  %962 = vmatpush1.msra.mxu0 0.0
  %963 = vmatprep.subr.mxu0 0.0
  %964 = vmatpush1.msra.mxu0 0.0
  %965 = vmatprep.subr.mxu0 0.0
  %966 = vmatpush1.msra.mxu0 0.0
  %967 = vmatprep.subr.mxu0 0.0
  %968 = vmatpush1.msra.mxu0 0.0
  %969 = vmatprep.subr.mxu0 0.0
  %970 = vmatpush1.msra.mxu0 0.0
  %971 = vmatprep.subr.mxu0 0.0
  %972 = vmatpush1.msra.mxu0 0.0
  %973 = vmatprep.subr.mxu0 0.0
  %974 = vmatpush1.msra.mxu0 0.0
  %975 = vmatprep.subr.mxu0 0.0
  %976 = vmatpush1.msra.mxu0 0.0
  %977 = vmatprep.subr.mxu0 0.0
  %978 = vmatpush1.msra.mxu0 0.0
  %979 = vmatprep.subr.mxu0 0.0
  %980 = vmatpush1.msra.mxu0 0.0
  %981 = vmatprep.subr.mxu0 0.0
  %982 = vmatpush1.msra.mxu0 0.0
  %983 = vmatprep.subr.mxu0 0.0
  %984 = vmatpush1.msra.mxu0 0.0
  %985 = vmatprep.subr.mxu0 0.0
  %986 = vmatpush1.msra.mxu0 0.0
  %987 = vmatprep.subr.mxu0 0.0
  %988 = vmatpush1.msra.mxu0 0.0
  %989 = vmatprep.mubr.f32.mxu0 0.0
  %990 = vmatmul.mubr.f32.gmra.mrb[0].mxu0 %v821
  %v991 = vpop.f32.mrb[0].mxu0
  %v992 = vadd.f32 0.0, %v991
  %v993 = vpop.f32.mrb[0].mxu0
  %994 = vmatprep.mubr.f32.mxu0 0.0
  %995 = vmatmul.mubr.f32.gmra.mrb[0].mxu0 %v824
  %v996 = vpop.f32.mrb[0].mxu0
  %v997 = vadd.f32 0.0, %v996
  %v998 = vpop.f32.mrb[0].mxu0
  %999 = vmatprep.mubr.f32.mxu0 0.0
  %1000 = vmatmul.mubr.f32.gmra.mrb[0].mxu0 %v827
  %v1001 = vpop.f32.mrb[0].mxu0
  %v1002 = vadd.f32 0.0, %v1001
  %v1003 = vpop.f32.mrb[0].mxu0
  %1004 = vmatprep.mubr.f32.mxu0 0.0
  %1005 = vmatmul.mubr.f32.gmra.mrb[0].mxu0 %v830
  %v1006 = vpop.f32.mrb[0].mxu0
  %v1007 = vadd.f32 0.0, %v1006
  %v1008 = vpop.f32.mrb[0].mxu0
  %1009 = vdwg.mxu0
  %v1010 = vld [vmem:[%s9] sm:$0xff]
  %v1011 = vld [vmem:[%s9 + $0x8] sm:$0xff]
  %v1012 = vld [vmem:[%s9 + $0x10] sm:$0xff]
  %v1013 = vld [vmem:[%s9 + $0x18] sm:$0xff]
  %v1014 = vld [vmem:[%s5] sm:$0xff]
  %v1015 = vld [vmem:[%s5 + $0x8] sm:$0xff]
  %v1016 = vld [vmem:[%s5 + $0x10] sm:$0xff]
  %v1017 = vld [vmem:[%s5 + $0x18] sm:$0xff]
  %v1018 = vld [vmem:[%s7] sm:$0xff]
  %v1019 = vld [vmem:[%s7 + $0x8] sm:$0xff]
  %v1020 = vld [vmem:[%s7 + $0x10] sm:$0xff]
  %v1021 = vld [vmem:[%s7 + $0x18] sm:$0xff]
  %v1023 = vsel %vm171, %v1010, 0
  %v1026 = vsel %vm171, %v1011, 0
  %v1029 = vsel %vm171, %v1012, 0
  %v1032 = vsel %vm171, %v1013, 0
  %1034 = vmatprep.subr.mxu0 0.0
  %1035 = vmatpush1.msra.mxu0 %v899
  %1036 = vmatprep.subr.mxu0 0.0
  %1037 = vmatpush1.msra.mxu0 %v904
  %1038 = vmatprep.subr.mxu0 0.0
  %1039 = vmatpush1.msra.mxu0 %v909
  %1040 = vmatprep.subr.mxu0 0.0
  %1041 = vmatpush1.msra.mxu0 %v914
  %1042 = vmatprep.subr.mxu0 0.0
  %1043 = vmatpush1.msra.mxu0 0.0
  %1044 = vmatprep.subr.mxu0 0.0
  %1045 = vmatpush1.msra.mxu0 0.0
  %1046 = vmatprep.subr.mxu0 0.0
  %1047 = vmatpush1.msra.mxu0 0.0
  %1048 = vmatprep.subr.mxu0 0.0
  %1049 = vmatpush1.msra.mxu0 0.0
  %1050 = vmatprep.subr.mxu0 0.0
  %1051 = vmatpush1.msra.mxu0 0.0
  %1052 = vmatprep.subr.mxu0 0.0
  %1053 = vmatpush1.msra.mxu0 0.0
  %1054 = vmatprep.subr.mxu0 0.0
  %1055 = vmatpush1.msra.mxu0 0.0
  %1056 = vmatprep.subr.mxu0 0.0
  %1057 = vmatpush1.msra.mxu0 0.0
  %1058 = vmatprep.subr.mxu0 0.0
  %1059 = vmatpush1.msra.mxu0 0.0
  %1060 = vmatprep.subr.mxu0 0.0
  %1061 = vmatpush1.msra.mxu0 0.0
  %1062 = vmatprep.subr.mxu0 0.0
  %1063 = vmatpush1.msra.mxu0 0.0
  %1064 = vmatprep.subr.mxu0 0.0
  %1065 = vmatpush1.msra.mxu0 0.0
  %1066 = vmatprep.subr.mxu0 0.0
  %1067 = vmatpush1.msra.mxu0 0.0
  %1068 = vmatprep.subr.mxu0 0.0
  %1069 = vmatpush1.msra.mxu0 0.0
  %1070 = vmatprep.subr.mxu0 0.0
  %1071 = vmatpush1.msra.mxu0 0.0
  %1072 = vmatprep.subr.mxu0 0.0
  %1073 = vmatpush1.msra.mxu0 0.0
  %1074 = vmatprep.subr.mxu0 0.0
  %1075 = vmatpush1.msra.mxu0 0.0
  %1076 = vmatprep.subr.mxu0 0.0
  %1077 = vmatpush1.msra.mxu0 0.0
  %1078 = vmatprep.subr.mxu0 0.0
  %1079 = vmatpush1.msra.mxu0 0.0
  %1080 = vmatprep.subr.mxu0 0.0
  %1081 = vmatpush1.msra.mxu0 0.0
  %1082 = vmatprep.subr.mxu0 0.0
  %1083 = vmatpush1.msra.mxu0 0.0
  %1084 = vmatprep.subr.mxu0 0.0
  %1085 = vmatpush1.msra.mxu0 0.0
  %1086 = vmatprep.subr.mxu0 0.0
  %1087 = vmatpush1.msra.mxu0 0.0
  %1088 = vmatprep.subr.mxu0 0.0
  %1089 = vmatpush1.msra.mxu0 0.0
  %1090 = vmatprep.subr.mxu0 0.0
  %1091 = vmatpush1.msra.mxu0 0.0
  %1092 = vmatprep.subr.mxu0 0.0
  %1093 = vmatpush1.msra.mxu0 0.0
  %1094 = vmatprep.subr.mxu0 0.0
  %1095 = vmatpush1.msra.mxu0 0.0
  %1096 = vmatprep.subr.mxu0 0.0
  %1097 = vmatpush1.msra.mxu0 0.0
  %1098 = vmatprep.mubr.f32.mxu0 0.0
  %1099 = vmatmul.mubr.f32.gmra.mrb[0].mxu0 %v1023
  %v1100 = vpop.f32.mrb[0].mxu0
  %v1101 = vadd.f32 0.0, %v1100
  %v1102 = vpop.f32.mrb[0].mxu0
  %1103 = vmatprep.mubr.f32.mxu0 0.0
  %1104 = vmatmul.mubr.f32.gmra.mrb[0].mxu0 %v1026
  %v1105 = vpop.f32.mrb[0].mxu0
  %v1106 = vadd.f32 0.0, %v1105
  %v1107 = vpop.f32.mrb[0].mxu0
  %1108 = vmatprep.mubr.f32.mxu0 0.0
  %1109 = vmatmul.mubr.f32.gmra.mrb[0].mxu0 %v1029
  %v1110 = vpop.f32.mrb[0].mxu0
  %v1111 = vadd.f32 0.0, %v1110
  %v1112 = vpop.f32.mrb[0].mxu0
  %1113 = vmatprep.mubr.f32.mxu0 0.0
  %1114 = vmatmul.mubr.f32.gmra.mrb[0].mxu0 %v1032
  %v1115 = vpop.f32.mrb[0].mxu0
  %v1116 = vadd.f32 0.0, %v1115
  %v1117 = vpop.f32.mrb[0].mxu0
  %1118 = vdwg.mxu0
  %v1123 = vrot.slane %v1101, 1
  %v1124 = vrot.slane %v1101, 2
  %v1125 = vrot.slane %v1101, 3
  %v1126 = vrot.slane %v1101, 4
  %v1127 = vrot.slane %v1101, 5
  %v1128 = vrot.slane %v1101, 6
  %v1129 = vrot.slane %v1101, 7
  %v1130 = vrot.slane %v1106, 1
  %v1131 = vrot.slane %v1106, 2
  %v1132 = vrot.slane %v1106, 3
  %v1133 = vrot.slane %v1106, 4
  %v1134 = vrot.slane %v1106, 5
  %v1135 = vrot.slane %v1106, 6
  %v1136 = vrot.slane %v1106, 7
  %v1137 = vrot.slane %v1111, 1
  %v1138 = vrot.slane %v1111, 2
  %v1139 = vrot.slane %v1111, 3
  %v1140 = vrot.slane %v1111, 4
  %v1141 = vrot.slane %v1111, 5
  %v1142 = vrot.slane %v1111, 6
  %v1143 = vrot.slane %v1111, 7
  %v1144 = vrot.slane %v1116, 1
  %v1145 = vrot.slane %v1116, 2
  %v1146 = vrot.slane %v1116, 3
  %v1147 = vrot.slane %v1116, 4
  %v1148 = vrot.slane %v1116, 5
  %v1149 = vrot.slane %v1116, 6
  %v1150 = vrot.slane %v1116, 7
  %v1183 = vadd.f32 %v178, %v1101
  %v1184 = vadd.f32 %v185, %v1123
  %v1185 = vadd.f32 %v192, %v1124
  %v1186 = vadd.f32 %v199, %v1125
  %v1187 = vadd.f32 %v206, %v1126
  %v1188 = vadd.f32 %v213, %v1127
  %v1189 = vadd.f32 %v220, %v1128
  %v1190 = vadd.f32 %v227, %v1129
  %v1191 = vadd.f32 %v234, %v1106
  %v1192 = vadd.f32 %v241, %v1130
  %v1193 = vadd.f32 %v248, %v1131
  %v1194 = vadd.f32 %v255, %v1132
  %v1195 = vadd.f32 %v262, %v1133
  %v1196 = vadd.f32 %v269, %v1134
  %v1197 = vadd.f32 %v276, %v1135
  %v1198 = vadd.f32 %v283, %v1136
  %v1199 = vadd.f32 %v290, %v1111
  %v1200 = vadd.f32 %v297, %v1137
  %v1201 = vadd.f32 %v304, %v1138
  %v1202 = vadd.f32 %v311, %v1139
  %v1203 = vadd.f32 %v318, %v1140
  %v1204 = vadd.f32 %v325, %v1141
  %v1205 = vadd.f32 %v332, %v1142
  %v1206 = vadd.f32 %v339, %v1143
  %v1207 = vadd.f32 %v346, %v1116
  %v1208 = vadd.f32 %v353, %v1144
  %v1209 = vadd.f32 %v360, %v1145
  %v1210 = vadd.f32 %v367, %v1146
  %v1211 = vadd.f32 %v374, %v1147
  %v1212 = vadd.f32 %v381, %v1148
  %v1213 = vadd.f32 %v388, %v1149
  %v1214 = vadd.f32 %v395, %v1150
  %v1215 = vld [vmem:[%s29] sm:$0xff]
  %v1216 = vld [vmem:[%s29 + $0x8] sm:$0xff]
  %v1217 = vld [vmem:[%s29 + $0x10] sm:$0xff]
  %v1218 = vld [vmem:[%s29 + $0x18] sm:$0xff]
  %v1219 = vld [vmem:[%s31] sm:$0xff]
  %vm1220 = vcmask 64512
  %v1222 = vsel %vm1220, %v1014, 0
  %v1225 = vsel %vm1220, %v1015, 0
  %v1228 = vsel %vm1220, %v1016, 0
  %v1231 = vsel %vm1220, %v1017, 0
  %1233 = vmatprep.subr.mxu0 0.0
  %1234 = vmatpush1.msra.mxu0 %v1219
  %1235 = vmatprep.subr.mxu0 0.0
  %1236 = vmatpush1.msra.mxu0 0.0
  %1237 = vmatprep.subr.mxu0 0.0
  %1238 = vmatpush1.msra.mxu0 0.0
  %1239 = vmatprep.subr.mxu0 0.0
  %1240 = vmatpush1.msra.mxu0 0.0
  %1241 = vmatprep.subr.mxu0 0.0
  %1242 = vmatpush1.msra.mxu0 0.0
  %1243 = vmatprep.subr.mxu0 0.0
  %1244 = vmatpush1.msra.mxu0 0.0
  %1245 = vmatprep.subr.mxu0 0.0
  %1246 = vmatpush1.msra.mxu0 0.0
  %1247 = vmatprep.subr.mxu0 0.0
  %1248 = vmatpush1.msra.mxu0 0.0
  %1249 = vmatprep.subr.mxu0 0.0
  %1250 = vmatpush1.msra.mxu0 0.0
  %1251 = vmatprep.subr.mxu0 0.0
  %1252 = vmatpush1.msra.mxu0 0.0
  %1253 = vmatprep.subr.mxu0 0.0
  %1254 = vmatpush1.msra.mxu0 0.0
  %1255 = vmatprep.subr.mxu0 0.0
  %1256 = vmatpush1.msra.mxu0 0.0
  %1257 = vmatprep.subr.mxu0 0.0
  %1258 = vmatpush1.msra.mxu0 0.0
  %1259 = vmatprep.subr.mxu0 0.0
  %1260 = vmatpush1.msra.mxu0 0.0
  %1261 = vmatprep.subr.mxu0 0.0
  %1262 = vmatpush1.msra.mxu0 0.0
  %1263 = vmatprep.subr.mxu0 0.0
  %1264 = vmatpush1.msra.mxu0 0.0
  %1265 = vmatprep.subr.mxu0 0.0
  %1266 = vmatpush1.msra.mxu0 0.0
  %1267 = vmatprep.subr.mxu0 0.0
  %1268 = vmatpush1.msra.mxu0 0.0
  %1269 = vmatprep.subr.mxu0 0.0
  %1270 = vmatpush1.msra.mxu0 0.0
  %1271 = vmatprep.subr.mxu0 0.0
  %1272 = vmatpush1.msra.mxu0 0.0
  %1273 = vmatprep.subr.mxu0 0.0
  %1274 = vmatpush1.msra.mxu0 0.0
  %1275 = vmatprep.subr.mxu0 0.0
  %1276 = vmatpush1.msra.mxu0 0.0
  %1277 = vmatprep.subr.mxu0 0.0
  %1278 = vmatpush1.msra.mxu0 0.0
  %1279 = vmatprep.subr.mxu0 0.0
  %1280 = vmatpush1.msra.mxu0 0.0
  %1281 = vmatprep.subr.mxu0 0.0
  %1282 = vmatpush1.msra.mxu0 0.0
  %1283 = vmatprep.subr.mxu0 0.0
  %1284 = vmatpush1.msra.mxu0 0.0
  %1285 = vmatprep.subr.mxu0 0.0
  %1286 = vmatpush1.msra.mxu0 0.0
  %1287 = vmatprep.subr.mxu0 0.0
  %1288 = vmatpush1.msra.mxu0 0.0
  %1289 = vmatprep.subr.mxu0 0.0
  %1290 = vmatpush1.msra.mxu0 0.0
  %1291 = vmatprep.subr.mxu0 0.0
  %1292 = vmatpush1.msra.mxu0 0.0
  %1293 = vmatprep.subr.mxu0 0.0
  %1294 = vmatpush1.msra.mxu0 0.0
  %1295 = vmatprep.subr.mxu0 0.0
  %1296 = vmatpush1.msra.mxu0 0.0
  %1297 = vmatprep.mubr.f32.mxu0 0.0
  %1298 = vmatmul.mubr.f32.gmra.mrb[0].mxu0 %v1222
  %v1299 = vpop.f32.mrb[0].mxu0
  %v1300 = vadd.f32 0.0, %v1299
  %v1301 = vpop.f32.mrb[0].mxu0
  %1302 = vmatprep.mubr.f32.mxu0 0.0
  %1303 = vmatmul.mubr.f32.gmra.mrb[0].mxu0 %v1225
  %v1304 = vpop.f32.mrb[0].mxu0
  %v1305 = vadd.f32 0.0, %v1304
  %v1306 = vpop.f32.mrb[0].mxu0
  %1307 = vmatprep.mubr.f32.mxu0 0.0
  %1308 = vmatmul.mubr.f32.gmra.mrb[0].mxu0 %v1228
  %v1309 = vpop.f32.mrb[0].mxu0
  %v1310 = vadd.f32 0.0, %v1309
  %v1311 = vpop.f32.mrb[0].mxu0
  %1312 = vmatprep.mubr.f32.mxu0 0.0
  %1313 = vmatmul.mubr.f32.gmra.mrb[0].mxu0 %v1231
  %v1314 = vpop.f32.mrb[0].mxu0
  %v1315 = vadd.f32 0.0, %v1314
  %v1316 = vpop.f32.mrb[0].mxu0
  %1317 = vdwg.mxu0
  %v1350 = vrot.slane %v1184, 7
  %v1351 = vsel %vm536, %v1350, %v1183
  %v1352 = vrot.slane %v1185, 6
  %v1353 = vsel %vm538, %v1352, %v1351
  %v1354 = vrot.slane %v1186, 5
  %v1355 = vsel %vm540, %v1354, %v1353
  %v1356 = vrot.slane %v1187, 4
  %v1357 = vsel %vm542, %v1356, %v1355
  %v1358 = vrot.slane %v1188, 3
  %v1359 = vsel %vm544, %v1358, %v1357
  %v1360 = vrot.slane %v1189, 2
  %v1361 = vsel %vm546, %v1360, %v1359
  %v1362 = vrot.slane %v1190, 1
  %v1363 = vsel %vm548, %v1362, %v1361
  %v1364 = vrot.slane %v1192, 7
  %v1365 = vsel %vm536, %v1364, %v1191
  %v1366 = vrot.slane %v1193, 6
  %v1367 = vsel %vm538, %v1366, %v1365
  %v1368 = vrot.slane %v1194, 5
  %v1369 = vsel %vm540, %v1368, %v1367
  %v1370 = vrot.slane %v1195, 4
  %v1371 = vsel %vm542, %v1370, %v1369
  %v1372 = vrot.slane %v1196, 3
  %v1373 = vsel %vm544, %v1372, %v1371
  %v1374 = vrot.slane %v1197, 2
  %v1375 = vsel %vm546, %v1374, %v1373
  %v1376 = vrot.slane %v1198, 1
  %v1377 = vsel %vm548, %v1376, %v1375
  %v1378 = vrot.slane %v1200, 7
  %v1379 = vsel %vm536, %v1378, %v1199
  %v1380 = vrot.slane %v1201, 6
  %v1381 = vsel %vm538, %v1380, %v1379
  %v1382 = vrot.slane %v1202, 5
  %v1383 = vsel %vm540, %v1382, %v1381
  %v1384 = vrot.slane %v1203, 4
  %v1385 = vsel %vm542, %v1384, %v1383
  %v1386 = vrot.slane %v1204, 3
  %v1387 = vsel %vm544, %v1386, %v1385
  %v1388 = vrot.slane %v1205, 2
  %v1389 = vsel %vm546, %v1388, %v1387
  %v1390 = vrot.slane %v1206, 1
  %v1391 = vsel %vm548, %v1390, %v1389
  %v1392 = vrot.slane %v1208, 7
  %v1393 = vsel %vm536, %v1392, %v1207
  %v1394 = vrot.slane %v1209, 6
  %v1395 = vsel %vm538, %v1394, %v1393
  %v1396 = vrot.slane %v1210, 5
  %v1397 = vsel %vm540, %v1396, %v1395
  %v1398 = vrot.slane %v1211, 4
  %v1399 = vsel %vm542, %v1398, %v1397
  %v1400 = vrot.slane %v1212, 3
  %v1401 = vsel %vm544, %v1400, %v1399
  %v1402 = vrot.slane %v1213, 2
  %v1403 = vsel %vm546, %v1402, %v1401
  %v1404 = vrot.slane %v1214, 1
  %v1405 = vsel %vm548, %v1404, %v1403
  %v1406 = vsel %vm171, %v1363, 0
  %v1408 = vsel %vm171, %v1377, 0
  %v1410 = vsel %vm171, %v1391, 0
  %v1412 = vsel %vm171, %v1405, 0
  %1414 = vmatprep.subr.mxu0 0.0
  %1415 = vmatpush1.msra.mxu0 %v1215
  %1416 = vmatprep.subr.mxu0 0.0
  %1417 = vmatpush1.msra.mxu0 %v1216
  %1418 = vmatprep.subr.mxu0 0.0
  %1419 = vmatpush1.msra.mxu0 %v1217
  %1420 = vmatprep.subr.mxu0 0.0
  %1421 = vmatpush1.msra.mxu0 %v1218
  %1422 = vmatprep.subr.mxu0 0.0
  %1423 = vmatpush1.msra.mxu0 0.0
  %1424 = vmatprep.subr.mxu0 0.0
  %1425 = vmatpush1.msra.mxu0 0.0
  %1426 = vmatprep.subr.mxu0 0.0
  %1427 = vmatpush1.msra.mxu0 0.0
  %1428 = vmatprep.subr.mxu0 0.0
  %1429 = vmatpush1.msra.mxu0 0.0
  %1430 = vmatprep.subr.mxu0 0.0
  %1431 = vmatpush1.msra.mxu0 0.0
  %1432 = vmatprep.subr.mxu0 0.0
  %1433 = vmatpush1.msra.mxu0 0.0
  %1434 = vmatprep.subr.mxu0 0.0
  %1435 = vmatpush1.msra.mxu0 0.0
  %1436 = vmatprep.subr.mxu0 0.0
  %1437 = vmatpush1.msra.mxu0 0.0
  %1438 = vmatprep.subr.mxu0 0.0
  %1439 = vmatpush1.msra.mxu0 0.0
  %1440 = vmatprep.subr.mxu0 0.0
  %1441 = vmatpush1.msra.mxu0 0.0
  %1442 = vmatprep.subr.mxu0 0.0
  %1443 = vmatpush1.msra.mxu0 0.0
  %1444 = vmatprep.subr.mxu0 0.0
  %1445 = vmatpush1.msra.mxu0 0.0
  %1446 = vmatprep.subr.mxu0 0.0
  %1447 = vmatpush1.msra.mxu0 0.0
  %1448 = vmatprep.subr.mxu0 0.0
  %1449 = vmatpush1.msra.mxu0 0.0
  %1450 = vmatprep.subr.mxu0 0.0
  %1451 = vmatpush1.msra.mxu0 0.0
  %1452 = vmatprep.subr.mxu0 0.0
  %1453 = vmatpush1.msra.mxu0 0.0
  %1454 = vmatprep.subr.mxu0 0.0
  %1455 = vmatpush1.msra.mxu0 0.0
  %1456 = vmatprep.subr.mxu0 0.0
  %1457 = vmatpush1.msra.mxu0 0.0
  %1458 = vmatprep.subr.mxu0 0.0
  %1459 = vmatpush1.msra.mxu0 0.0
  %1460 = vmatprep.subr.mxu0 0.0
  %1461 = vmatpush1.msra.mxu0 0.0
  %1462 = vmatprep.subr.mxu0 0.0
  %1463 = vmatpush1.msra.mxu0 0.0
  %1464 = vmatprep.subr.mxu0 0.0
  %1465 = vmatpush1.msra.mxu0 0.0
  %1466 = vmatprep.subr.mxu0 0.0
  %1467 = vmatpush1.msra.mxu0 0.0
  %1468 = vmatprep.subr.mxu0 0.0
  %1469 = vmatpush1.msra.mxu0 0.0
  %1470 = vmatprep.subr.mxu0 0.0
  %1471 = vmatpush1.msra.mxu0 0.0
  %1472 = vmatprep.subr.mxu0 0.0
  %1473 = vmatpush1.msra.mxu0 0.0
  %1474 = vmatprep.subr.mxu0 0.0
  %1475 = vmatpush1.msra.mxu0 0.0
  %1476 = vmatprep.subr.mxu0 0.0
  %1477 = vmatpush1.msra.mxu0 0.0
  %1478 = vmatprep.mubr.f32.mxu0 0.0
  %1479 = vmatmul.mubr.f32.gmra.mrb[0].mxu0 %v1406
  %v1480 = vpop.f32.mrb[0].mxu0
  %v1481 = vadd.f32 %v1300, %v1480
  %v1482 = vpop.f32.mrb[0].mxu0
  %1483 = vmatprep.mubr.f32.mxu0 0.0
  %1484 = vmatmul.mubr.f32.gmra.mrb[0].mxu0 %v1408
  %v1485 = vpop.f32.mrb[0].mxu0
  %v1486 = vadd.f32 %v1305, %v1485
  %v1487 = vpop.f32.mrb[0].mxu0
  %1488 = vmatprep.mubr.f32.mxu0 0.0
  %1489 = vmatmul.mubr.f32.gmra.mrb[0].mxu0 %v1410
  %v1490 = vpop.f32.mrb[0].mxu0
  %v1491 = vadd.f32 %v1310, %v1490
  %v1492 = vpop.f32.mrb[0].mxu0
  %1493 = vmatprep.mubr.f32.mxu0 0.0
  %1494 = vmatmul.mubr.f32.gmra.mrb[0].mxu0 %v1412
  %v1495 = vpop.f32.mrb[0].mxu0
  %v1496 = vadd.f32 %v1315, %v1495
  %v1497 = vpop.f32.mrb[0].mxu0
  %1498 = vdwg.mxu0
  %v1499 = vld [vmem:[%s33] sm:$0x1]
  %v1501 = vlaneseq
  %v1502 = vshrl.u32 %v1501, 7
  %v1503 = vsub.s32 0, %v1502
  %v1504 = vrot.slane %v1499, %v1503
  %v1506 = vadd.f32 %v1481, %v1504
  %v1507 = vadd.f32 %v1486, %v1504
  %v1508 = vadd.f32 %v1491, %v1504
  %v1509 = vadd.f32 %v1496, %v1504
  %vm1510 = vcmp.gt.f32.partialorder %v1506, 0.0
  %vm1511 = vcmp.gt.f32.partialorder %v1507, 0.0
  %vm1512 = vcmp.gt.f32.partialorder %v1508, 0.0
  %vm1513 = vcmp.gt.f32.partialorder %v1509, 0.0
  %v1514 = vmul.f32 %v1506, 0.01
  %v1515 = vmul.f32 %v1507, 0.01
  %v1516 = vmul.f32 %v1508, 0.01
  %v1517 = vmul.f32 %v1509, 0.01
  %v1518 = vsel %vm1510, %v1506, %v1514
  %v1519 = vsel %vm1511, %v1507, %v1515
  %v1520 = vsel %vm1512, %v1508, %v1516
  %v1521 = vsel %vm1513, %v1509, %v1517
  %v1522 = vld [vmem:[%s35] sm:$0xff]
  %v1523 = vld [vmem:[%s35 + $0x8] sm:$0xff]
  %v1524 = vld [vmem:[%s35 + $0x10] sm:$0xff]
  %v1525 = vld [vmem:[%s35 + $0x18] sm:$0xff]
  %v1526 = vld [vmem:[%s37] sm:$0x1]
  %v1528 = vlaneseq
  %v1529 = vshrl.u32 %v1528, 7
  %v1530 = vsub.s32 0, %v1529
  %v1531 = vrot.slane %v1526, %v1530
  %v1534 = vsel %vm171, %v1518, 0
  %v1537 = vsel %vm171, %v1519, 0
  %v1540 = vsel %vm171, %v1520, 0
  %v1543 = vsel %vm171, %v1521, 0
  %1545 = vmatprep.subr.mxu0 0.0
  %1546 = vmatpush1.msra.mxu0 %v1522
  %1547 = vmatprep.subr.mxu0 0.0
  %1548 = vmatpush1.msra.mxu0 %v1523
  %1549 = vmatprep.subr.mxu0 0.0
  %1550 = vmatpush1.msra.mxu0 %v1524
  %1551 = vmatprep.subr.mxu0 0.0
  %1552 = vmatpush1.msra.mxu0 %v1525
  %1553 = vmatprep.subr.mxu0 0.0
  %1554 = vmatpush1.msra.mxu0 0.0
  %1555 = vmatprep.subr.mxu0 0.0
  %1556 = vmatpush1.msra.mxu0 0.0
  %1557 = vmatprep.subr.mxu0 0.0
  %1558 = vmatpush1.msra.mxu0 0.0
  %1559 = vmatprep.subr.mxu0 0.0
  %1560 = vmatpush1.msra.mxu0 0.0
  %1561 = vmatprep.subr.mxu0 0.0
  %1562 = vmatpush1.msra.mxu0 0.0
  %1563 = vmatprep.subr.mxu0 0.0
  %1564 = vmatpush1.msra.mxu0 0.0
  %1565 = vmatprep.subr.mxu0 0.0
  %1566 = vmatpush1.msra.mxu0 0.0
  %1567 = vmatprep.subr.mxu0 0.0
  %1568 = vmatpush1.msra.mxu0 0.0
  %1569 = vmatprep.subr.mxu0 0.0
  %1570 = vmatpush1.msra.mxu0 0.0
  %1571 = vmatprep.subr.mxu0 0.0
  %1572 = vmatpush1.msra.mxu0 0.0
  %1573 = vmatprep.subr.mxu0 0.0
  %1574 = vmatpush1.msra.mxu0 0.0
  %1575 = vmatprep.subr.mxu0 0.0
  %1576 = vmatpush1.msra.mxu0 0.0
  %1577 = vmatprep.subr.mxu0 0.0
  %1578 = vmatpush1.msra.mxu0 0.0
  %1579 = vmatprep.subr.mxu0 0.0
  %1580 = vmatpush1.msra.mxu0 0.0
  %1581 = vmatprep.subr.mxu0 0.0
  %1582 = vmatpush1.msra.mxu0 0.0
  %1583 = vmatprep.subr.mxu0 0.0
  %1584 = vmatpush1.msra.mxu0 0.0
  %1585 = vmatprep.subr.mxu0 0.0
  %1586 = vmatpush1.msra.mxu0 0.0
  %1587 = vmatprep.subr.mxu0 0.0
  %1588 = vmatpush1.msra.mxu0 0.0
  %1589 = vmatprep.subr.mxu0 0.0
  %1590 = vmatpush1.msra.mxu0 0.0
  %1591 = vmatprep.subr.mxu0 0.0
  %1592 = vmatpush1.msra.mxu0 0.0
  %1593 = vmatprep.subr.mxu0 0.0
  %1594 = vmatpush1.msra.mxu0 0.0
  %1595 = vmatprep.subr.mxu0 0.0
  %1596 = vmatpush1.msra.mxu0 0.0
  %1597 = vmatprep.subr.mxu0 0.0
  %1598 = vmatpush1.msra.mxu0 0.0
  %1599 = vmatprep.subr.mxu0 0.0
  %1600 = vmatpush1.msra.mxu0 0.0
  %1601 = vmatprep.subr.mxu0 0.0
  %1602 = vmatpush1.msra.mxu0 0.0
  %1603 = vmatprep.subr.mxu0 0.0
  %1604 = vmatpush1.msra.mxu0 0.0
  %1605 = vmatprep.subr.mxu0 0.0
  %1606 = vmatpush1.msra.mxu0 0.0
  %1607 = vmatprep.subr.mxu0 0.0
  %1608 = vmatpush1.msra.mxu0 0.0
  %1609 = vmatprep.mubr.f32.mxu0 0.0
  %1610 = vmatmul.mubr.f32.gmra.mrb[0].mxu0 %v1534
  %v1611 = vpop.f32.mrb[0].mxu0
  %v1612 = vadd.f32 %v1531, %v1611
  %v1613 = vpop.f32.mrb[0].mxu0
  %1614 = vmatprep.mubr.f32.mxu0 0.0
  %1615 = vmatmul.mubr.f32.gmra.mrb[0].mxu0 %v1537
  %v1616 = vpop.f32.mrb[0].mxu0
  %v1617 = vadd.f32 %v1531, %v1616
  %v1618 = vpop.f32.mrb[0].mxu0
  %1619 = vmatprep.mubr.f32.mxu0 0.0
  %1620 = vmatmul.mubr.f32.gmra.mrb[0].mxu0 %v1540
  %v1621 = vpop.f32.mrb[0].mxu0
  %v1622 = vadd.f32 %v1531, %v1621
  %v1623 = vpop.f32.mrb[0].mxu0
  %1624 = vmatprep.mubr.f32.mxu0 0.0
  %1625 = vmatmul.mubr.f32.gmra.mrb[0].mxu0 %v1543
  %v1626 = vpop.f32.mrb[0].mxu0
  %v1627 = vadd.f32 %v1531, %v1626
  %v1628 = vpop.f32.mrb[0].mxu0
  %1629 = vdwg.mxu0
  %vm1630 = vcmp.gt.f32.partialorder %v1612, 0.0
  %vm1631 = vcmp.gt.f32.partialorder %v1617, 0.0
  %vm1632 = vcmp.gt.f32.partialorder %v1622, 0.0
  %vm1633 = vcmp.gt.f32.partialorder %v1627, 0.0
  %v1634 = vmul.f32 %v1612, 0.01
  %v1635 = vmul.f32 %v1617, 0.01
  %v1636 = vmul.f32 %v1622, 0.01
  %v1637 = vmul.f32 %v1627, 0.01
  %v1638 = vsel %vm1630, %v1612, %v1634
  %v1639 = vsel %vm1631, %v1617, %v1635
  %v1640 = vsel %vm1632, %v1622, %v1636
  %v1641 = vsel %vm1633, %v1627, %v1637
  %1642 = vmatprep.subr.mxu0 0.0
  %1643 = vmatpush1.msra.mxu0 %v1638
  %1644 = vmatprep.subr.mxu0 0.0
  %1645 = vmatpush1.msra.mxu0 %v1639
  %1646 = vmatprep.subr.mxu0 0.0
  %1647 = vmatpush1.msra.mxu0 %v1640
  %1648 = vmatprep.subr.mxu0 0.0
  %1649 = vmatpush1.msra.mxu0 %v1641
  %1650 = vmatprep.subr.mxu0 0.0
  %1651 = vmatpush1.msra.mxu0 0.0
  %1652 = vmatprep.subr.mxu0 0.0
  %1653 = vmatpush1.msra.mxu0 0.0
  %1654 = vmatprep.subr.mxu0 0.0
  %1655 = vmatpush1.msra.mxu0 0.0
  %1656 = vmatprep.subr.mxu0 0.0
  %1657 = vmatpush1.msra.mxu0 0.0
  %1658 = vmatprep.subr.mxu0 0.0
  %1659 = vmatpush1.msra.mxu0 0.0
  %1660 = vmatprep.subr.mxu0 0.0
  %1661 = vmatpush1.msra.mxu0 0.0
  %1662 = vmatprep.subr.mxu0 0.0
  %1663 = vmatpush1.msra.mxu0 0.0
  %1664 = vmatprep.subr.mxu0 0.0
  %1665 = vmatpush1.msra.mxu0 0.0
  %1666 = vmatprep.subr.mxu0 0.0
  %1667 = vmatpush1.msra.mxu0 0.0
  %1668 = vmatprep.subr.mxu0 0.0
  %1669 = vmatpush1.msra.mxu0 0.0
  %1670 = vmatprep.subr.mxu0 0.0
  %1671 = vmatpush1.msra.mxu0 0.0
  %1672 = vmatprep.subr.mxu0 0.0
  %1673 = vmatpush1.msra.mxu0 0.0
  %1674 = vmatprep.subr.mxu0 0.0
  %1675 = vmatpush1.msra.mxu0 0.0
  %1676 = vmatprep.subr.mxu0 0.0
  %1677 = vmatpush1.msra.mxu0 0.0
  %1678 = vmatprep.subr.mxu0 0.0
  %1679 = vmatpush1.msra.mxu0 0.0
  %1680 = vmatprep.subr.mxu0 0.0
  %1681 = vmatpush1.msra.mxu0 0.0
  %1682 = vmatprep.subr.mxu0 0.0
  %1683 = vmatpush1.msra.mxu0 0.0
  %1684 = vmatprep.subr.mxu0 0.0
  %1685 = vmatpush1.msra.mxu0 0.0
  %1686 = vmatprep.subr.mxu0 0.0
  %1687 = vmatpush1.msra.mxu0 0.0
  %1688 = vmatprep.subr.mxu0 0.0
  %1689 = vmatpush1.msra.mxu0 0.0
  %1690 = vmatprep.subr.mxu0 0.0
  %1691 = vmatpush1.msra.mxu0 0.0
  %1692 = vmatprep.subr.mxu0 0.0
  %1693 = vmatpush1.msra.mxu0 0.0
  %1694 = vmatprep.subr.mxu0 0.0
  %1695 = vmatpush1.msra.mxu0 0.0
  %1696 = vmatprep.subr.mxu0 0.0
  %1697 = vmatpush1.msra.mxu0 0.0
  %1698 = vmatprep.subr.mxu0 0.0
  %1699 = vmatpush1.msra.mxu0 0.0
  %1700 = vmatprep.subr.mxu0 0.0
  %1701 = vmatpush1.msra.mxu0 0.0
  %1702 = vmatprep.subr.mxu0 0.0
  %1703 = vmatpush1.msra.mxu0 0.0
  %1704 = vmatprep.subr.mxu0 0.0
  %1705 = vmatpush1.msra.mxu0 0.0
  %1706 = vmatprep.mubr.f32.mxu0 0.0
  %1707 = vmatmul.mubr.f32.gmra.mrb[0].mxu0 %v1023
  %v1708 = vpop.f32.mrb[0].mxu0
  %v1709 = vadd.f32 0.0, %v1708
  %v1710 = vpop.f32.mrb[0].mxu0
  %1711 = vmatprep.mubr.f32.mxu0 0.0
  %1712 = vmatmul.mubr.f32.gmra.mrb[0].mxu0 %v1026
  %v1713 = vpop.f32.mrb[0].mxu0
  %v1714 = vadd.f32 0.0, %v1713
  %v1715 = vpop.f32.mrb[0].mxu0
  %1716 = vmatprep.mubr.f32.mxu0 0.0
  %1717 = vmatmul.mubr.f32.gmra.mrb[0].mxu0 %v1029
  %v1718 = vpop.f32.mrb[0].mxu0
  %v1719 = vadd.f32 0.0, %v1718
  %v1720 = vpop.f32.mrb[0].mxu0
  %1721 = vmatprep.mubr.f32.mxu0 0.0
  %1722 = vmatmul.mubr.f32.gmra.mrb[0].mxu0 %v1032
  %v1723 = vpop.f32.mrb[0].mxu0
  %v1724 = vadd.f32 0.0, %v1723
  %v1725 = vpop.f32.mrb[0].mxu0
  %1726 = vdwg.mxu0
  %v1731 = vrot.slane %v1709, 1
  %v1732 = vrot.slane %v1709, 2
  %v1733 = vrot.slane %v1709, 3
  %v1734 = vrot.slane %v1709, 4
  %v1735 = vrot.slane %v1709, 5
  %v1736 = vrot.slane %v1709, 6
  %v1737 = vrot.slane %v1709, 7
  %v1738 = vrot.slane %v1714, 1
  %v1739 = vrot.slane %v1714, 2
  %v1740 = vrot.slane %v1714, 3
  %v1741 = vrot.slane %v1714, 4
  %v1742 = vrot.slane %v1714, 5
  %v1743 = vrot.slane %v1714, 6
  %v1744 = vrot.slane %v1714, 7
  %v1745 = vrot.slane %v1719, 1
  %v1746 = vrot.slane %v1719, 2
  %v1747 = vrot.slane %v1719, 3
  %v1748 = vrot.slane %v1719, 4
  %v1749 = vrot.slane %v1719, 5
  %v1750 = vrot.slane %v1719, 6
  %v1751 = vrot.slane %v1719, 7
  %v1752 = vrot.slane %v1724, 1
  %v1753 = vrot.slane %v1724, 2
  %v1754 = vrot.slane %v1724, 3
  %v1755 = vrot.slane %v1724, 4
  %v1756 = vrot.slane %v1724, 5
  %v1757 = vrot.slane %v1724, 6
  %v1758 = vrot.slane %v1724, 7
  %v1791 = vadd.f32 %v1183, %v1709
  %v1792 = vadd.f32 %v1184, %v1731
  %v1793 = vadd.f32 %v1185, %v1732
  %v1794 = vadd.f32 %v1186, %v1733
  %v1795 = vadd.f32 %v1187, %v1734
  %v1796 = vadd.f32 %v1188, %v1735
  %v1797 = vadd.f32 %v1189, %v1736
  %v1798 = vadd.f32 %v1190, %v1737
  %v1799 = vadd.f32 %v1191, %v1714
  %v1800 = vadd.f32 %v1192, %v1738
  %v1801 = vadd.f32 %v1193, %v1739
  %v1802 = vadd.f32 %v1194, %v1740
  %v1803 = vadd.f32 %v1195, %v1741
  %v1804 = vadd.f32 %v1196, %v1742
  %v1805 = vadd.f32 %v1197, %v1743
  %v1806 = vadd.f32 %v1198, %v1744
  %v1807 = vadd.f32 %v1199, %v1719
  %v1808 = vadd.f32 %v1200, %v1745
  %v1809 = vadd.f32 %v1201, %v1746
  %v1810 = vadd.f32 %v1202, %v1747
  %v1811 = vadd.f32 %v1203, %v1748
  %v1812 = vadd.f32 %v1204, %v1749
  %v1813 = vadd.f32 %v1205, %v1750
  %v1814 = vadd.f32 %v1206, %v1751
  %v1815 = vadd.f32 %v1207, %v1724
  %v1816 = vadd.f32 %v1208, %v1752
  %v1817 = vadd.f32 %v1209, %v1753
  %v1818 = vadd.f32 %v1210, %v1754
  %v1819 = vadd.f32 %v1211, %v1755
  %v1820 = vadd.f32 %v1212, %v1756
  %v1821 = vadd.f32 %v1213, %v1757
  %v1822 = vadd.f32 %v1214, %v1758
  %v1823 = vld [vmem:[%s11] sm:$0xff]
  %v1824 = vld [vmem:[%s11 + $0x8] sm:$0xff]
  %v1825 = vld [vmem:[%s11 + $0x10] sm:$0xff]
  %v1826 = vld [vmem:[%s11 + $0x18] sm:$0xff]
  %v1827 = vld [vmem:[%s11 + $0x20] sm:$0xff]
  %v1828 = vld [vmem:[%s11 + $0x28] sm:$0xff]
  %v1829 = vld [vmem:[%s11 + $0x30] sm:$0xff]
  %v1830 = vld [vmem:[%s11 + $0x38] sm:$0xff]
  %v1831 = vld [vmem:[%s11 + $0x40] sm:$0xff]
  %v1832 = vld [vmem:[%s11 + $0x48] sm:$0xff]
  %v1833 = vld [vmem:[%s11 + $0x50] sm:$0xff]
  %v1834 = vld [vmem:[%s11 + $0x58] sm:$0xff]
  %v1835 = vld [vmem:[%s11 + $0x60] sm:$0xff]
  %v1836 = vld [vmem:[%s11 + $0x68] sm:$0xff]
  %v1837 = vld [vmem:[%s11 + $0x70] sm:$0xff]
  %v1838 = vld [vmem:[%s11 + $0x78] sm:$0xff]
  %v1871 = vrot.slane %v1792, 7
  %v1872 = vsel %vm536, %v1871, %v1791
  %v1873 = vrot.slane %v1793, 6
  %v1874 = vsel %vm538, %v1873, %v1872
  %v1875 = vrot.slane %v1794, 5
  %v1876 = vsel %vm540, %v1875, %v1874
  %v1877 = vrot.slane %v1795, 4
  %v1878 = vsel %vm542, %v1877, %v1876
  %v1879 = vrot.slane %v1796, 3
  %v1880 = vsel %vm544, %v1879, %v1878
  %v1881 = vrot.slane %v1797, 2
  %v1882 = vsel %vm546, %v1881, %v1880
  %v1883 = vrot.slane %v1798, 1
  %v1884 = vsel %vm548, %v1883, %v1882
  %v1885 = vrot.slane %v1800, 7
  %v1886 = vsel %vm536, %v1885, %v1799
  %v1887 = vrot.slane %v1801, 6
  %v1888 = vsel %vm538, %v1887, %v1886
  %v1889 = vrot.slane %v1802, 5
  %v1890 = vsel %vm540, %v1889, %v1888
  %v1891 = vrot.slane %v1803, 4
  %v1892 = vsel %vm542, %v1891, %v1890
  %v1893 = vrot.slane %v1804, 3
  %v1894 = vsel %vm544, %v1893, %v1892
  %v1895 = vrot.slane %v1805, 2
  %v1896 = vsel %vm546, %v1895, %v1894
  %v1897 = vrot.slane %v1806, 1
  %v1898 = vsel %vm548, %v1897, %v1896
  %v1899 = vrot.slane %v1808, 7
  %v1900 = vsel %vm536, %v1899, %v1807
  %v1901 = vrot.slane %v1809, 6
  %v1902 = vsel %vm538, %v1901, %v1900
  %v1903 = vrot.slane %v1810, 5
  %v1904 = vsel %vm540, %v1903, %v1902
  %v1905 = vrot.slane %v1811, 4
  %v1906 = vsel %vm542, %v1905, %v1904
  %v1907 = vrot.slane %v1812, 3
  %v1908 = vsel %vm544, %v1907, %v1906
  %v1909 = vrot.slane %v1813, 2
  %v1910 = vsel %vm546, %v1909, %v1908
  %v1911 = vrot.slane %v1814, 1
  %v1912 = vsel %vm548, %v1911, %v1910
  %v1913 = vrot.slane %v1816, 7
  %v1914 = vsel %vm536, %v1913, %v1815
  %v1915 = vrot.slane %v1817, 6
  %v1916 = vsel %vm538, %v1915, %v1914
  %v1917 = vrot.slane %v1818, 5
  %v1918 = vsel %vm540, %v1917, %v1916
  %v1919 = vrot.slane %v1819, 4
  %v1920 = vsel %vm542, %v1919, %v1918
  %v1921 = vrot.slane %v1820, 3
  %v1922 = vsel %vm544, %v1921, %v1920
  %v1923 = vrot.slane %v1821, 2
  %v1924 = vsel %vm546, %v1923, %v1922
  %v1925 = vrot.slane %v1822, 1
  %v1926 = vsel %vm548, %v1925, %v1924
  %v1932 = vsel %vm171, %v1823, 0
  %v1935 = vsel %vm171, %v1824, 0
  %v1938 = vsel %vm171, %v1825, 0
  %v1941 = vsel %vm171, %v1826, 0
  %v1944 = vsel %vm171, %v1827, 0
  %v1947 = vsel %vm171, %v1828, 0
  %v1950 = vsel %vm171, %v1829, 0
  %v1953 = vsel %vm171, %v1830, 0
  %v1956 = vsel %vm171, %v1831, 0
  %v1959 = vsel %vm171, %v1832, 0
  %v1962 = vsel %vm171, %v1833, 0
  %v1965 = vsel %vm171, %v1834, 0
  %v1968 = vsel %vm171, %v1835, 0
  %v1971 = vsel %vm171, %v1836, 0
  %v1974 = vsel %vm171, %v1837, 0
  %v1977 = vsel %vm171, %v1838, 0
  %1979 = vmatprep.subr.mxu0 0.0
  %1980 = vmatpush1.msra.mxu0 %v1884
  %1981 = vmatprep.subr.mxu0 0.0
  %1982 = vmatpush1.msra.mxu0 %v1898
  %1983 = vmatprep.subr.mxu0 0.0
  %1984 = vmatpush1.msra.mxu0 %v1912
  %1985 = vmatprep.subr.mxu0 0.0
  %1986 = vmatpush1.msra.mxu0 %v1926
  %1987 = vmatprep.subr.mxu0 0.0
  %1988 = vmatpush1.msra.mxu0 0.0
  %1989 = vmatprep.subr.mxu0 0.0
  %1990 = vmatpush1.msra.mxu0 0.0
  %1991 = vmatprep.subr.mxu0 0.0
  %1992 = vmatpush1.msra.mxu0 0.0
  %1993 = vmatprep.subr.mxu0 0.0
  %1994 = vmatpush1.msra.mxu0 0.0
  %1995 = vmatprep.subr.mxu0 0.0
  %1996 = vmatpush1.msra.mxu0 0.0
  %1997 = vmatprep.subr.mxu0 0.0
  %1998 = vmatpush1.msra.mxu0 0.0
  %1999 = vmatprep.subr.mxu0 0.0
  %2000 = vmatpush1.msra.mxu0 0.0
  %2001 = vmatprep.subr.mxu0 0.0
  %2002 = vmatpush1.msra.mxu0 0.0
  %2003 = vmatprep.subr.mxu0 0.0
  %2004 = vmatpush1.msra.mxu0 0.0
  %2005 = vmatprep.subr.mxu0 0.0
  %2006 = vmatpush1.msra.mxu0 0.0
  %2007 = vmatprep.subr.mxu0 0.0
  %2008 = vmatpush1.msra.mxu0 0.0
  %2009 = vmatprep.subr.mxu0 0.0
  %2010 = vmatpush1.msra.mxu0 0.0
  %2011 = vmatprep.subr.mxu0 0.0
  %2012 = vmatpush1.msra.mxu0 0.0
  %2013 = vmatprep.subr.mxu0 0.0
  %2014 = vmatpush1.msra.mxu0 0.0
  %2015 = vmatprep.subr.mxu0 0.0
  %2016 = vmatpush1.msra.mxu0 0.0
  %2017 = vmatprep.subr.mxu0 0.0
  %2018 = vmatpush1.msra.mxu0 0.0
  %2019 = vmatprep.subr.mxu0 0.0
  %2020 = vmatpush1.msra.mxu0 0.0
  %2021 = vmatprep.subr.mxu0 0.0
  %2022 = vmatpush1.msra.mxu0 0.0
  %2023 = vmatprep.subr.mxu0 0.0
  %2024 = vmatpush1.msra.mxu0 0.0
  %2025 = vmatprep.subr.mxu0 0.0
  %2026 = vmatpush1.msra.mxu0 0.0
  %2027 = vmatprep.subr.mxu0 0.0
  %2028 = vmatpush1.msra.mxu0 0.0
  %2029 = vmatprep.subr.mxu0 0.0
  %2030 = vmatpush1.msra.mxu0 0.0
  %2031 = vmatprep.subr.mxu0 0.0
  %2032 = vmatpush1.msra.mxu0 0.0
  %2033 = vmatprep.subr.mxu0 0.0
  %2034 = vmatpush1.msra.mxu0 0.0
  %2035 = vmatprep.subr.mxu0 0.0
  %2036 = vmatpush1.msra.mxu0 0.0
  %2037 = vmatprep.subr.mxu0 0.0
  %2038 = vmatpush1.msra.mxu0 0.0
  %2039 = vmatprep.subr.mxu0 0.0
  %2040 = vmatpush1.msra.mxu0 0.0
  %2041 = vmatprep.subr.mxu0 0.0
  %2042 = vmatpush1.msra.mxu0 0.0
  %2043 = vmatprep.mubr.f32.mxu0 0.0
  %2044 = vmatmul.mubr.f32.gmra.mrb[0].mxu0 %v1932
  %v2045 = vpop.f32.mrb[0].mxu0
  %v2046 = vadd.f32 0.0, %v2045
  %v2047 = vpop.f32.mrb[0].mxu0
  %2048 = vmatprep.mubr.f32.mxu0 0.0
  %2049 = vmatmul.mubr.f32.gmra.mrb[0].mxu0 %v1935
  %v2050 = vpop.f32.mrb[0].mxu0
  %v2051 = vadd.f32 0.0, %v2050
  %v2052 = vpop.f32.mrb[0].mxu0
  %2053 = vmatprep.mubr.f32.mxu0 0.0
  %2054 = vmatmul.mubr.f32.gmra.mrb[0].mxu0 %v1938
  %v2055 = vpop.f32.mrb[0].mxu0
  %v2056 = vadd.f32 0.0, %v2055
  %v2057 = vpop.f32.mrb[0].mxu0
  %2058 = vmatprep.mubr.f32.mxu0 0.0
  %2059 = vmatmul.mubr.f32.gmra.mrb[0].mxu0 %v1941
  %v2060 = vpop.f32.mrb[0].mxu0
  %v2061 = vadd.f32 0.0, %v2060
  %v2062 = vpop.f32.mrb[0].mxu0
  %2063 = vmatprep.mubr.f32.mxu0 0.0
  %2064 = vmatmul.mubr.f32.gmra.mrb[0].mxu0 %v1944
  %v2065 = vpop.f32.mrb[0].mxu0
  %v2066 = vadd.f32 0.0, %v2065
  %v2067 = vpop.f32.mrb[0].mxu0
  %2068 = vmatprep.mubr.f32.mxu0 0.0
  %2069 = vmatmul.mubr.f32.gmra.mrb[0].mxu0 %v1947
  %v2070 = vpop.f32.mrb[0].mxu0
  %v2071 = vadd.f32 0.0, %v2070
  %v2072 = vpop.f32.mrb[0].mxu0
  %2073 = vmatprep.mubr.f32.mxu0 0.0
  %2074 = vmatmul.mubr.f32.gmra.mrb[0].mxu0 %v1950
  %v2075 = vpop.f32.mrb[0].mxu0
  %v2076 = vadd.f32 0.0, %v2075
  %v2077 = vpop.f32.mrb[0].mxu0
  %2078 = vmatprep.mubr.f32.mxu0 0.0
  %2079 = vmatmul.mubr.f32.gmra.mrb[0].mxu0 %v1953
  %v2080 = vpop.f32.mrb[0].mxu0
  %v2081 = vadd.f32 0.0, %v2080
  %v2082 = vpop.f32.mrb[0].mxu0
  %2083 = vmatprep.mubr.f32.mxu0 0.0
  %2084 = vmatmul.mubr.f32.gmra.mrb[0].mxu0 %v1956
  %v2085 = vpop.f32.mrb[0].mxu0
  %v2086 = vadd.f32 0.0, %v2085
  %v2087 = vpop.f32.mrb[0].mxu0
  %2088 = vmatprep.mubr.f32.mxu0 0.0
  %2089 = vmatmul.mubr.f32.gmra.mrb[0].mxu0 %v1959
  %v2090 = vpop.f32.mrb[0].mxu0
  %v2091 = vadd.f32 0.0, %v2090
  %v2092 = vpop.f32.mrb[0].mxu0
  %2093 = vmatprep.mubr.f32.mxu0 0.0
  %2094 = vmatmul.mubr.f32.gmra.mrb[0].mxu0 %v1962
  %v2095 = vpop.f32.mrb[0].mxu0
  %v2096 = vadd.f32 0.0, %v2095
  %v2097 = vpop.f32.mrb[0].mxu0
  %2098 = vmatprep.mubr.f32.mxu0 0.0
  %2099 = vmatmul.mubr.f32.gmra.mrb[0].mxu0 %v1965
  %v2100 = vpop.f32.mrb[0].mxu0
  %v2101 = vadd.f32 0.0, %v2100
  %v2102 = vpop.f32.mrb[0].mxu0
  %2103 = vmatprep.mubr.f32.mxu0 0.0
  %2104 = vmatmul.mubr.f32.gmra.mrb[0].mxu0 %v1968
  %v2105 = vpop.f32.mrb[0].mxu0
  %v2106 = vadd.f32 0.0, %v2105
  %v2107 = vpop.f32.mrb[0].mxu0
  %2108 = vmatprep.mubr.f32.mxu0 0.0
  %2109 = vmatmul.mubr.f32.gmra.mrb[0].mxu0 %v1971
  %v2110 = vpop.f32.mrb[0].mxu0
  %v2111 = vadd.f32 0.0, %v2110
  %v2112 = vpop.f32.mrb[0].mxu0
  %2113 = vmatprep.mubr.f32.mxu0 0.0
  %2114 = vmatmul.mubr.f32.gmra.mrb[0].mxu0 %v1974
  %v2115 = vpop.f32.mrb[0].mxu0
  %v2116 = vadd.f32 0.0, %v2115
  %v2117 = vpop.f32.mrb[0].mxu0
  %2118 = vmatprep.mubr.f32.mxu0 0.0
  %2119 = vmatmul.mubr.f32.gmra.mrb[0].mxu0 %v1977
  %v2120 = vpop.f32.mrb[0].mxu0
  %v2121 = vadd.f32 0.0, %v2120
  %v2122 = vpop.f32.mrb[0].mxu0
  %2123 = vdwg.mxu0
  %v2124 = vld [vmem:[%s39] sm:$0xff]
  %v2125 = vld [vmem:[%s39 + $0x8] sm:$0xff]
  %v2126 = vld [vmem:[%s39 + $0x10] sm:$0xff]
  %v2127 = vld [vmem:[%s39 + $0x18] sm:$0xff]
  %v2128 = vld [vmem:[%s41] sm:$0xff]
  %v2129 = vld [vmem:[%s41 + $0x8] sm:$0xff]
  %v2130 = vld [vmem:[%s41 + $0x10] sm:$0xff]
  %v2131 = vld [vmem:[%s41 + $0x18] sm:$0xff]
  %v2133 = vsel %vm171, %v2086, 0
  %v2136 = vsel %vm171, %v2091, 0
  %v2139 = vsel %vm171, %v2096, 0
  %v2142 = vsel %vm171, %v2101, 0
  %v2145 = vsel %vm171, %v2106, 0
  %v2148 = vsel %vm171, %v2111, 0
  %v2151 = vsel %vm171, %v2116, 0
  %v2154 = vsel %vm171, %v2121, 0
  %2156 = vmatprep.subr.mxu0 0.0
  %2157 = vmatpush1.msra.mxu0 %v2128
  %2158 = vmatprep.subr.mxu0 0.0
  %2159 = vmatpush1.msra.mxu0 %v2129
  %2160 = vmatprep.subr.mxu0 0.0
  %2161 = vmatpush1.msra.mxu0 %v2130
  %2162 = vmatprep.subr.mxu0 0.0
  %2163 = vmatpush1.msra.mxu0 %v2131
  %2164 = vmatprep.subr.mxu0 0.0
  %2165 = vmatpush1.msra.mxu0 0.0
  %2166 = vmatprep.subr.mxu0 0.0
  %2167 = vmatpush1.msra.mxu0 0.0
  %2168 = vmatprep.subr.mxu0 0.0
  %2169 = vmatpush1.msra.mxu0 0.0
  %2170 = vmatprep.subr.mxu0 0.0
  %2171 = vmatpush1.msra.mxu0 0.0
  %2172 = vmatprep.subr.mxu0 0.0
  %2173 = vmatpush1.msra.mxu0 0.0
  %2174 = vmatprep.subr.mxu0 0.0
  %2175 = vmatpush1.msra.mxu0 0.0
  %2176 = vmatprep.subr.mxu0 0.0
  %2177 = vmatpush1.msra.mxu0 0.0
  %2178 = vmatprep.subr.mxu0 0.0
  %2179 = vmatpush1.msra.mxu0 0.0
  %2180 = vmatprep.subr.mxu0 0.0
  %2181 = vmatpush1.msra.mxu0 0.0
  %2182 = vmatprep.subr.mxu0 0.0
  %2183 = vmatpush1.msra.mxu0 0.0
  %2184 = vmatprep.subr.mxu0 0.0
  %2185 = vmatpush1.msra.mxu0 0.0
  %2186 = vmatprep.subr.mxu0 0.0
  %2187 = vmatpush1.msra.mxu0 0.0
  %2188 = vmatprep.subr.mxu0 0.0
  %2189 = vmatpush1.msra.mxu0 0.0
  %2190 = vmatprep.subr.mxu0 0.0
  %2191 = vmatpush1.msra.mxu0 0.0
  %2192 = vmatprep.subr.mxu0 0.0
  %2193 = vmatpush1.msra.mxu0 0.0
  %2194 = vmatprep.subr.mxu0 0.0
  %2195 = vmatpush1.msra.mxu0 0.0
  %2196 = vmatprep.subr.mxu0 0.0
  %2197 = vmatpush1.msra.mxu0 0.0
  %2198 = vmatprep.subr.mxu0 0.0
  %2199 = vmatpush1.msra.mxu0 0.0
  %2200 = vmatprep.subr.mxu0 0.0
  %2201 = vmatpush1.msra.mxu0 0.0
  %2202 = vmatprep.subr.mxu0 0.0
  %2203 = vmatpush1.msra.mxu0 0.0
  %2204 = vmatprep.subr.mxu0 0.0
  %2205 = vmatpush1.msra.mxu0 0.0
  %2206 = vmatprep.subr.mxu0 0.0
  %2207 = vmatpush1.msra.mxu0 0.0
  %2208 = vmatprep.subr.mxu0 0.0
  %2209 = vmatpush1.msra.mxu0 0.0
  %2210 = vmatprep.subr.mxu0 0.0
  %2211 = vmatpush1.msra.mxu0 0.0
  %2212 = vmatprep.subr.mxu0 0.0
  %2213 = vmatpush1.msra.mxu0 0.0
  %2214 = vmatprep.subr.mxu0 0.0
  %2215 = vmatpush1.msra.mxu0 0.0
  %2216 = vmatprep.subr.mxu0 0.0
  %2217 = vmatpush1.msra.mxu0 0.0
  %2218 = vmatprep.subr.mxu0 0.0
  %2219 = vmatpush1.msra.mxu0 0.0
  %2220 = vmatprep.mubr.f32.mxu0 0.0
  %2221 = vmatmul.mubr.f32.gmra.mrb[0].mxu0 %v2133
  %v2222 = vpop.f32.mrb[0].mxu0
  %v2223 = vadd.f32 0.0, %v2222
  %v2224 = vpop.f32.mrb[0].mxu0
  %2225 = vmatprep.mubr.f32.mxu0 0.0
  %2226 = vmatmul.mubr.f32.gmra.mrb[0].mxu0 %v2136
  %v2227 = vpop.f32.mrb[0].mxu0
  %v2228 = vadd.f32 0.0, %v2227
  %v2229 = vpop.f32.mrb[0].mxu0
  %2230 = vmatprep.mubr.f32.mxu0 0.0
  %2231 = vmatmul.mubr.f32.gmra.mrb[0].mxu0 %v2139
  %v2232 = vpop.f32.mrb[0].mxu0
  %v2233 = vadd.f32 0.0, %v2232
  %v2234 = vpop.f32.mrb[0].mxu0
  %2235 = vmatprep.mubr.f32.mxu0 0.0
  %2236 = vmatmul.mubr.f32.gmra.mrb[0].mxu0 %v2142
  %v2237 = vpop.f32.mrb[0].mxu0
  %v2238 = vadd.f32 0.0, %v2237
  %v2239 = vpop.f32.mrb[0].mxu0
  %2240 = vmatprep.mubr.f32.mxu0 0.0
  %2241 = vmatmul.mubr.f32.gmra.mrb[0].mxu0 %v2145
  %v2242 = vpop.f32.mrb[0].mxu0
  %v2243 = vadd.f32 0.0, %v2242
  %v2244 = vpop.f32.mrb[0].mxu0
  %2245 = vmatprep.mubr.f32.mxu0 0.0
  %2246 = vmatmul.mubr.f32.gmra.mrb[0].mxu0 %v2148
  %v2247 = vpop.f32.mrb[0].mxu0
  %v2248 = vadd.f32 0.0, %v2247
  %v2249 = vpop.f32.mrb[0].mxu0
  %2250 = vmatprep.mubr.f32.mxu0 0.0
  %2251 = vmatmul.mubr.f32.gmra.mrb[0].mxu0 %v2151
  %v2252 = vpop.f32.mrb[0].mxu0
  %v2253 = vadd.f32 0.0, %v2252
  %v2254 = vpop.f32.mrb[0].mxu0
  %2255 = vmatprep.mubr.f32.mxu0 0.0
  %2256 = vmatmul.mubr.f32.gmra.mrb[0].mxu0 %v2154
  %v2257 = vpop.f32.mrb[0].mxu0
  %v2258 = vadd.f32 0.0, %v2257
  %v2259 = vpop.f32.mrb[0].mxu0
  %2260 = vdwg.mxu0
  %v2262 = vsel %vm171, %v2046, 0
  %v2265 = vsel %vm171, %v2051, 0
  %v2268 = vsel %vm171, %v2056, 0
  %v2271 = vsel %vm171, %v2061, 0
  %v2274 = vsel %vm171, %v2066, 0
  %v2277 = vsel %vm171, %v2071, 0
  %v2280 = vsel %vm171, %v2076, 0
  %v2283 = vsel %vm171, %v2081, 0
  %2285 = vmatprep.subr.mxu0 0.0
  %2286 = vmatpush1.msra.mxu0 %v2124
  %2287 = vmatprep.subr.mxu0 0.0
  %2288 = vmatpush1.msra.mxu0 %v2125
  %2289 = vmatprep.subr.mxu0 0.0
  %2290 = vmatpush1.msra.mxu0 %v2126
  %2291 = vmatprep.subr.mxu0 0.0
  %2292 = vmatpush1.msra.mxu0 %v2127
  %2293 = vmatprep.subr.mxu0 0.0
  %2294 = vmatpush1.msra.mxu0 0.0
  %2295 = vmatprep.subr.mxu0 0.0
  %2296 = vmatpush1.msra.mxu0 0.0
  %2297 = vmatprep.subr.mxu0 0.0
  %2298 = vmatpush1.msra.mxu0 0.0
  %2299 = vmatprep.subr.mxu0 0.0
  %2300 = vmatpush1.msra.mxu0 0.0
  %2301 = vmatprep.subr.mxu0 0.0
  %2302 = vmatpush1.msra.mxu0 0.0
  %2303 = vmatprep.subr.mxu0 0.0
  %2304 = vmatpush1.msra.mxu0 0.0
  %2305 = vmatprep.subr.mxu0 0.0
  %2306 = vmatpush1.msra.mxu0 0.0
  %2307 = vmatprep.subr.mxu0 0.0
  %2308 = vmatpush1.msra.mxu0 0.0
  %2309 = vmatprep.subr.mxu0 0.0
  %2310 = vmatpush1.msra.mxu0 0.0
  %2311 = vmatprep.subr.mxu0 0.0
  %2312 = vmatpush1.msra.mxu0 0.0
  %2313 = vmatprep.subr.mxu0 0.0
  %2314 = vmatpush1.msra.mxu0 0.0
  %2315 = vmatprep.subr.mxu0 0.0
  %2316 = vmatpush1.msra.mxu0 0.0
  %2317 = vmatprep.subr.mxu0 0.0
  %2318 = vmatpush1.msra.mxu0 0.0
  %2319 = vmatprep.subr.mxu0 0.0
  %2320 = vmatpush1.msra.mxu0 0.0
  %2321 = vmatprep.subr.mxu0 0.0
  %2322 = vmatpush1.msra.mxu0 0.0
  %2323 = vmatprep.subr.mxu0 0.0
  %2324 = vmatpush1.msra.mxu0 0.0
  %2325 = vmatprep.subr.mxu0 0.0
  %2326 = vmatpush1.msra.mxu0 0.0
  %2327 = vmatprep.subr.mxu0 0.0
  %2328 = vmatpush1.msra.mxu0 0.0
  %2329 = vmatprep.subr.mxu0 0.0
  %2330 = vmatpush1.msra.mxu0 0.0
  %2331 = vmatprep.subr.mxu0 0.0
  %2332 = vmatpush1.msra.mxu0 0.0
  %2333 = vmatprep.subr.mxu0 0.0
  %2334 = vmatpush1.msra.mxu0 0.0
  %2335 = vmatprep.subr.mxu0 0.0
  %2336 = vmatpush1.msra.mxu0 0.0
  %2337 = vmatprep.subr.mxu0 0.0
  %2338 = vmatpush1.msra.mxu0 0.0
  %2339 = vmatprep.subr.mxu0 0.0
  %2340 = vmatpush1.msra.mxu0 0.0
  %2341 = vmatprep.subr.mxu0 0.0
  %2342 = vmatpush1.msra.mxu0 0.0
  %2343 = vmatprep.subr.mxu0 0.0
  %2344 = vmatpush1.msra.mxu0 0.0
  %2345 = vmatprep.subr.mxu0 0.0
  %2346 = vmatpush1.msra.mxu0 0.0
  %2347 = vmatprep.subr.mxu0 0.0
  %2348 = vmatpush1.msra.mxu0 0.0
  %2349 = vmatprep.mubr.f32.mxu0 0.0
  %2350 = vmatmul.mubr.f32.gmra.mrb[0].mxu0 %v2262
  %v2351 = vpop.f32.mrb[0].mxu0
  %v2352 = vadd.f32 %v2223, %v2351
  %v2353 = vpop.f32.mrb[0].mxu0
  %2354 = vmatprep.mubr.f32.mxu0 0.0
  %2355 = vmatmul.mubr.f32.gmra.mrb[0].mxu0 %v2265
  %v2356 = vpop.f32.mrb[0].mxu0
  %v2357 = vadd.f32 %v2228, %v2356
  %v2358 = vpop.f32.mrb[0].mxu0
  %2359 = vmatprep.mubr.f32.mxu0 0.0
  %2360 = vmatmul.mubr.f32.gmra.mrb[0].mxu0 %v2268
  %v2361 = vpop.f32.mrb[0].mxu0
  %v2362 = vadd.f32 %v2233, %v2361
  %v2363 = vpop.f32.mrb[0].mxu0
  %2364 = vmatprep.mubr.f32.mxu0 0.0
  %2365 = vmatmul.mubr.f32.gmra.mrb[0].mxu0 %v2271
  %v2366 = vpop.f32.mrb[0].mxu0
  %v2367 = vadd.f32 %v2238, %v2366
  %v2368 = vpop.f32.mrb[0].mxu0
  %2369 = vmatprep.mubr.f32.mxu0 0.0
  %2370 = vmatmul.mubr.f32.gmra.mrb[0].mxu0 %v2274
  %v2371 = vpop.f32.mrb[0].mxu0
  %v2372 = vadd.f32 %v2243, %v2371
  %v2373 = vpop.f32.mrb[0].mxu0
  %2374 = vmatprep.mubr.f32.mxu0 0.0
  %2375 = vmatmul.mubr.f32.gmra.mrb[0].mxu0 %v2277
  %v2376 = vpop.f32.mrb[0].mxu0
  %v2377 = vadd.f32 %v2248, %v2376
  %v2378 = vpop.f32.mrb[0].mxu0
  %2379 = vmatprep.mubr.f32.mxu0 0.0
  %2380 = vmatmul.mubr.f32.gmra.mrb[0].mxu0 %v2280
  %v2381 = vpop.f32.mrb[0].mxu0
  %v2382 = vadd.f32 %v2253, %v2381
  %v2383 = vpop.f32.mrb[0].mxu0
  %2384 = vmatprep.mubr.f32.mxu0 0.0
  %2385 = vmatmul.mubr.f32.gmra.mrb[0].mxu0 %v2283
  %v2386 = vpop.f32.mrb[0].mxu0
  %v2387 = vadd.f32 %v2258, %v2386
  %v2388 = vpop.f32.mrb[0].mxu0
  %2389 = vdwg.mxu0
  %v2390 = vld [vmem:[%s43] sm:$0x1]
  %v2392 = vlaneseq
  %v2393 = vshrl.u32 %v2392, 7
  %v2394 = vsub.s32 0, %v2393
  %v2395 = vrot.slane %v2390, %v2394
  %v2397 = vadd.f32 %v2352, %v2395
  %v2398 = vadd.f32 %v2357, %v2395
  %v2399 = vadd.f32 %v2362, %v2395
  %v2400 = vadd.f32 %v2367, %v2395
  %v2401 = vadd.f32 %v2372, %v2395
  %v2402 = vadd.f32 %v2377, %v2395
  %v2403 = vadd.f32 %v2382, %v2395
  %v2404 = vadd.f32 %v2387, %v2395
  %vm2405 = vcmp.gt.f32.partialorder %v2397, 0.0
  %vm2406 = vcmp.gt.f32.partialorder %v2398, 0.0
  %vm2407 = vcmp.gt.f32.partialorder %v2399, 0.0
  %vm2408 = vcmp.gt.f32.partialorder %v2400, 0.0
  %vm2409 = vcmp.gt.f32.partialorder %v2401, 0.0
  %vm2410 = vcmp.gt.f32.partialorder %v2402, 0.0
  %vm2411 = vcmp.gt.f32.partialorder %v2403, 0.0
  %vm2412 = vcmp.gt.f32.partialorder %v2404, 0.0
  %v2413 = vmul.f32 %v2397, 0.01
  %v2414 = vmul.f32 %v2398, 0.01
  %v2415 = vmul.f32 %v2399, 0.01
  %v2416 = vmul.f32 %v2400, 0.01
  %v2417 = vmul.f32 %v2401, 0.01
  %v2418 = vmul.f32 %v2402, 0.01
  %v2419 = vmul.f32 %v2403, 0.01
  %v2420 = vmul.f32 %v2404, 0.01
  %v2421 = vsel %vm2405, %v2397, %v2413
  %v2422 = vsel %vm2406, %v2398, %v2414
  %v2423 = vsel %vm2407, %v2399, %v2415
  %v2424 = vsel %vm2408, %v2400, %v2416
  %v2425 = vsel %vm2409, %v2401, %v2417
  %v2426 = vsel %vm2410, %v2402, %v2418
  %v2427 = vsel %vm2411, %v2403, %v2419
  %v2428 = vsel %vm2412, %v2404, %v2420
  %v2429 = vld [vmem:[%s45] sm:$0xff]
  %v2430 = vld [vmem:[%s45 + $0x8] sm:$0xff]
  %v2431 = vld [vmem:[%s45 + $0x10] sm:$0xff]
  %v2432 = vld [vmem:[%s45 + $0x18] sm:$0xff]
  %v2433 = vld [vmem:[#allocation2] sm:$0x1]
  %v2435 = vlaneseq
  %v2436 = vshrl.u32 %v2435, 7
  %v2437 = vsub.s32 0, %v2436
  %v2438 = vrot.slane %v2433, %v2437
  %v2441 = vsel %vm171, %v2421, 0
  %v2444 = vsel %vm171, %v2422, 0
  %v2447 = vsel %vm171, %v2423, 0
  %v2450 = vsel %vm171, %v2424, 0
  %v2453 = vsel %vm171, %v2425, 0
  %v2456 = vsel %vm171, %v2426, 0
  %v2459 = vsel %vm171, %v2427, 0
  %v2462 = vsel %vm171, %v2428, 0
  %2464 = vmatprep.subr.mxu0 0.0
  %2465 = vmatpush1.msra.mxu0 %v2429
  %2466 = vmatprep.subr.mxu0 0.0
  %2467 = vmatpush1.msra.mxu0 %v2430
  %2468 = vmatprep.subr.mxu0 0.0
  %2469 = vmatpush1.msra.mxu0 %v2431
  %2470 = vmatprep.subr.mxu0 0.0
  %2471 = vmatpush1.msra.mxu0 %v2432
  %2472 = vmatprep.subr.mxu0 0.0
  %2473 = vmatpush1.msra.mxu0 0.0
  %2474 = vmatprep.subr.mxu0 0.0
  %2475 = vmatpush1.msra.mxu0 0.0
  %2476 = vmatprep.subr.mxu0 0.0
  %2477 = vmatpush1.msra.mxu0 0.0
  %2478 = vmatprep.subr.mxu0 0.0
  %2479 = vmatpush1.msra.mxu0 0.0
  %2480 = vmatprep.subr.mxu0 0.0
  %2481 = vmatpush1.msra.mxu0 0.0
  %2482 = vmatprep.subr.mxu0 0.0
  %2483 = vmatpush1.msra.mxu0 0.0
  %2484 = vmatprep.subr.mxu0 0.0
  %2485 = vmatpush1.msra.mxu0 0.0
  %2486 = vmatprep.subr.mxu0 0.0
  %2487 = vmatpush1.msra.mxu0 0.0
  %2488 = vmatprep.subr.mxu0 0.0
  %2489 = vmatpush1.msra.mxu0 0.0
  %2490 = vmatprep.subr.mxu0 0.0
  %2491 = vmatpush1.msra.mxu0 0.0
  %2492 = vmatprep.subr.mxu0 0.0
  %2493 = vmatpush1.msra.mxu0 0.0
  %2494 = vmatprep.subr.mxu0 0.0
  %2495 = vmatpush1.msra.mxu0 0.0
  %2496 = vmatprep.subr.mxu0 0.0
  %2497 = vmatpush1.msra.mxu0 0.0
  %2498 = vmatprep.subr.mxu0 0.0
  %2499 = vmatpush1.msra.mxu0 0.0
  %2500 = vmatprep.subr.mxu0 0.0
  %2501 = vmatpush1.msra.mxu0 0.0
  %2502 = vmatprep.subr.mxu0 0.0
  %2503 = vmatpush1.msra.mxu0 0.0
  %2504 = vmatprep.subr.mxu0 0.0
  %2505 = vmatpush1.msra.mxu0 0.0
  %2506 = vmatprep.subr.mxu0 0.0
  %2507 = vmatpush1.msra.mxu0 0.0
  %2508 = vmatprep.subr.mxu0 0.0
  %2509 = vmatpush1.msra.mxu0 0.0
  %2510 = vmatprep.subr.mxu0 0.0
  %2511 = vmatpush1.msra.mxu0 0.0
  %2512 = vmatprep.subr.mxu0 0.0
  %2513 = vmatpush1.msra.mxu0 0.0
  %2514 = vmatprep.subr.mxu0 0.0
  %2515 = vmatpush1.msra.mxu0 0.0
  %2516 = vmatprep.subr.mxu0 0.0
  %2517 = vmatpush1.msra.mxu0 0.0
  %2518 = vmatprep.subr.mxu0 0.0
  %2519 = vmatpush1.msra.mxu0 0.0
  %2520 = vmatprep.subr.mxu0 0.0
  %2521 = vmatpush1.msra.mxu0 0.0
  %2522 = vmatprep.subr.mxu0 0.0
  %2523 = vmatpush1.msra.mxu0 0.0
  %2524 = vmatprep.subr.mxu0 0.0
  %2525 = vmatpush1.msra.mxu0 0.0
  %2526 = vmatprep.subr.mxu0 0.0
  %2527 = vmatpush1.msra.mxu0 0.0
  %2528 = vmatprep.mubr.f32.mxu0 0.0
  %2529 = vmatmul.mubr.f32.gmra.mrb[0].mxu0 %v2441
  %v2530 = vpop.f32.mrb[0].mxu0
  %v2531 = vadd.f32 %v2438, %v2530
  %v2532 = vpop.f32.mrb[0].mxu0
  %2533 = vmatprep.mubr.f32.mxu0 0.0
  %2534 = vmatmul.mubr.f32.gmra.mrb[0].mxu0 %v2444
  %v2535 = vpop.f32.mrb[0].mxu0
  %v2536 = vadd.f32 %v2438, %v2535
  %v2537 = vpop.f32.mrb[0].mxu0
  %2538 = vmatprep.mubr.f32.mxu0 0.0
  %2539 = vmatmul.mubr.f32.gmra.mrb[0].mxu0 %v2447
  %v2540 = vpop.f32.mrb[0].mxu0
  %v2541 = vadd.f32 %v2438, %v2540
  %v2542 = vpop.f32.mrb[0].mxu0
  %2543 = vmatprep.mubr.f32.mxu0 0.0
  %2544 = vmatmul.mubr.f32.gmra.mrb[0].mxu0 %v2450
  %v2545 = vpop.f32.mrb[0].mxu0
  %v2546 = vadd.f32 %v2438, %v2545
  %v2547 = vpop.f32.mrb[0].mxu0
  %2548 = vmatprep.mubr.f32.mxu0 0.0
  %2549 = vmatmul.mubr.f32.gmra.mrb[0].mxu0 %v2453
  %v2550 = vpop.f32.mrb[0].mxu0
  %v2551 = vadd.f32 %v2438, %v2550
  %v2552 = vpop.f32.mrb[0].mxu0
  %2553 = vmatprep.mubr.f32.mxu0 0.0
  %2554 = vmatmul.mubr.f32.gmra.mrb[0].mxu0 %v2456
  %v2555 = vpop.f32.mrb[0].mxu0
  %v2556 = vadd.f32 %v2438, %v2555
  %v2557 = vpop.f32.mrb[0].mxu0
  %2558 = vmatprep.mubr.f32.mxu0 0.0
  %2559 = vmatmul.mubr.f32.gmra.mrb[0].mxu0 %v2459
  %v2560 = vpop.f32.mrb[0].mxu0
  %v2561 = vadd.f32 %v2438, %v2560
  %v2562 = vpop.f32.mrb[0].mxu0
  %2563 = vmatprep.mubr.f32.mxu0 0.0
  %2564 = vmatmul.mubr.f32.gmra.mrb[0].mxu0 %v2462
  %v2565 = vpop.f32.mrb[0].mxu0
  %v2566 = vadd.f32 %v2438, %v2565
  %v2567 = vpop.f32.mrb[0].mxu0
  %2568 = vdwg.mxu0
  %v2569 = vmax.f32 %v2531, 0.0
  %v2570 = vmax.f32 %v2536, 0.0
  %v2571 = vmax.f32 %v2541, 0.0
  %v2572 = vmax.f32 %v2546, 0.0
  %v2573 = vmax.f32 %v2551, 0.0
  %v2574 = vmax.f32 %v2556, 0.0
  %v2575 = vmax.f32 %v2561, 0.0
  %v2576 = vmax.f32 %v2566, 0.0
  %vm2577 = vcmask 7168
  %2578 = vst.msk [vmem:[%s67] sm:$0xff] %vm2577, %v2569
  %2579 = vst.msk [vmem:[%s67 + $0x8] sm:$0xff] %vm2577, %v2570
  %2580 = vst.msk [vmem:[%s67 + $0x10] sm:$0xff] %vm2577, %v2571
  %2581 = vst.msk [vmem:[%s67 + $0x18] sm:$0xff] %vm2577, %v2572
  %2582 = vst.msk [vmem:[%s67 + $0x20] sm:$0xff] %vm2577, %v2573
  %2583 = vst.msk [vmem:[%s67 + $0x28] sm:$0xff] %vm2577, %v2574
  %2584 = vst.msk [vmem:[%s67 + $0x30] sm:$0xff] %vm2577, %v2575
  %2585 = vst.msk [vmem:[%s67 + $0x38] sm:$0xff] %vm2577, %v2576
  %v2586 = vld [vmem:[%s13] sm:$0xff]
  %v2587 = vld [vmem:[%s13 + $0x8] sm:$0xff]
  %v2588 = vld [vmem:[%s13 + $0x10] sm:$0xff]
  %v2589 = vld [vmem:[%s13 + $0x18] sm:$0xff]
  %2591 = vset.pattern.permute.xlu0 0
  %2592 = vperm.xlu0 %2591, %v2569
  %v2593 = vpop.permute.xlu0 %2592
  %2596 = vset.pattern.permute.xlu0 0
  %2597 = vperm.xlu0 %2596, %v2570
  %v2598 = vpop.permute.xlu0 %2597
  %2601 = vset.pattern.permute.xlu0 0
  %2602 = vperm.xlu0 %2601, %v2571
  %v2603 = vpop.permute.xlu0 %2602
  %2606 = vset.pattern.permute.xlu0 0
  %2607 = vperm.xlu0 %2606, %v2572
  %v2608 = vpop.permute.xlu0 %2607
  %2611 = vset.pattern.permute.xlu0 0
  %2612 = vperm.xlu0 %2611, %v2573
  %v2613 = vpop.permute.xlu0 %2612
  %2616 = vset.pattern.permute.xlu0 0
  %2617 = vperm.xlu0 %2616, %v2574
  %v2618 = vpop.permute.xlu0 %2617
  %2621 = vset.pattern.permute.xlu0 0
  %2622 = vperm.xlu0 %2621, %v2575
  %v2623 = vpop.permute.xlu0 %2622
  %2626 = vset.pattern.permute.xlu0 0
  %2627 = vperm.xlu0 %2626, %v2576
  %v2628 = vpop.permute.xlu0 %2627
  %v2630 = vmul.f32 %v1823, %v2593
  %v2631 = vmul.f32 %v1824, %v2598
  %v2632 = vmul.f32 %v1825, %v2603
  %v2633 = vmul.f32 %v1826, %v2608
  %v2634 = vmul.f32 %v1827, %v2613
  %v2635 = vmul.f32 %v1828, %v2618
  %v2636 = vmul.f32 %v1829, %v2623
  %v2637 = vmul.f32 %v1830, %v2628
  %v2639 = vsel %vm702, %v2586, 0
  %v2642 = vsel %vm702, %v2587, 0
  %v2645 = vsel %vm702, %v2588, 0
  %v2648 = vsel %vm702, %v2589, 0
  %2650 = vmatprep.subr.mxu0 0.0
  %2651 = vmatpush1.msra.mxu0 %v2630
  %2652 = vmatprep.subr.mxu0 0.0
  %2653 = vmatpush1.msra.mxu0 %v2631
  %2654 = vmatprep.subr.mxu0 0.0
  %2655 = vmatpush1.msra.mxu0 %v2632
  %2656 = vmatprep.subr.mxu0 0.0
  %2657 = vmatpush1.msra.mxu0 %v2633
  %2658 = vmatprep.subr.mxu0 0.0
  %2659 = vmatpush1.msra.mxu0 %v2634
  %2660 = vmatprep.subr.mxu0 0.0
  %2661 = vmatpush1.msra.mxu0 %v2635
  %2662 = vmatprep.subr.mxu0 0.0
  %2663 = vmatpush1.msra.mxu0 %v2636
  %2664 = vmatprep.subr.mxu0 0.0
  %2665 = vmatpush1.msra.mxu0 %v2637
  %2666 = vmatprep.subr.mxu0 0.0
  %2667 = vmatpush1.msra.mxu0 0.0
  %2668 = vmatprep.subr.mxu0 0.0
  %2669 = vmatpush1.msra.mxu0 0.0
  %2670 = vmatprep.subr.mxu0 0.0
  %2671 = vmatpush1.msra.mxu0 0.0
  %2672 = vmatprep.subr.mxu0 0.0
  %2673 = vmatpush1.msra.mxu0 0.0
  %2674 = vmatprep.subr.mxu0 0.0
  %2675 = vmatpush1.msra.mxu0 0.0
  %2676 = vmatprep.subr.mxu0 0.0
  %2677 = vmatpush1.msra.mxu0 0.0
  %2678 = vmatprep.subr.mxu0 0.0
  %2679 = vmatpush1.msra.mxu0 0.0
  %2680 = vmatprep.subr.mxu0 0.0
  %2681 = vmatpush1.msra.mxu0 0.0
  %2682 = vmatprep.subr.mxu0 0.0
  %2683 = vmatpush1.msra.mxu0 0.0
  %2684 = vmatprep.subr.mxu0 0.0
  %2685 = vmatpush1.msra.mxu0 0.0
  %2686 = vmatprep.subr.mxu0 0.0
  %2687 = vmatpush1.msra.mxu0 0.0
  %2688 = vmatprep.subr.mxu0 0.0
  %2689 = vmatpush1.msra.mxu0 0.0
  %2690 = vmatprep.subr.mxu0 0.0
  %2691 = vmatpush1.msra.mxu0 0.0
  %2692 = vmatprep.subr.mxu0 0.0
  %2693 = vmatpush1.msra.mxu0 0.0
  %2694 = vmatprep.subr.mxu0 0.0
  %2695 = vmatpush1.msra.mxu0 0.0
  %2696 = vmatprep.subr.mxu0 0.0
  %2697 = vmatpush1.msra.mxu0 0.0
  %2698 = vmatprep.subr.mxu0 0.0
  %2699 = vmatpush1.msra.mxu0 0.0
  %2700 = vmatprep.subr.mxu0 0.0
  %2701 = vmatpush1.msra.mxu0 0.0
  %2702 = vmatprep.subr.mxu0 0.0
  %2703 = vmatpush1.msra.mxu0 0.0
  %2704 = vmatprep.subr.mxu0 0.0
  %2705 = vmatpush1.msra.mxu0 0.0
  %2706 = vmatprep.subr.mxu0 0.0
  %2707 = vmatpush1.msra.mxu0 0.0
  %2708 = vmatprep.subr.mxu0 0.0
  %2709 = vmatpush1.msra.mxu0 0.0
  %2710 = vmatprep.subr.mxu0 0.0
  %2711 = vmatpush1.msra.mxu0 0.0
  %2712 = vmatprep.subr.mxu0 0.0
  %2713 = vmatpush1.msra.mxu0 0.0
  %2714 = vmatprep.mubr.f32.mxu0 0.0
  %2715 = vmatmul.mubr.f32.gmra.mrb[0].mxu0 %v2639
  %v2716 = vpop.f32.mrb[0].mxu0
  %v2717 = vadd.f32 0.0, %v2716
  %v2718 = vpop.f32.mrb[0].mxu0
  %2719 = vmatprep.mubr.f32.mxu0 0.0
  %2720 = vmatmul.mubr.f32.gmra.mrb[0].mxu0 %v2642
  %v2721 = vpop.f32.mrb[0].mxu0
  %v2722 = vadd.f32 0.0, %v2721
  %v2723 = vpop.f32.mrb[0].mxu0
  %2724 = vmatprep.mubr.f32.mxu0 0.0
  %2725 = vmatmul.mubr.f32.gmra.mrb[0].mxu0 %v2645
  %v2726 = vpop.f32.mrb[0].mxu0
  %v2727 = vadd.f32 0.0, %v2726
  %v2728 = vpop.f32.mrb[0].mxu0
  %2729 = vmatprep.mubr.f32.mxu0 0.0
  %2730 = vmatmul.mubr.f32.gmra.mrb[0].mxu0 %v2648
  %v2731 = vpop.f32.mrb[0].mxu0
  %v2732 = vadd.f32 0.0, %v2731
  %v2733 = vpop.f32.mrb[0].mxu0
  %2734 = vdwg.mxu0
  %v2736 = vsel %vm171, %v2717, 0
  %v2739 = vsel %vm171, %v2722, 0
  %v2742 = vsel %vm171, %v2727, 0
  %v2745 = vsel %vm171, %v2732, 0
  %2747 = vmatprep.subr.mxu0 0.0
  %2748 = vmatpush1.msra.mxu0 %v992
  %2749 = vmatprep.subr.mxu0 0.0
  %2750 = vmatpush1.msra.mxu0 %v997
  %2751 = vmatprep.subr.mxu0 0.0
  %2752 = vmatpush1.msra.mxu0 %v1002
  %2753 = vmatprep.subr.mxu0 0.0
  %2754 = vmatpush1.msra.mxu0 %v1007
  %2755 = vmatprep.subr.mxu0 0.0
  %2756 = vmatpush1.msra.mxu0 0.0
  %2757 = vmatprep.subr.mxu0 0.0
  %2758 = vmatpush1.msra.mxu0 0.0
  %2759 = vmatprep.subr.mxu0 0.0
  %2760 = vmatpush1.msra.mxu0 0.0
  %2761 = vmatprep.subr.mxu0 0.0
  %2762 = vmatpush1.msra.mxu0 0.0
  %2763 = vmatprep.subr.mxu0 0.0
  %2764 = vmatpush1.msra.mxu0 0.0
  %2765 = vmatprep.subr.mxu0 0.0
  %2766 = vmatpush1.msra.mxu0 0.0
  %2767 = vmatprep.subr.mxu0 0.0
  %2768 = vmatpush1.msra.mxu0 0.0
  %2769 = vmatprep.subr.mxu0 0.0
  %2770 = vmatpush1.msra.mxu0 0.0
  %2771 = vmatprep.subr.mxu0 0.0
  %2772 = vmatpush1.msra.mxu0 0.0
  %2773 = vmatprep.subr.mxu0 0.0
  %2774 = vmatpush1.msra.mxu0 0.0
  %2775 = vmatprep.subr.mxu0 0.0
  %2776 = vmatpush1.msra.mxu0 0.0
  %2777 = vmatprep.subr.mxu0 0.0
  %2778 = vmatpush1.msra.mxu0 0.0
  %2779 = vmatprep.subr.mxu0 0.0
  %2780 = vmatpush1.msra.mxu0 0.0
  %2781 = vmatprep.subr.mxu0 0.0
  %2782 = vmatpush1.msra.mxu0 0.0
  %2783 = vmatprep.subr.mxu0 0.0
  %2784 = vmatpush1.msra.mxu0 0.0
  %2785 = vmatprep.subr.mxu0 0.0
  %2786 = vmatpush1.msra.mxu0 0.0
  %2787 = vmatprep.subr.mxu0 0.0
  %2788 = vmatpush1.msra.mxu0 0.0
  %2789 = vmatprep.subr.mxu0 0.0
  %2790 = vmatpush1.msra.mxu0 0.0
  %2791 = vmatprep.subr.mxu0 0.0
  %2792 = vmatpush1.msra.mxu0 0.0
  %2793 = vmatprep.subr.mxu0 0.0
  %2794 = vmatpush1.msra.mxu0 0.0
  %2795 = vmatprep.subr.mxu0 0.0
  %2796 = vmatpush1.msra.mxu0 0.0
  %2797 = vmatprep.subr.mxu0 0.0
  %2798 = vmatpush1.msra.mxu0 0.0
  %2799 = vmatprep.subr.mxu0 0.0
  %2800 = vmatpush1.msra.mxu0 0.0
  %2801 = vmatprep.subr.mxu0 0.0
  %2802 = vmatpush1.msra.mxu0 0.0
  %2803 = vmatprep.subr.mxu0 0.0
  %2804 = vmatpush1.msra.mxu0 0.0
  %2805 = vmatprep.subr.mxu0 0.0
  %2806 = vmatpush1.msra.mxu0 0.0
  %2807 = vmatprep.subr.mxu0 0.0
  %2808 = vmatpush1.msra.mxu0 0.0
  %2809 = vmatprep.subr.mxu0 0.0
  %2810 = vmatpush1.msra.mxu0 0.0
  %2811 = vmatprep.mubr.f32.mxu0 0.0
  %2812 = vmatmul.mubr.f32.gmra.mrb[0].mxu0 %v2736
  %v2813 = vpop.f32.mrb[0].mxu0
  %v2814 = vadd.f32 0.0, %v2813
  %v2815 = vpop.f32.mrb[0].mxu0
  %2816 = vmatprep.mubr.f32.mxu0 0.0
  %2817 = vmatmul.mubr.f32.gmra.mrb[0].mxu0 %v2739
  %v2818 = vpop.f32.mrb[0].mxu0
  %v2819 = vadd.f32 0.0, %v2818
  %v2820 = vpop.f32.mrb[0].mxu0
  %2821 = vmatprep.mubr.f32.mxu0 0.0
  %2822 = vmatmul.mubr.f32.gmra.mrb[0].mxu0 %v2742
  %v2823 = vpop.f32.mrb[0].mxu0
  %v2824 = vadd.f32 0.0, %v2823
  %v2825 = vpop.f32.mrb[0].mxu0
  %2826 = vmatprep.mubr.f32.mxu0 0.0
  %2827 = vmatmul.mubr.f32.gmra.mrb[0].mxu0 %v2745
  %v2828 = vpop.f32.mrb[0].mxu0
  %v2829 = vadd.f32 0.0, %v2828
  %v2830 = vpop.f32.mrb[0].mxu0
  %2831 = vdwg.mxu0
  %v2836 = vrot.slane %v2814, 1
  %v2837 = vrot.slane %v2814, 2
  %v2838 = vrot.slane %v2814, 3
  %v2839 = vrot.slane %v2814, 4
  %v2840 = vrot.slane %v2814, 5
  %v2841 = vrot.slane %v2814, 6
  %v2842 = vrot.slane %v2814, 7
  %v2843 = vrot.slane %v2819, 1
  %v2844 = vrot.slane %v2819, 2
  %v2845 = vrot.slane %v2819, 3
  %v2846 = vrot.slane %v2819, 4
  %v2847 = vrot.slane %v2819, 5
  %v2848 = vrot.slane %v2819, 6
  %v2849 = vrot.slane %v2819, 7
  %v2850 = vrot.slane %v2824, 1
  %v2851 = vrot.slane %v2824, 2
  %v2852 = vrot.slane %v2824, 3
  %v2853 = vrot.slane %v2824, 4
  %v2854 = vrot.slane %v2824, 5
  %v2855 = vrot.slane %v2824, 6
  %v2856 = vrot.slane %v2824, 7
  %v2857 = vrot.slane %v2829, 1
  %v2858 = vrot.slane %v2829, 2
  %v2859 = vrot.slane %v2829, 3
  %v2860 = vrot.slane %v2829, 4
  %v2861 = vrot.slane %v2829, 5
  %v2862 = vrot.slane %v2829, 6
  %v2863 = vrot.slane %v2829, 7
  %v2896 = vadd.f32 %v178, %v2814
  %v2897 = vadd.f32 %v185, %v2836
  %v2898 = vadd.f32 %v192, %v2837
  %v2899 = vadd.f32 %v199, %v2838
  %v2900 = vadd.f32 %v206, %v2839
  %v2901 = vadd.f32 %v213, %v2840
  %v2902 = vadd.f32 %v220, %v2841
  %v2903 = vadd.f32 %v227, %v2842
  %v2904 = vadd.f32 %v234, %v2819
  %v2905 = vadd.f32 %v241, %v2843
  %v2906 = vadd.f32 %v248, %v2844
  %v2907 = vadd.f32 %v255, %v2845
  %v2908 = vadd.f32 %v262, %v2846
  %v2909 = vadd.f32 %v269, %v2847
  %v2910 = vadd.f32 %v276, %v2848
  %v2911 = vadd.f32 %v283, %v2849
  %v2912 = vadd.f32 %v290, %v2824
  %v2913 = vadd.f32 %v297, %v2850
  %v2914 = vadd.f32 %v304, %v2851
  %v2915 = vadd.f32 %v311, %v2852
  %v2916 = vadd.f32 %v318, %v2853
  %v2917 = vadd.f32 %v325, %v2854
  %v2918 = vadd.f32 %v332, %v2855
  %v2919 = vadd.f32 %v339, %v2856
  %v2920 = vadd.f32 %v346, %v2829
  %v2921 = vadd.f32 %v353, %v2857
  %v2922 = vadd.f32 %v360, %v2858
  %v2923 = vadd.f32 %v367, %v2859
  %v2924 = vadd.f32 %v374, %v2860
  %v2925 = vadd.f32 %v381, %v2861
  %v2926 = vadd.f32 %v388, %v2862
  %v2927 = vadd.f32 %v395, %v2863
  %v2928 = vld [vmem:[%s49] sm:$0xff]
  %v2929 = vld [vmem:[%s49 + $0x8] sm:$0xff]
  %v2930 = vld [vmem:[%s49 + $0x10] sm:$0xff]
  %v2931 = vld [vmem:[%s49 + $0x18] sm:$0xff]
  %v2932 = vld [vmem:[%s51] sm:$0xff]
  %v2934 = vsel %vm1220, %v1018, 0
  %v2937 = vsel %vm1220, %v1019, 0
  %v2940 = vsel %vm1220, %v1020, 0
  %v2943 = vsel %vm1220, %v1021, 0
  %2945 = vmatprep.subr.mxu0 0.0
  %2946 = vmatpush1.msra.mxu0 %v2932
  %2947 = vmatprep.subr.mxu0 0.0
  %2948 = vmatpush1.msra.mxu0 0.0
  %2949 = vmatprep.subr.mxu0 0.0
  %2950 = vmatpush1.msra.mxu0 0.0
  %2951 = vmatprep.subr.mxu0 0.0
  %2952 = vmatpush1.msra.mxu0 0.0
  %2953 = vmatprep.subr.mxu0 0.0
  %2954 = vmatpush1.msra.mxu0 0.0
  %2955 = vmatprep.subr.mxu0 0.0
  %2956 = vmatpush1.msra.mxu0 0.0
  %2957 = vmatprep.subr.mxu0 0.0
  %2958 = vmatpush1.msra.mxu0 0.0
  %2959 = vmatprep.subr.mxu0 0.0
  %2960 = vmatpush1.msra.mxu0 0.0
  %2961 = vmatprep.subr.mxu0 0.0
  %2962 = vmatpush1.msra.mxu0 0.0
  %2963 = vmatprep.subr.mxu0 0.0
  %2964 = vmatpush1.msra.mxu0 0.0
  %2965 = vmatprep.subr.mxu0 0.0
  %2966 = vmatpush1.msra.mxu0 0.0
  %2967 = vmatprep.subr.mxu0 0.0
  %2968 = vmatpush1.msra.mxu0 0.0
  %2969 = vmatprep.subr.mxu0 0.0
  %2970 = vmatpush1.msra.mxu0 0.0
  %2971 = vmatprep.subr.mxu0 0.0
  %2972 = vmatpush1.msra.mxu0 0.0
  %2973 = vmatprep.subr.mxu0 0.0
  %2974 = vmatpush1.msra.mxu0 0.0
  %2975 = vmatprep.subr.mxu0 0.0
  %2976 = vmatpush1.msra.mxu0 0.0
  %2977 = vmatprep.subr.mxu0 0.0
  %2978 = vmatpush1.msra.mxu0 0.0
  %2979 = vmatprep.subr.mxu0 0.0
  %2980 = vmatpush1.msra.mxu0 0.0
  %2981 = vmatprep.subr.mxu0 0.0
  %2982 = vmatpush1.msra.mxu0 0.0
  %2983 = vmatprep.subr.mxu0 0.0
  %2984 = vmatpush1.msra.mxu0 0.0
  %2985 = vmatprep.subr.mxu0 0.0
  %2986 = vmatpush1.msra.mxu0 0.0
  %2987 = vmatprep.subr.mxu0 0.0
  %2988 = vmatpush1.msra.mxu0 0.0
  %2989 = vmatprep.subr.mxu0 0.0
  %2990 = vmatpush1.msra.mxu0 0.0
  %2991 = vmatprep.subr.mxu0 0.0
  %2992 = vmatpush1.msra.mxu0 0.0
  %2993 = vmatprep.subr.mxu0 0.0
  %2994 = vmatpush1.msra.mxu0 0.0
  %2995 = vmatprep.subr.mxu0 0.0
  %2996 = vmatpush1.msra.mxu0 0.0
  %2997 = vmatprep.subr.mxu0 0.0
  %2998 = vmatpush1.msra.mxu0 0.0
  %2999 = vmatprep.subr.mxu0 0.0
  %3000 = vmatpush1.msra.mxu0 0.0
  %3001 = vmatprep.subr.mxu0 0.0
  %3002 = vmatpush1.msra.mxu0 0.0
  %3003 = vmatprep.subr.mxu0 0.0
  %3004 = vmatpush1.msra.mxu0 0.0
  %3005 = vmatprep.subr.mxu0 0.0
  %3006 = vmatpush1.msra.mxu0 0.0
  %3007 = vmatprep.subr.mxu0 0.0
  %3008 = vmatpush1.msra.mxu0 0.0
  %3009 = vmatprep.mubr.f32.mxu0 0.0
  %3010 = vmatmul.mubr.f32.gmra.mrb[0].mxu0 %v2934
  %v3011 = vpop.f32.mrb[0].mxu0
  %v3012 = vadd.f32 0.0, %v3011
  %v3013 = vpop.f32.mrb[0].mxu0
  %3014 = vmatprep.mubr.f32.mxu0 0.0
  %3015 = vmatmul.mubr.f32.gmra.mrb[0].mxu0 %v2937
  %v3016 = vpop.f32.mrb[0].mxu0
  %v3017 = vadd.f32 0.0, %v3016
  %v3018 = vpop.f32.mrb[0].mxu0
  %3019 = vmatprep.mubr.f32.mxu0 0.0
  %3020 = vmatmul.mubr.f32.gmra.mrb[0].mxu0 %v2940
  %v3021 = vpop.f32.mrb[0].mxu0
  %v3022 = vadd.f32 0.0, %v3021
  %v3023 = vpop.f32.mrb[0].mxu0
  %3024 = vmatprep.mubr.f32.mxu0 0.0
  %3025 = vmatmul.mubr.f32.gmra.mrb[0].mxu0 %v2943
  %v3026 = vpop.f32.mrb[0].mxu0
  %v3027 = vadd.f32 0.0, %v3026
  %v3028 = vpop.f32.mrb[0].mxu0
  %3029 = vdwg.mxu0
  %v3062 = vrot.slane %v2897, 7
  %v3063 = vsel %vm536, %v3062, %v2896
  %v3064 = vrot.slane %v2898, 6
  %v3065 = vsel %vm538, %v3064, %v3063
  %v3066 = vrot.slane %v2899, 5
  %v3067 = vsel %vm540, %v3066, %v3065
  %v3068 = vrot.slane %v2900, 4
  %v3069 = vsel %vm542, %v3068, %v3067
  %v3070 = vrot.slane %v2901, 3
  %v3071 = vsel %vm544, %v3070, %v3069
  %v3072 = vrot.slane %v2902, 2
  %v3073 = vsel %vm546, %v3072, %v3071
  %v3074 = vrot.slane %v2903, 1
  %v3075 = vsel %vm548, %v3074, %v3073
  %v3076 = vrot.slane %v2905, 7
  %v3077 = vsel %vm536, %v3076, %v2904
  %v3078 = vrot.slane %v2906, 6
  %v3079 = vsel %vm538, %v3078, %v3077
  %v3080 = vrot.slane %v2907, 5
  %v3081 = vsel %vm540, %v3080, %v3079
  %v3082 = vrot.slane %v2908, 4
  %v3083 = vsel %vm542, %v3082, %v3081
  %v3084 = vrot.slane %v2909, 3
  %v3085 = vsel %vm544, %v3084, %v3083
  %v3086 = vrot.slane %v2910, 2
  %v3087 = vsel %vm546, %v3086, %v3085
  %v3088 = vrot.slane %v2911, 1
  %v3089 = vsel %vm548, %v3088, %v3087
  %v3090 = vrot.slane %v2913, 7
  %v3091 = vsel %vm536, %v3090, %v2912
  %v3092 = vrot.slane %v2914, 6
  %v3093 = vsel %vm538, %v3092, %v3091
  %v3094 = vrot.slane %v2915, 5
  %v3095 = vsel %vm540, %v3094, %v3093
  %v3096 = vrot.slane %v2916, 4
  %v3097 = vsel %vm542, %v3096, %v3095
  %v3098 = vrot.slane %v2917, 3
  %v3099 = vsel %vm544, %v3098, %v3097
  %v3100 = vrot.slane %v2918, 2
  %v3101 = vsel %vm546, %v3100, %v3099
  %v3102 = vrot.slane %v2919, 1
  %v3103 = vsel %vm548, %v3102, %v3101
  %v3104 = vrot.slane %v2921, 7
  %v3105 = vsel %vm536, %v3104, %v2920
  %v3106 = vrot.slane %v2922, 6
  %v3107 = vsel %vm538, %v3106, %v3105
  %v3108 = vrot.slane %v2923, 5
  %v3109 = vsel %vm540, %v3108, %v3107
  %v3110 = vrot.slane %v2924, 4
  %v3111 = vsel %vm542, %v3110, %v3109
  %v3112 = vrot.slane %v2925, 3
  %v3113 = vsel %vm544, %v3112, %v3111
  %v3114 = vrot.slane %v2926, 2
  %v3115 = vsel %vm546, %v3114, %v3113
  %v3116 = vrot.slane %v2927, 1
  %v3117 = vsel %vm548, %v3116, %v3115
  %v3118 = vsel %vm171, %v3075, 0
  %v3120 = vsel %vm171, %v3089, 0
  %v3122 = vsel %vm171, %v3103, 0
  %v3124 = vsel %vm171, %v3117, 0
  %3126 = vmatprep.subr.mxu0 0.0
  %3127 = vmatpush1.msra.mxu0 %v2928
  %3128 = vmatprep.subr.mxu0 0.0
  %3129 = vmatpush1.msra.mxu0 %v2929
  %3130 = vmatprep.subr.mxu0 0.0
  %3131 = vmatpush1.msra.mxu0 %v2930
  %3132 = vmatprep.subr.mxu0 0.0
  %3133 = vmatpush1.msra.mxu0 %v2931
  %3134 = vmatprep.subr.mxu0 0.0
  %3135 = vmatpush1.msra.mxu0 0.0
  %3136 = vmatprep.subr.mxu0 0.0
  %3137 = vmatpush1.msra.mxu0 0.0
  %3138 = vmatprep.subr.mxu0 0.0
  %3139 = vmatpush1.msra.mxu0 0.0
  %3140 = vmatprep.subr.mxu0 0.0
  %3141 = vmatpush1.msra.mxu0 0.0
  %3142 = vmatprep.subr.mxu0 0.0
  %3143 = vmatpush1.msra.mxu0 0.0
  %3144 = vmatprep.subr.mxu0 0.0
  %3145 = vmatpush1.msra.mxu0 0.0
  %3146 = vmatprep.subr.mxu0 0.0
  %3147 = vmatpush1.msra.mxu0 0.0
  %3148 = vmatprep.subr.mxu0 0.0
  %3149 = vmatpush1.msra.mxu0 0.0
  %3150 = vmatprep.subr.mxu0 0.0
  %3151 = vmatpush1.msra.mxu0 0.0
  %3152 = vmatprep.subr.mxu0 0.0
  %3153 = vmatpush1.msra.mxu0 0.0
  %3154 = vmatprep.subr.mxu0 0.0
  %3155 = vmatpush1.msra.mxu0 0.0
  %3156 = vmatprep.subr.mxu0 0.0
  %3157 = vmatpush1.msra.mxu0 0.0
  %3158 = vmatprep.subr.mxu0 0.0
  %3159 = vmatpush1.msra.mxu0 0.0
  %3160 = vmatprep.subr.mxu0 0.0
  %3161 = vmatpush1.msra.mxu0 0.0
  %3162 = vmatprep.subr.mxu0 0.0
  %3163 = vmatpush1.msra.mxu0 0.0
  %3164 = vmatprep.subr.mxu0 0.0
  %3165 = vmatpush1.msra.mxu0 0.0
  %3166 = vmatprep.subr.mxu0 0.0
  %3167 = vmatpush1.msra.mxu0 0.0
  %3168 = vmatprep.subr.mxu0 0.0
  %3169 = vmatpush1.msra.mxu0 0.0
  %3170 = vmatprep.subr.mxu0 0.0
  %3171 = vmatpush1.msra.mxu0 0.0
  %3172 = vmatprep.subr.mxu0 0.0
  %3173 = vmatpush1.msra.mxu0 0.0
  %3174 = vmatprep.subr.mxu0 0.0
  %3175 = vmatpush1.msra.mxu0 0.0
  %3176 = vmatprep.subr.mxu0 0.0
  %3177 = vmatpush1.msra.mxu0 0.0
  %3178 = vmatprep.subr.mxu0 0.0
  %3179 = vmatpush1.msra.mxu0 0.0
  %3180 = vmatprep.subr.mxu0 0.0
  %3181 = vmatpush1.msra.mxu0 0.0
  %3182 = vmatprep.subr.mxu0 0.0
  %3183 = vmatpush1.msra.mxu0 0.0
  %3184 = vmatprep.subr.mxu0 0.0
  %3185 = vmatpush1.msra.mxu0 0.0
  %3186 = vmatprep.subr.mxu0 0.0
  %3187 = vmatpush1.msra.mxu0 0.0
  %3188 = vmatprep.subr.mxu0 0.0
  %3189 = vmatpush1.msra.mxu0 0.0
  %3190 = vmatprep.mubr.f32.mxu0 0.0
  %3191 = vmatmul.mubr.f32.gmra.mrb[0].mxu0 %v3118
  %v3192 = vpop.f32.mrb[0].mxu0
  %v3193 = vadd.f32 %v3012, %v3192
  %v3194 = vpop.f32.mrb[0].mxu0
  %3195 = vmatprep.mubr.f32.mxu0 0.0
  %3196 = vmatmul.mubr.f32.gmra.mrb[0].mxu0 %v3120
  %v3197 = vpop.f32.mrb[0].mxu0
  %v3198 = vadd.f32 %v3017, %v3197
  %v3199 = vpop.f32.mrb[0].mxu0
  %3200 = vmatprep.mubr.f32.mxu0 0.0
  %3201 = vmatmul.mubr.f32.gmra.mrb[0].mxu0 %v3122
  %v3202 = vpop.f32.mrb[0].mxu0
  %v3203 = vadd.f32 %v3022, %v3202
  %v3204 = vpop.f32.mrb[0].mxu0
  %3205 = vmatprep.mubr.f32.mxu0 0.0
  %3206 = vmatmul.mubr.f32.gmra.mrb[0].mxu0 %v3124
  %v3207 = vpop.f32.mrb[0].mxu0
  %v3208 = vadd.f32 %v3027, %v3207
  %v3209 = vpop.f32.mrb[0].mxu0
  %3210 = vdwg.mxu0
  %v3211 = vld [vmem:[%s53] sm:$0x1]
  %v3213 = vlaneseq
  %v3214 = vshrl.u32 %v3213, 7
  %v3215 = vsub.s32 0, %v3214
  %v3216 = vrot.slane %v3211, %v3215
  %v3218 = vadd.f32 %v3193, %v3216
  %v3219 = vadd.f32 %v3198, %v3216
  %v3220 = vadd.f32 %v3203, %v3216
  %v3221 = vadd.f32 %v3208, %v3216
  %vm3222 = vcmp.gt.f32.partialorder %v3218, 0.0
  %vm3223 = vcmp.gt.f32.partialorder %v3219, 0.0
  %vm3224 = vcmp.gt.f32.partialorder %v3220, 0.0
  %vm3225 = vcmp.gt.f32.partialorder %v3221, 0.0
  %v3226 = vmul.f32 %v3218, 0.01
  %v3227 = vmul.f32 %v3219, 0.01
  %v3228 = vmul.f32 %v3220, 0.01
  %v3229 = vmul.f32 %v3221, 0.01
  %v3230 = vsel %vm3222, %v3218, %v3226
  %v3231 = vsel %vm3223, %v3219, %v3227
  %v3232 = vsel %vm3224, %v3220, %v3228
  %v3233 = vsel %vm3225, %v3221, %v3229
  %v3234 = vld [vmem:[%s55] sm:$0xff]
  %v3235 = vld [vmem:[%s55 + $0x8] sm:$0xff]
  %v3236 = vld [vmem:[%s55 + $0x10] sm:$0xff]
  %v3237 = vld [vmem:[%s55 + $0x18] sm:$0xff]
  %v3238 = vld [vmem:[%s57] sm:$0x1]
  %v3240 = vlaneseq
  %v3241 = vshrl.u32 %v3240, 7
  %v3242 = vsub.s32 0, %v3241
  %v3243 = vrot.slane %v3238, %v3242
  %v3246 = vsel %vm171, %v3230, 0
  %v3249 = vsel %vm171, %v3231, 0
  %v3252 = vsel %vm171, %v3232, 0
  %v3255 = vsel %vm171, %v3233, 0
  %3257 = vmatprep.subr.mxu0 0.0
  %3258 = vmatpush1.msra.mxu0 %v3234
  %3259 = vmatprep.subr.mxu0 0.0
  %3260 = vmatpush1.msra.mxu0 %v3235
  %3261 = vmatprep.subr.mxu0 0.0
  %3262 = vmatpush1.msra.mxu0 %v3236
  %3263 = vmatprep.subr.mxu0 0.0
  %3264 = vmatpush1.msra.mxu0 %v3237
  %3265 = vmatprep.subr.mxu0 0.0
  %3266 = vmatpush1.msra.mxu0 0.0
  %3267 = vmatprep.subr.mxu0 0.0
  %3268 = vmatpush1.msra.mxu0 0.0
  %3269 = vmatprep.subr.mxu0 0.0
  %3270 = vmatpush1.msra.mxu0 0.0
  %3271 = vmatprep.subr.mxu0 0.0
  %3272 = vmatpush1.msra.mxu0 0.0
  %3273 = vmatprep.subr.mxu0 0.0
  %3274 = vmatpush1.msra.mxu0 0.0
  %3275 = vmatprep.subr.mxu0 0.0
  %3276 = vmatpush1.msra.mxu0 0.0
  %3277 = vmatprep.subr.mxu0 0.0
  %3278 = vmatpush1.msra.mxu0 0.0
  %3279 = vmatprep.subr.mxu0 0.0
  %3280 = vmatpush1.msra.mxu0 0.0
  %3281 = vmatprep.subr.mxu0 0.0
  %3282 = vmatpush1.msra.mxu0 0.0
  %3283 = vmatprep.subr.mxu0 0.0
  %3284 = vmatpush1.msra.mxu0 0.0
  %3285 = vmatprep.subr.mxu0 0.0
  %3286 = vmatpush1.msra.mxu0 0.0
  %3287 = vmatprep.subr.mxu0 0.0
  %3288 = vmatpush1.msra.mxu0 0.0
  %3289 = vmatprep.subr.mxu0 0.0
  %3290 = vmatpush1.msra.mxu0 0.0
  %3291 = vmatprep.subr.mxu0 0.0
  %3292 = vmatpush1.msra.mxu0 0.0
  %3293 = vmatprep.subr.mxu0 0.0
  %3294 = vmatpush1.msra.mxu0 0.0
  %3295 = vmatprep.subr.mxu0 0.0
  %3296 = vmatpush1.msra.mxu0 0.0
  %3297 = vmatprep.subr.mxu0 0.0
  %3298 = vmatpush1.msra.mxu0 0.0
  %3299 = vmatprep.subr.mxu0 0.0
  %3300 = vmatpush1.msra.mxu0 0.0
  %3301 = vmatprep.subr.mxu0 0.0
  %3302 = vmatpush1.msra.mxu0 0.0
  %3303 = vmatprep.subr.mxu0 0.0
  %3304 = vmatpush1.msra.mxu0 0.0
  %3305 = vmatprep.subr.mxu0 0.0
  %3306 = vmatpush1.msra.mxu0 0.0
  %3307 = vmatprep.subr.mxu0 0.0
  %3308 = vmatpush1.msra.mxu0 0.0
  %3309 = vmatprep.subr.mxu0 0.0
  %3310 = vmatpush1.msra.mxu0 0.0
  %3311 = vmatprep.subr.mxu0 0.0
  %3312 = vmatpush1.msra.mxu0 0.0
  %3313 = vmatprep.subr.mxu0 0.0
  %3314 = vmatpush1.msra.mxu0 0.0
  %3315 = vmatprep.subr.mxu0 0.0
  %3316 = vmatpush1.msra.mxu0 0.0
  %3317 = vmatprep.subr.mxu0 0.0
  %3318 = vmatpush1.msra.mxu0 0.0
  %3319 = vmatprep.subr.mxu0 0.0
  %3320 = vmatpush1.msra.mxu0 0.0
  %3321 = vmatprep.mubr.f32.mxu0 0.0
  %3322 = vmatmul.mubr.f32.gmra.mrb[0].mxu0 %v3246
  %v3323 = vpop.f32.mrb[0].mxu0
  %v3324 = vadd.f32 %v3243, %v3323
  %v3325 = vpop.f32.mrb[0].mxu0
  %3326 = vmatprep.mubr.f32.mxu0 0.0
  %3327 = vmatmul.mubr.f32.gmra.mrb[0].mxu0 %v3249
  %v3328 = vpop.f32.mrb[0].mxu0
  %v3329 = vadd.f32 %v3243, %v3328
  %v3330 = vpop.f32.mrb[0].mxu0
  %3331 = vmatprep.mubr.f32.mxu0 0.0
  %3332 = vmatmul.mubr.f32.gmra.mrb[0].mxu0 %v3252
  %v3333 = vpop.f32.mrb[0].mxu0
  %v3334 = vadd.f32 %v3243, %v3333
  %v3335 = vpop.f32.mrb[0].mxu0
  %3336 = vmatprep.mubr.f32.mxu0 0.0
  %3337 = vmatmul.mubr.f32.gmra.mrb[0].mxu0 %v3255
  %v3338 = vpop.f32.mrb[0].mxu0
  %v3339 = vadd.f32 %v3243, %v3338
  %v3340 = vpop.f32.mrb[0].mxu0
  %3341 = vdwg.mxu0
  %vm3342 = vcmp.gt.f32.partialorder %v3324, 0.0
  %vm3343 = vcmp.gt.f32.partialorder %v3329, 0.0
  %vm3344 = vcmp.gt.f32.partialorder %v3334, 0.0
  %vm3345 = vcmp.gt.f32.partialorder %v3339, 0.0
  %v3346 = vmul.f32 %v3324, 0.01
  %v3347 = vmul.f32 %v3329, 0.01
  %v3348 = vmul.f32 %v3334, 0.01
  %v3349 = vmul.f32 %v3339, 0.01
  %v3350 = vsel %vm3342, %v3324, %v3346
  %v3351 = vsel %vm3343, %v3329, %v3347
  %v3352 = vsel %vm3344, %v3334, %v3348
  %v3353 = vsel %vm3345, %v3339, %v3349
  %3354 = vmatprep.subr.mxu0 0.0
  %3355 = vmatpush1.msra.mxu0 %v3350
  %3356 = vmatprep.subr.mxu0 0.0
  %3357 = vmatpush1.msra.mxu0 %v3351
  %3358 = vmatprep.subr.mxu0 0.0
  %3359 = vmatpush1.msra.mxu0 %v3352
  %3360 = vmatprep.subr.mxu0 0.0
  %3361 = vmatpush1.msra.mxu0 %v3353
  %3362 = vmatprep.subr.mxu0 0.0
  %3363 = vmatpush1.msra.mxu0 0.0
  %3364 = vmatprep.subr.mxu0 0.0
  %3365 = vmatpush1.msra.mxu0 0.0
  %3366 = vmatprep.subr.mxu0 0.0
  %3367 = vmatpush1.msra.mxu0 0.0
  %3368 = vmatprep.subr.mxu0 0.0
  %3369 = vmatpush1.msra.mxu0 0.0
  %3370 = vmatprep.subr.mxu0 0.0
  %3371 = vmatpush1.msra.mxu0 0.0
  %3372 = vmatprep.subr.mxu0 0.0
  %3373 = vmatpush1.msra.mxu0 0.0
  %3374 = vmatprep.subr.mxu0 0.0
  %3375 = vmatpush1.msra.mxu0 0.0
  %3376 = vmatprep.subr.mxu0 0.0
  %3377 = vmatpush1.msra.mxu0 0.0
  %3378 = vmatprep.subr.mxu0 0.0
  %3379 = vmatpush1.msra.mxu0 0.0
  %3380 = vmatprep.subr.mxu0 0.0
  %3381 = vmatpush1.msra.mxu0 0.0
  %3382 = vmatprep.subr.mxu0 0.0
  %3383 = vmatpush1.msra.mxu0 0.0
  %3384 = vmatprep.subr.mxu0 0.0
  %3385 = vmatpush1.msra.mxu0 0.0
  %3386 = vmatprep.subr.mxu0 0.0
  %3387 = vmatpush1.msra.mxu0 0.0
  %3388 = vmatprep.subr.mxu0 0.0
  %3389 = vmatpush1.msra.mxu0 0.0
  %3390 = vmatprep.subr.mxu0 0.0
  %3391 = vmatpush1.msra.mxu0 0.0
  %3392 = vmatprep.subr.mxu0 0.0
  %3393 = vmatpush1.msra.mxu0 0.0
  %3394 = vmatprep.subr.mxu0 0.0
  %3395 = vmatpush1.msra.mxu0 0.0
  %3396 = vmatprep.subr.mxu0 0.0
  %3397 = vmatpush1.msra.mxu0 0.0
  %3398 = vmatprep.subr.mxu0 0.0
  %3399 = vmatpush1.msra.mxu0 0.0
  %3400 = vmatprep.subr.mxu0 0.0
  %3401 = vmatpush1.msra.mxu0 0.0
  %3402 = vmatprep.subr.mxu0 0.0
  %3403 = vmatpush1.msra.mxu0 0.0
  %3404 = vmatprep.subr.mxu0 0.0
  %3405 = vmatpush1.msra.mxu0 0.0
  %3406 = vmatprep.subr.mxu0 0.0
  %3407 = vmatpush1.msra.mxu0 0.0
  %3408 = vmatprep.subr.mxu0 0.0
  %3409 = vmatpush1.msra.mxu0 0.0
  %3410 = vmatprep.subr.mxu0 0.0
  %3411 = vmatpush1.msra.mxu0 0.0
  %3412 = vmatprep.subr.mxu0 0.0
  %3413 = vmatpush1.msra.mxu0 0.0
  %3414 = vmatprep.subr.mxu0 0.0
  %3415 = vmatpush1.msra.mxu0 0.0
  %3416 = vmatprep.subr.mxu0 0.0
  %3417 = vmatpush1.msra.mxu0 0.0
  %3418 = vmatprep.mubr.f32.mxu0 0.0
  %3419 = vmatmul.mubr.f32.gmra.mrb[0].mxu0 %v2736
  %v3420 = vpop.f32.mrb[0].mxu0
  %v3421 = vadd.f32 0.0, %v3420
  %v3422 = vpop.f32.mrb[0].mxu0
  %3423 = vmatprep.mubr.f32.mxu0 0.0
  %3424 = vmatmul.mubr.f32.gmra.mrb[0].mxu0 %v2739
  %v3425 = vpop.f32.mrb[0].mxu0
  %v3426 = vadd.f32 0.0, %v3425
  %v3427 = vpop.f32.mrb[0].mxu0
  %3428 = vmatprep.mubr.f32.mxu0 0.0
  %3429 = vmatmul.mubr.f32.gmra.mrb[0].mxu0 %v2742
  %v3430 = vpop.f32.mrb[0].mxu0
  %v3431 = vadd.f32 0.0, %v3430
  %v3432 = vpop.f32.mrb[0].mxu0
  %3433 = vmatprep.mubr.f32.mxu0 0.0
  %3434 = vmatmul.mubr.f32.gmra.mrb[0].mxu0 %v2745
  %v3435 = vpop.f32.mrb[0].mxu0
  %v3436 = vadd.f32 0.0, %v3435
  %v3437 = vpop.f32.mrb[0].mxu0
  %3438 = vdwg.mxu0
  %v3443 = vrot.slane %v3421, 1
  %v3444 = vrot.slane %v3421, 2
  %v3445 = vrot.slane %v3421, 3
  %v3446 = vrot.slane %v3421, 4
  %v3447 = vrot.slane %v3421, 5
  %v3448 = vrot.slane %v3421, 6
  %v3449 = vrot.slane %v3421, 7
  %v3450 = vrot.slane %v3426, 1
  %v3451 = vrot.slane %v3426, 2
  %v3452 = vrot.slane %v3426, 3
  %v3453 = vrot.slane %v3426, 4
  %v3454 = vrot.slane %v3426, 5
  %v3455 = vrot.slane %v3426, 6
  %v3456 = vrot.slane %v3426, 7
  %v3457 = vrot.slane %v3431, 1
  %v3458 = vrot.slane %v3431, 2
  %v3459 = vrot.slane %v3431, 3
  %v3460 = vrot.slane %v3431, 4
  %v3461 = vrot.slane %v3431, 5
  %v3462 = vrot.slane %v3431, 6
  %v3463 = vrot.slane %v3431, 7
  %v3464 = vrot.slane %v3436, 1
  %v3465 = vrot.slane %v3436, 2
  %v3466 = vrot.slane %v3436, 3
  %v3467 = vrot.slane %v3436, 4
  %v3468 = vrot.slane %v3436, 5
  %v3469 = vrot.slane %v3436, 6
  %v3470 = vrot.slane %v3436, 7
  %v3503 = vadd.f32 %v2896, %v3421
  %v3504 = vadd.f32 %v2897, %v3443
  %v3505 = vadd.f32 %v2898, %v3444
  %v3506 = vadd.f32 %v2899, %v3445
  %v3507 = vadd.f32 %v2900, %v3446
  %v3508 = vadd.f32 %v2901, %v3447
  %v3509 = vadd.f32 %v2902, %v3448
  %v3510 = vadd.f32 %v2903, %v3449
  %v3511 = vadd.f32 %v2904, %v3426
  %v3512 = vadd.f32 %v2905, %v3450
  %v3513 = vadd.f32 %v2906, %v3451
  %v3514 = vadd.f32 %v2907, %v3452
  %v3515 = vadd.f32 %v2908, %v3453
  %v3516 = vadd.f32 %v2909, %v3454
  %v3517 = vadd.f32 %v2910, %v3455
  %v3518 = vadd.f32 %v2911, %v3456
  %v3519 = vadd.f32 %v2912, %v3431
  %v3520 = vadd.f32 %v2913, %v3457
  %v3521 = vadd.f32 %v2914, %v3458
  %v3522 = vadd.f32 %v2915, %v3459
  %v3523 = vadd.f32 %v2916, %v3460
  %v3524 = vadd.f32 %v2917, %v3461
  %v3525 = vadd.f32 %v2918, %v3462
  %v3526 = vadd.f32 %v2919, %v3463
  %v3527 = vadd.f32 %v2920, %v3436
  %v3528 = vadd.f32 %v2921, %v3464
  %v3529 = vadd.f32 %v2922, %v3465
  %v3530 = vadd.f32 %v2923, %v3466
  %v3531 = vadd.f32 %v2924, %v3467
  %v3532 = vadd.f32 %v2925, %v3468
  %v3533 = vadd.f32 %v2926, %v3469
  %v3534 = vadd.f32 %v2927, %v3470
  %v3535 = vld [vmem:[%s59] sm:$0xff]
  %v3536 = vld [vmem:[%s59 + $0x8] sm:$0xff]
  %v3537 = vld [vmem:[%s59 + $0x10] sm:$0xff]
  %v3538 = vld [vmem:[%s59 + $0x18] sm:$0xff]
  %v3539 = vld [vmem:[%s61] sm:$0xff]
  %v3540 = vld [vmem:[%s61 + $0x8] sm:$0xff]
  %v3541 = vld [vmem:[%s61 + $0x10] sm:$0xff]
  %v3542 = vld [vmem:[%s61 + $0x18] sm:$0xff]
  %v3575 = vrot.slane %v3504, 7
  %v3576 = vsel %vm536, %v3575, %v3503
  %v3577 = vrot.slane %v3505, 6
  %v3578 = vsel %vm538, %v3577, %v3576
  %v3579 = vrot.slane %v3506, 5
  %v3580 = vsel %vm540, %v3579, %v3578
  %v3581 = vrot.slane %v3507, 4
  %v3582 = vsel %vm542, %v3581, %v3580
  %v3583 = vrot.slane %v3508, 3
  %v3584 = vsel %vm544, %v3583, %v3582
  %v3585 = vrot.slane %v3509, 2
  %v3586 = vsel %vm546, %v3585, %v3584
  %v3587 = vrot.slane %v3510, 1
  %v3588 = vsel %vm548, %v3587, %v3586
  %v3589 = vrot.slane %v3512, 7
  %v3590 = vsel %vm536, %v3589, %v3511
  %v3591 = vrot.slane %v3513, 6
  %v3592 = vsel %vm538, %v3591, %v3590
  %v3593 = vrot.slane %v3514, 5
  %v3594 = vsel %vm540, %v3593, %v3592
  %v3595 = vrot.slane %v3515, 4
  %v3596 = vsel %vm542, %v3595, %v3594
  %v3597 = vrot.slane %v3516, 3
  %v3598 = vsel %vm544, %v3597, %v3596
  %v3599 = vrot.slane %v3517, 2
  %v3600 = vsel %vm546, %v3599, %v3598
  %v3601 = vrot.slane %v3518, 1
  %v3602 = vsel %vm548, %v3601, %v3600
  %v3603 = vrot.slane %v3520, 7
  %v3604 = vsel %vm536, %v3603, %v3519
  %v3605 = vrot.slane %v3521, 6
  %v3606 = vsel %vm538, %v3605, %v3604
  %v3607 = vrot.slane %v3522, 5
  %v3608 = vsel %vm540, %v3607, %v3606
  %v3609 = vrot.slane %v3523, 4
  %v3610 = vsel %vm542, %v3609, %v3608
  %v3611 = vrot.slane %v3524, 3
  %v3612 = vsel %vm544, %v3611, %v3610
  %v3613 = vrot.slane %v3525, 2
  %v3614 = vsel %vm546, %v3613, %v3612
  %v3615 = vrot.slane %v3526, 1
  %v3616 = vsel %vm548, %v3615, %v3614
  %v3617 = vrot.slane %v3528, 7
  %v3618 = vsel %vm536, %v3617, %v3527
  %v3619 = vrot.slane %v3529, 6
  %v3620 = vsel %vm538, %v3619, %v3618
  %v3621 = vrot.slane %v3530, 5
  %v3622 = vsel %vm540, %v3621, %v3620
  %v3623 = vrot.slane %v3531, 4
  %v3624 = vsel %vm542, %v3623, %v3622
  %v3625 = vrot.slane %v3532, 3
  %v3626 = vsel %vm544, %v3625, %v3624
  %v3627 = vrot.slane %v3533, 2
  %v3628 = vsel %vm546, %v3627, %v3626
  %v3629 = vrot.slane %v3534, 1
  %v3630 = vsel %vm548, %v3629, %v3628
  %v3631 = vsel %vm171, %v3588, 0
  %v3633 = vsel %vm171, %v3602, 0
  %v3635 = vsel %vm171, %v3616, 0
  %v3637 = vsel %vm171, %v3630, 0
  %3639 = vmatprep.subr.mxu0 0.0
  %3640 = vmatpush1.msra.mxu0 %v3539
  %3641 = vmatprep.subr.mxu0 0.0
  %3642 = vmatpush1.msra.mxu0 %v3540
  %3643 = vmatprep.subr.mxu0 0.0
  %3644 = vmatpush1.msra.mxu0 %v3541
  %3645 = vmatprep.subr.mxu0 0.0
  %3646 = vmatpush1.msra.mxu0 %v3542
  %3647 = vmatprep.subr.mxu0 0.0
  %3648 = vmatpush1.msra.mxu0 0.0
  %3649 = vmatprep.subr.mxu0 0.0
  %3650 = vmatpush1.msra.mxu0 0.0
  %3651 = vmatprep.subr.mxu0 0.0
  %3652 = vmatpush1.msra.mxu0 0.0
  %3653 = vmatprep.subr.mxu0 0.0
  %3654 = vmatpush1.msra.mxu0 0.0
  %3655 = vmatprep.subr.mxu0 0.0
  %3656 = vmatpush1.msra.mxu0 0.0
  %3657 = vmatprep.subr.mxu0 0.0
  %3658 = vmatpush1.msra.mxu0 0.0
  %3659 = vmatprep.subr.mxu0 0.0
  %3660 = vmatpush1.msra.mxu0 0.0
  %3661 = vmatprep.subr.mxu0 0.0
  %3662 = vmatpush1.msra.mxu0 0.0
  %3663 = vmatprep.subr.mxu0 0.0
  %3664 = vmatpush1.msra.mxu0 0.0
  %3665 = vmatprep.subr.mxu0 0.0
  %3666 = vmatpush1.msra.mxu0 0.0
  %3667 = vmatprep.subr.mxu0 0.0
  %3668 = vmatpush1.msra.mxu0 0.0
  %3669 = vmatprep.subr.mxu0 0.0
  %3670 = vmatpush1.msra.mxu0 0.0
  %3671 = vmatprep.subr.mxu0 0.0
  %3672 = vmatpush1.msra.mxu0 0.0
  %3673 = vmatprep.subr.mxu0 0.0
  %3674 = vmatpush1.msra.mxu0 0.0
  %3675 = vmatprep.subr.mxu0 0.0
  %3676 = vmatpush1.msra.mxu0 0.0
  %3677 = vmatprep.subr.mxu0 0.0
  %3678 = vmatpush1.msra.mxu0 0.0
  %3679 = vmatprep.subr.mxu0 0.0
  %3680 = vmatpush1.msra.mxu0 0.0
  %3681 = vmatprep.subr.mxu0 0.0
  %3682 = vmatpush1.msra.mxu0 0.0
  %3683 = vmatprep.subr.mxu0 0.0
  %3684 = vmatpush1.msra.mxu0 0.0
  %3685 = vmatprep.subr.mxu0 0.0
  %3686 = vmatpush1.msra.mxu0 0.0
  %3687 = vmatprep.subr.mxu0 0.0
  %3688 = vmatpush1.msra.mxu0 0.0
  %3689 = vmatprep.subr.mxu0 0.0
  %3690 = vmatpush1.msra.mxu0 0.0
  %3691 = vmatprep.subr.mxu0 0.0
  %3692 = vmatpush1.msra.mxu0 0.0
  %3693 = vmatprep.subr.mxu0 0.0
  %3694 = vmatpush1.msra.mxu0 0.0
  %3695 = vmatprep.subr.mxu0 0.0
  %3696 = vmatpush1.msra.mxu0 0.0
  %3697 = vmatprep.subr.mxu0 0.0
  %3698 = vmatpush1.msra.mxu0 0.0
  %3699 = vmatprep.subr.mxu0 0.0
  %3700 = vmatpush1.msra.mxu0 0.0
  %3701 = vmatprep.subr.mxu0 0.0
  %3702 = vmatpush1.msra.mxu0 0.0
  %3703 = vmatprep.mubr.f32.mxu0 0.0
  %3704 = vmatmul.mubr.f32.gmra.mrb[0].mxu0 %v3631
  %v3705 = vpop.f32.mrb[0].mxu0
  %v3706 = vadd.f32 0.0, %v3705
  %v3707 = vpop.f32.mrb[0].mxu0
  %3708 = vmatprep.mubr.f32.mxu0 0.0
  %3709 = vmatmul.mubr.f32.gmra.mrb[0].mxu0 %v3633
  %v3710 = vpop.f32.mrb[0].mxu0
  %v3711 = vadd.f32 0.0, %v3710
  %v3712 = vpop.f32.mrb[0].mxu0
  %3713 = vmatprep.mubr.f32.mxu0 0.0
  %3714 = vmatmul.mubr.f32.gmra.mrb[0].mxu0 %v3635
  %v3715 = vpop.f32.mrb[0].mxu0
  %v3716 = vadd.f32 0.0, %v3715
  %v3717 = vpop.f32.mrb[0].mxu0
  %3718 = vmatprep.mubr.f32.mxu0 0.0
  %3719 = vmatmul.mubr.f32.gmra.mrb[0].mxu0 %v3637
  %v3720 = vpop.f32.mrb[0].mxu0
  %v3721 = vadd.f32 0.0, %v3720
  %v3722 = vpop.f32.mrb[0].mxu0
  %3723 = vdwg.mxu0
  %3724 = vmatprep.subr.mxu0 0.0
  %3725 = vmatpush1.msra.mxu0 %v3535
  %3726 = vmatprep.subr.mxu0 0.0
  %3727 = vmatpush1.msra.mxu0 %v3536
  %3728 = vmatprep.subr.mxu0 0.0
  %3729 = vmatpush1.msra.mxu0 %v3537
  %3730 = vmatprep.subr.mxu0 0.0
  %3731 = vmatpush1.msra.mxu0 %v3538
  %3732 = vmatprep.subr.mxu0 0.0
  %3733 = vmatpush1.msra.mxu0 0.0
  %3734 = vmatprep.subr.mxu0 0.0
  %3735 = vmatpush1.msra.mxu0 0.0
  %3736 = vmatprep.subr.mxu0 0.0
  %3737 = vmatpush1.msra.mxu0 0.0
  %3738 = vmatprep.subr.mxu0 0.0
  %3739 = vmatpush1.msra.mxu0 0.0
  %3740 = vmatprep.subr.mxu0 0.0
  %3741 = vmatpush1.msra.mxu0 0.0
  %3742 = vmatprep.subr.mxu0 0.0
  %3743 = vmatpush1.msra.mxu0 0.0
  %3744 = vmatprep.subr.mxu0 0.0
  %3745 = vmatpush1.msra.mxu0 0.0
  %3746 = vmatprep.subr.mxu0 0.0
  %3747 = vmatpush1.msra.mxu0 0.0
  %3748 = vmatprep.subr.mxu0 0.0
  %3749 = vmatpush1.msra.mxu0 0.0
  %3750 = vmatprep.subr.mxu0 0.0
  %3751 = vmatpush1.msra.mxu0 0.0
  %3752 = vmatprep.subr.mxu0 0.0
  %3753 = vmatpush1.msra.mxu0 0.0
  %3754 = vmatprep.subr.mxu0 0.0
  %3755 = vmatpush1.msra.mxu0 0.0
  %3756 = vmatprep.subr.mxu0 0.0
  %3757 = vmatpush1.msra.mxu0 0.0
  %3758 = vmatprep.subr.mxu0 0.0
  %3759 = vmatpush1.msra.mxu0 0.0
  %3760 = vmatprep.subr.mxu0 0.0
  %3761 = vmatpush1.msra.mxu0 0.0
  %3762 = vmatprep.subr.mxu0 0.0
  %3763 = vmatpush1.msra.mxu0 0.0
  %3764 = vmatprep.subr.mxu0 0.0
  %3765 = vmatpush1.msra.mxu0 0.0
  %3766 = vmatprep.subr.mxu0 0.0
  %3767 = vmatpush1.msra.mxu0 0.0
  %3768 = vmatprep.subr.mxu0 0.0
  %3769 = vmatpush1.msra.mxu0 0.0
  %3770 = vmatprep.subr.mxu0 0.0
  %3771 = vmatpush1.msra.mxu0 0.0
  %3772 = vmatprep.subr.mxu0 0.0
  %3773 = vmatpush1.msra.mxu0 0.0
  %3774 = vmatprep.subr.mxu0 0.0
  %3775 = vmatpush1.msra.mxu0 0.0
  %3776 = vmatprep.subr.mxu0 0.0
  %3777 = vmatpush1.msra.mxu0 0.0
  %3778 = vmatprep.subr.mxu0 0.0
  %3779 = vmatpush1.msra.mxu0 0.0
  %3780 = vmatprep.subr.mxu0 0.0
  %3781 = vmatpush1.msra.mxu0 0.0
  %3782 = vmatprep.subr.mxu0 0.0
  %3783 = vmatpush1.msra.mxu0 0.0
  %3784 = vmatprep.subr.mxu0 0.0
  %3785 = vmatpush1.msra.mxu0 0.0
  %3786 = vmatprep.subr.mxu0 0.0
  %3787 = vmatpush1.msra.mxu0 0.0
  %3788 = vmatprep.mubr.f32.mxu0 0.0
  %3789 = vmatmul.mubr.f32.gmra.mrb[0].mxu0 %v571
  %v3790 = vpop.f32.mrb[0].mxu0
  %v3791 = vadd.f32 %v3706, %v3790
  %v3792 = vpop.f32.mrb[0].mxu0
  %3793 = vmatprep.mubr.f32.mxu0 0.0
  %3794 = vmatmul.mubr.f32.gmra.mrb[0].mxu0 %v573
  %v3795 = vpop.f32.mrb[0].mxu0
  %v3796 = vadd.f32 %v3711, %v3795
  %v3797 = vpop.f32.mrb[0].mxu0
  %3798 = vmatprep.mubr.f32.mxu0 0.0
  %3799 = vmatmul.mubr.f32.gmra.mrb[0].mxu0 %v575
  %v3800 = vpop.f32.mrb[0].mxu0
  %v3801 = vadd.f32 %v3716, %v3800
  %v3802 = vpop.f32.mrb[0].mxu0
  %3803 = vmatprep.mubr.f32.mxu0 0.0
  %3804 = vmatmul.mubr.f32.gmra.mrb[0].mxu0 %v577
  %v3805 = vpop.f32.mrb[0].mxu0
  %v3806 = vadd.f32 %v3721, %v3805
  %v3807 = vpop.f32.mrb[0].mxu0
  %3808 = vdwg.mxu0
  %v3809 = vld [vmem:[%s63] sm:$0x1]
  %v3811 = vlaneseq
  %v3812 = vshrl.u32 %v3811, 7
  %v3813 = vsub.s32 0, %v3812
  %v3814 = vrot.slane %v3809, %v3813
  %v3816 = vadd.f32 %v3791, %v3814
  %v3817 = vadd.f32 %v3796, %v3814
  %v3818 = vadd.f32 %v3801, %v3814
  %v3819 = vadd.f32 %v3806, %v3814
  %3820 = vst.msk [vmem:[%s65] sm:$0xff] %vm1220, %v3816
  %3821 = vst.msk [vmem:[%s65 + $0x8] sm:$0xff] %vm1220, %v3817
  %3822 = vst.msk [vmem:[%s65 + $0x10] sm:$0xff] %vm1220, %v3818
  %3823 = vst.msk [vmem:[%s65 + $0x18] sm:$0xff] %vm1220, %v3819
  // Predicated region
  $region130: #{dgcn_forward.1} parent=0 // pred_check
    _
  $region131: #{dgcn_forward.1} parent=0 // pred_check_branch
    %3825 = sbr.rel (0) target = $region133
  $region132: #{dgcn_forward.1} parent=0 // pred_region
    _
  $region133: #{dgcn_forward.1} parent=0 // pred_fallthru
    _
  // Predicated region
  $region134: #{dgcn_forward.1} parent=0 // pred_check
    _
  $region135: #{dgcn_forward.1} parent=0 // pred_check_branch
    %3827 = sbr.rel (0) target = $region137
  $region136: #{dgcn_forward.1} parent=0 // pred_region
    _
  $region137: #{dgcn_forward.1} parent=0 // pred_fallthru
    _
  // Predicated region
  $region138: #{dgcn_forward.1} parent=0 // pred_check
    _
  $region139: #{dgcn_forward.1} parent=0 // pred_check_branch
    %3829 = sbr.rel (0) target = $region141
  $region140: #{dgcn_forward.1} parent=0 // pred_region
    _
  $region141: #{dgcn_forward.1} parent=0 // pred_fallthru
    _
  // Predicated region
  $region142: #{dgcn_forward.1} parent=0 // pred_check
    _
  $region143: #{dgcn_forward.1} parent=0 // pred_check_branch
    %3831 = sbr.rel (0) target = $region145
  $region144: #{dgcn_forward.1} parent=0 // pred_region
    _
  $region145: #{dgcn_forward.1} parent=0 // pred_fallthru
    _

</llo_original>
